<compile_context>
chip_gen: v7x
topology: tpu7x:2x2x1
jax: 0.10.0
libtpu: 0.0.40
codegen_flags: <defaults>
</compile_context>

<pallas_src>
import jax
import jax.numpy as jnp
from jax import lax
from jax.experimental import pallas as pl
from jax.experimental.pallas import tpu as pltpu


def _round_up(v, m):
    return (v + m - 1) // m * m


def node_processor_kernel(offs_ref, nblk_ref, col_ref, x_ref, ea_ref,
                          w1x_ref, w1e_ref, b1_ref, w2_ref, b2_ref,
                          w3_ref, b3_ref, gamma_ref, beta_ref,
                          out_ref, acc_ref):
    i = pl.program_id(0)          # node tile index
    k = pl.program_id(1)          # local edge-block index within this tile's segment
    tn, De = acc_ref.shape

    @pl.when(k == 0)
    def _zero_acc():
        acc_ref[...] = jnp.zeros_like(acc_ref)

    nb = nblk_ref[i]              # number of edge blocks touching this node tile

    @pl.when(k < nb)
    def _aggregate():
        blk = offs_ref[i] + k                                   # global edge-block index
        col_blk = col_ref[pl.ds(blk, 1), :]                     # (1, te) int32, col-sorted
        node_ids = i * tn + lax.broadcasted_iota(jnp.int32, (tn, 1), 0)
        onehot = (node_ids == col_blk).astype(jnp.bfloat16)     # (tn, te), exact 0/1
        # edge_attr packed as [hi | lo] bf16 -> one 256-wide MXU matmul, f32 acc.
        r = jnp.dot(onehot, ea_ref[...], preferred_element_type=jnp.float32)
        acc_ref[...] += r[:, :De] + r[:, De:]

    @pl.when(k == pl.num_programs(1) - 1)
    def _finalize():
        x = x_ref[...]                                          # (tn, Dn)
        agg = acc_ref[...]                                      # (tn, De)

        # MLP (w1 split -> no concat): Linear -> ReLU -> Linear -> ReLU -> Linear
        h = (jnp.dot(x, w1x_ref[...], preferred_element_type=jnp.float32)
             + jnp.dot(agg, w1e_ref[...], preferred_element_type=jnp.float32)
             + b1_ref[...])
        h = jnp.maximum(h, 0.0)
        h = jnp.dot(h, w2_ref[...], preferred_element_type=jnp.float32) + b2_ref[...]
        h = jnp.maximum(h, 0.0)
        h = jnp.dot(h, w3_ref[...], preferred_element_type=jnp.float32) + b3_ref[...]

        # LayerNorm (eps=1e-5, affine), two-pass statistics (cancellation-safe).
        mean = jnp.mean(h, axis=-1, keepdims=True)
        c = h - mean
        var = jnp.mean(c * c, axis=-1, keepdims=True)
        h = c * lax.rsqrt(var + 1e-5)
        h = h * gamma_ref[...] + beta_ref[...]

        # residual
        out_ref[...] = h + x


def node_processor(x, edge_index, edge_attr, params, *, tn=512, te=1024):
    """x: (N, Dn) f32, edge_index: (2, E) i32, edge_attr: (E, De) f32.

    Note: not meant to be wrapped in jax.jit directly (the segment grid extent
    is concretized from the edge distribution); the pallas_call itself compiles.
    """
    N, Dn = x.shape
    E, De = edge_attr.shape
    (w1, b1, w2, b2, w3, b3, gamma, beta) = params
    H = w1.shape[1]

    # Split the first linear layer instead of concatenating [x, agg].
    w1x = w1[:Dn]
    w1e = w1[Dn:]

    # Clamp tiles to the padded problem size (keep lane/sublane multiples).
    tn = max(128, min(tn, _round_up(N, 256)))
    te = max(128, min(te, _round_up(E, 256)))
    n_tiles = pl.cdiv(N, tn)
    e_tiles = pl.cdiv(E, te)
    N_pad = n_tiles * tn
    E_pad = e_tiles * te

    # ---- Edge-sorted segment preprocessing (XLA side) ----
    col = edge_index[1].astype(jnp.int32)
    order = jnp.argsort(col)
    col_s = jnp.take(col, order)
    ea_s = jnp.take(edge_attr, order, axis=0)
    if E_pad != E:
        # Sentinel col = N_pad never matches any (real or padded) node row.
        col_s = jnp.pad(col_s, (0, E_pad - E), constant_values=N_pad)
        ea_s = jnp.pad(ea_s, ((0, E_pad - E), (0, 0)))

    # bf16 hi/lo split of edge_attr: exact 0/1 one-hot * (hi + lo) ~ f32 precise,
    # same HBM bytes as f32, runs at bf16 MXU rate.
    ea_hi = ea_s.astype(jnp.bfloat16)
    ea_lo = (ea_s - ea_hi.astype(jnp.float32)).astype(jnp.bfloat16)
    ea_packed = jnp.concatenate([ea_hi, ea_lo], axis=-1)       # (E_pad, 2*De) bf16

    col2d = col_s.reshape(e_tiles, te)                         # resident in VMEM once

    # Per-node-tile edge-block offset/count table (scalar-prefetched to SMEM).
    tile_starts = jnp.arange(n_tiles, dtype=jnp.int32) * tn
    start_edge = jnp.searchsorted(col_s, tile_starts)
    end_edge = jnp.searchsorted(col_s, tile_starts + tn)
    first_block = start_edge // te
    last_block_excl = (end_edge + te - 1) // te
    nblk = jnp.where(end_edge > start_edge,
                     last_block_excl - first_block, 0).astype(jnp.int32)
    offs = jnp.clip(first_block, 0, e_tiles - 1).astype(jnp.int32)
    # Static grid extent along the segment axis (concrete Python int).
    max_blocks = max(int(jnp.max(nblk)), 1)

    x_p = jnp.pad(x, ((0, N_pad - N), (0, 0))) if N_pad != N else x

    const = lambda i, k, o, n: (0, 0)

    def ea_index_map(i, k, offs_ref, nblk_ref):
        # Stay inside this tile's segment; repeated block indices elide the DMA.
        kk = jnp.minimum(k, jnp.maximum(nblk_ref[i] - 1, 0))
        return (offs_ref[i] + kk, 0)

    grid_spec = pltpu.PrefetchScalarGridSpec(
        num_scalar_prefetch=2,
        grid=(n_tiles, max_blocks),
        in_specs=[
            pl.BlockSpec((e_tiles, te), const),                 # col (resident)
            pl.BlockSpec((tn, Dn), lambda i, k, o, n: (i, 0)),  # x
            pl.BlockSpec((te, 2 * De), ea_index_map),           # edge_attr [hi|lo]
            pl.BlockSpec((Dn, H), const),                       # w1_x
            pl.BlockSpec((De, H), const),                       # w1_e
            pl.BlockSpec((1, H), const),                        # b1
            pl.BlockSpec((H, H), const),                        # w2
            pl.BlockSpec((1, H), const),                        # b2
            pl.BlockSpec((H, Dn), const),                       # w3
            pl.BlockSpec((1, Dn), const),                       # b3
            pl.BlockSpec((1, Dn), const),                       # gamma
            pl.BlockSpec((1, Dn), const),                       # beta
        ],
        out_specs=pl.BlockSpec((tn, Dn), lambda i, k, o, n: (i, 0)),
        scratch_shapes=[pltpu.VMEM((tn, De), jnp.float32)],
    )

    out = pl.pallas_call(
        node_processor_kernel,
        out_shape=jax.ShapeDtypeStruct((N_pad, Dn), jnp.float32),
        grid_spec=grid_spec,
        compiler_params=pltpu.CompilerParams(
            dimension_semantics=("parallel", "arbitrary"),
            vmem_limit_bytes=48 * 1024 * 1024,
        ),
    )(offs, nblk, col2d, x_p, ea_packed, w1x, w1e, b1, w2, b2, w3, b3, gamma, beta)

    return out[:N] if N_pad != N else out


def init_params(key, in_dim_node, in_dim_edge, hidden_dim):
    """Deterministic synthetic parameters (shapes follow the module's MLP)."""
    ks = jax.random.split(key, 6)
    d_in = in_dim_node + in_dim_edge
    scale = 0.1
    w1 = scale * jax.random.normal(ks[0], (d_in, hidden_dim), jnp.float32)
    b1 = scale * jax.random.normal(ks[1], (1, hidden_dim), jnp.float32)
    w2 = scale * jax.random.normal(ks[2], (hidden_dim, hidden_dim), jnp.float32)
    b2 = scale * jax.random.normal(ks[3], (1, hidden_dim), jnp.float32)
    w3 = scale * jax.random.normal(ks[4], (hidden_dim, in_dim_node), jnp.float32)
    b3 = scale * jax.random.normal(ks[5], (1, in_dim_node), jnp.float32)
    gamma = jnp.ones((1, in_dim_node), jnp.float32)
    beta = jnp.zeros((1, in_dim_node), jnp.float32)
    return (w1, b1, w2, b2, w3, b3, gamma, beta)


def reference(x, edge_index, edge_attr, params):
    """Pure-JAX reference of NodeProcessor.forward for validation."""
    (w1, b1, w2, b2, w3, b3, gamma, beta) = params
    N = x.shape[0]
    col = edge_index[1]
    agg = jnp.zeros((N, edge_attr.shape[1]), jnp.float32).at[col].add(edge_attr)
    h = jnp.concatenate([x, agg], axis=-1)
    h = jnp.maximum(h @ w1 + b1, 0.0)
    h = jnp.maximum(h @ w2 + b2, 0.0)
    h = h @ w3 + b3
    mean = jnp.mean(h, axis=-1, keepdims=True)
    var = jnp.mean((h - mean) ** 2, axis=-1, keepdims=True)
    h = (h - mean) / jnp.sqrt(var + 1e-5) * gamma + beta
    return h + x


if __name__ == "__main__":
    # Small shapes; feature dims use the module defaults (128) -> lane-dense.
    N = 256          # number of nodes
    E = 512          # number of edges
    IN_DIM_NODE = 128
    IN_DIM_EDGE = 128
    HIDDEN_DIM = 128

    key = jax.random.PRNGKey(0)
    k_x, k_e, k_c, k_r, k_p = jax.random.split(key, 5)

    x = jax.random.normal(k_x, (N, IN_DIM_NODE), jnp.float32)
    edge_attr = jax.random.normal(k_e, (E, IN_DIM_EDGE), jnp.float32)
    col = jax.random.randint(k_c, (E,), 0, N, jnp.int32)
    col = col.at[0].set(N - 1)  # ensure scatter output covers the last node row
    row = jax.random.randint(k_r, (E,), 0, N, jnp.int32)
    edge_index = jnp.stack([row, col], axis=0)

    params = init_params(k_p, IN_DIM_NODE, IN_DIM_EDGE, HIDDEN_DIM)

    # Reference computed first (pure JAX) for validation.
    ref = reference(x, edge_index, edge_attr, params)

    out = node_processor(x, edge_index, edge_attr, params)
    out = jax.block_until_ready(out)

    assert out.shape == (N, IN_DIM_NODE)
    assert jnp.allclose(out, ref, atol=1e-4, rtol=1e-4), "mismatch vs reference"

    print("KERNEL_OK")
</pallas_src>

<mosaic_0001>
module attributes {stable_mosaic.version = 11 : i64} {
  func.func @node_processor_kernel(%arg0: i32, %arg1: i32, %arg2: memref<1xi32, #tpu.memory_space<smem>>, %arg3: memref<1xi32, #tpu.memory_space<smem>>, %arg4: memref<1x512xi32, #tpu.memory_space<vmem>>, %arg5: memref<256x128xf32, #tpu.memory_space<vmem>>, %arg6: memref<512x256xbf16, #tpu.memory_space<vmem>>, %arg7: memref<128x128xf32, #tpu.memory_space<vmem>>, %arg8: memref<128x128xf32, #tpu.memory_space<vmem>>, %arg9: memref<1x128xf32, #tpu.memory_space<vmem>>, %arg10: memref<128x128xf32, #tpu.memory_space<vmem>>, %arg11: memref<1x128xf32, #tpu.memory_space<vmem>>, %arg12: memref<128x128xf32, #tpu.memory_space<vmem>>, %arg13: memref<1x128xf32, #tpu.memory_space<vmem>>, %arg14: memref<1x128xf32, #tpu.memory_space<vmem>>, %arg15: memref<1x128xf32, #tpu.memory_space<vmem>>, %arg16: memref<256x128xf32, #tpu.memory_space<vmem>>, %arg17: memref<256x128xf32, #tpu.memory_space<vmem>>) attributes {dimension_semantics = [#tpu.dimension_semantics<parallel>, #tpu.dimension_semantics<arbitrary>], iteration_bounds = array<i64: 1, 1>, scalar_prefetch = 2 : i64, scratch_operands = 1 : i64, tpu.core_type = #tpu.core_type<tc>, window_params = [{pipeline_mode = #tpu.pipeline_mode<synchronous>, transform_indices = @transform_0, window_bounds = array<i64: 1, 512>}, {transform_indices = @transform_1, window_bounds = array<i64: 256, 128>}, {transform_indices = @transform_2, window_bounds = array<i64: 512, 256>}, {pipeline_mode = #tpu.pipeline_mode<synchronous>, transform_indices = @transform_3, window_bounds = array<i64: 128, 128>}, {pipeline_mode = #tpu.pipeline_mode<synchronous>, transform_indices = @transform_4, window_bounds = array<i64: 128, 128>}, {pipeline_mode = #tpu.pipeline_mode<synchronous>, transform_indices = @transform_5, window_bounds = array<i64: 1, 128>}, {pipeline_mode = #tpu.pipeline_mode<synchronous>, transform_indices = @transform_6, window_bounds = array<i64: 128, 128>}, {pipeline_mode = #tpu.pipeline_mode<synchronous>, transform_indices = @transform_7, window_bounds = array<i64: 1, 128>}, {pipeline_mode = #tpu.pipeline_mode<synchronous>, transform_indices = @transform_8, window_bounds = array<i64: 128, 128>}, {pipeline_mode = #tpu.pipeline_mode<synchronous>, transform_indices = @transform_9, window_bounds = array<i64: 1, 128>}, {pipeline_mode = #tpu.pipeline_mode<synchronous>, transform_indices = @transform_10, window_bounds = array<i64: 1, 128>}, {pipeline_mode = #tpu.pipeline_mode<synchronous>, transform_indices = @transform_11, window_bounds = array<i64: 1, 128>}, {transform_indices = @transform_12, window_bounds = array<i64: 256, 128>}]} {
    %c0_i32 = arith.constant 0 : i32
    %0 = arith.cmpi eq, %arg1, %c0_i32 : i32
    %1 = arith.extui %0 : i1 to i32
    %c0_i32_0 = arith.constant 0 : i32
    %2 = arith.cmpi ne, %1, %c0_i32_0 : i32
    scf.if %2 {
      %cst = arith.constant 0.000000e+00 : f32
      %11 = vector.broadcast %cst : f32 to vector<256x128xf32>
      %c0 = arith.constant 0 : index
      %c0_4 = arith.constant 0 : index
      %12 = vector.load %arg17[%c0, %c0_4] : memref<256x128xf32, #tpu.memory_space<vmem>>, vector<256x128xf32>
      tpu.vector_store %arg17[%c0, %c0_4], %11 {strides = array<i32>} : memref<256x128xf32, #tpu.memory_space<vmem>>, vector<256x128xf32>,
    } else {
    }
    %3 = arith.index_cast %arg0 : i32 to index
    %4 = memref.load %arg3[%3] : memref<1xi32, #tpu.memory_space<smem>>
    %5 = arith.cmpi slt, %arg1, %4 : i32
    %6 = arith.extui %5 : i1 to i32
    %c0_i32_1 = arith.constant 0 : i32
    %7 = arith.cmpi ne, %6, %c0_i32_1 : i32
    scf.if %7 {
      %11 = arith.index_cast %arg0 : i32 to index
      %12 = memref.load %arg2[%11] : memref<1xi32, #tpu.memory_space<smem>>
      %13 = arith.addi %12, %arg1 : i32
      %14 = arith.index_cast %13 : i32 to index
      %c0 = arith.constant 0 : index
      %15 = vector.load %arg4[%14, %c0] : memref<1x512xi32, #tpu.memory_space<vmem>>, vector<1x512xi32>
      %c256_i32 = arith.constant 256 : i32
      %16 = arith.muli %arg0, %c256_i32 : i32
      %17 = tpu.iota {dimensions = array<i32: 0>} : vector<256x1xi32>
      %18 = vector.broadcast %16 : i32 to vector<256x1xi32>
      %19 = arith.addi %18, %17 : vector<256x1xi32>
      %20 = vector.broadcast %19 : vector<256x1xi32> to vector<256x512xi32>
      %21 = vector.broadcast %15 : vector<1x512xi32> to vector<256x512xi32>
      %22 = arith.cmpi eq, %20, %21 : vector<256x512xi32>
      %23 = arith.extui %22 : vector<256x512xi1> to vector<256x512xi32>
      %24 = arith.sitofp %23 : vector<256x512xi32> to vector<256x512xf32>
      %25 = arith.truncf %24 : vector<256x512xf32> to vector<256x512xbf16>
      %c0_4 = arith.constant 0 : index
      %c0_5 = arith.constant 0 : index
      %26 = vector.load %arg6[%c0_4, %c0_5] : memref<512x256xbf16, #tpu.memory_space<vmem>>, vector<512x256xbf16>
      %cst = arith.constant dense<0.000000e+00> : vector<256x256xf32>
      %27 = tpu.matmul %25, %26, %cst {dimension_numbers = #tpu.dot_dimension_numbers<[1], [0], [0], [1], [0, 0, 1, 1], [], []>} : vector<256x512xbf16>, vector<512x256xbf16>, vector<256x256xf32> -> vector<256x256xf32>
      %c0_6 = arith.constant 0 : index
      %c0_7 = arith.constant 0 : index
      %28 = vector.load %arg17[%c0_6, %c0_7] : memref<256x128xf32, #tpu.memory_space<vmem>>, vector<256x128xf32>
      %29 = vector.extract_strided_slice %27 {offsets = [0, 0], sizes = [256, 128], strides = [1, 1]} : vector<256x256xf32> to vector<256x128xf32>
      %30 = vector.extract_strided_slice %27 {offsets = [0, 128], sizes = [256, 128], strides = [1, 1]} : vector<256x256xf32> to vector<256x128xf32>
      %31 = arith.addf %29, %30 : vector<256x128xf32>
      %32 = arith.addf %28, %31 : vector<256x128xf32>
      %c0_8 = arith.constant 0 : index
      %c0_9 = arith.constant 0 : index
      %33 = vector.load %arg17[%c0_8, %c0_9] : memref<256x128xf32, #tpu.memory_space<vmem>>, vector<256x128xf32>
      tpu.vector_store %arg17[%c0_8, %c0_9], %32 {strides = array<i32>} : memref<256x128xf32, #tpu.memory_space<vmem>>, vector<256x128xf32>,
    } else {
    }
    %c0_i32_2 = arith.constant 0 : i32
    %8 = arith.cmpi eq, %arg1, %c0_i32_2 : i32
    %9 = arith.extui %8 : i1 to i32
    %c0_i32_3 = arith.constant 0 : i32
    %10 = arith.cmpi ne, %9, %c0_i32_3 : i32
    scf.if %10 {
      %c0 = arith.constant 0 : index
      %c0_4 = arith.constant 0 : index
      %11 = vector.load %arg5[%c0, %c0_4] : memref<256x128xf32, #tpu.memory_space<vmem>>, vector<256x128xf32>
      %c0_5 = arith.constant 0 : index
      %c0_6 = arith.constant 0 : index
      %12 = vector.load %arg17[%c0_5, %c0_6] : memref<256x128xf32, #tpu.memory_space<vmem>>, vector<256x128xf32>
      %c0_7 = arith.constant 0 : index
      %c0_8 = arith.constant 0 : index
      %13 = vector.load %arg7[%c0_7, %c0_8] : memref<128x128xf32, #tpu.memory_space<vmem>>, vector<128x128xf32>
      %cst = arith.constant dense<0.000000e+00> : vector<256x128xf32>
      %14 = tpu.matmul %11, %13, %cst {dimension_numbers = #tpu.dot_dimension_numbers<[1], [0], [0], [1], [0, 0, 1, 1], [], []>} : vector<256x128xf32>, vector<128x128xf32>, vector<256x128xf32> -> vector<256x128xf32>
      %c0_9 = arith.constant 0 : index
      %c0_10 = arith.constant 0 : index
      %15 = vector.load %arg8[%c0_9, %c0_10] : memref<128x128xf32, #tpu.memory_space<vmem>>, vector<128x128xf32>
      %cst_11 = arith.constant dense<0.000000e+00> : vector<256x128xf32>
      %16 = tpu.matmul %12, %15, %cst_11 {dimension_numbers = #tpu.dot_dimension_numbers<[1], [0], [0], [1], [0, 0, 1, 1], [], []>} : vector<256x128xf32>, vector<128x128xf32>, vector<256x128xf32> -> vector<256x128xf32>
      %17 = arith.addf %14, %16 : vector<256x128xf32>
      %c0_12 = arith.constant 0 : index
      %c0_13 = arith.constant 0 : index
      %18 = vector.load %arg9[%c0_12, %c0_13] : memref<1x128xf32, #tpu.memory_space<vmem>>, vector<1x128xf32>
      %19 = vector.broadcast %18 : vector<1x128xf32> to vector<256x128xf32>
      %20 = arith.addf %17, %19 : vector<256x128xf32>
      %cst_14 = arith.constant 0.000000e+00 : f32
      %21 = vector.broadcast %cst_14 : f32 to vector<256x128xf32>
      %22 = arith.maximumf %20, %21 : vector<256x128xf32>
      %c0_15 = arith.constant 0 : index
      %c0_16 = arith.constant 0 : index
      %23 = vector.load %arg10[%c0_15, %c0_16] : memref<128x128xf32, #tpu.memory_space<vmem>>, vector<128x128xf32>
      %cst_17 = arith.constant dense<0.000000e+00> : vector<256x128xf32>
      %24 = tpu.matmul %22, %23, %cst_17 {dimension_numbers = #tpu.dot_dimension_numbers<[1], [0], [0], [1], [0, 0, 1, 1], [], []>} : vector<256x128xf32>, vector<128x128xf32>, vector<256x128xf32> -> vector<256x128xf32>
      %c0_18 = arith.constant 0 : index
      %c0_19 = arith.constant 0 : index
      %25 = vector.load %arg11[%c0_18, %c0_19] : memref<1x128xf32, #tpu.memory_space<vmem>>, vector<1x128xf32>
      %26 = vector.broadcast %25 : vector<1x128xf32> to vector<256x128xf32>
      %27 = arith.addf %24, %26 : vector<256x128xf32>
      %cst_20 = arith.constant 0.000000e+00 : f32
      %28 = vector.broadcast %cst_20 : f32 to vector<256x128xf32>
      %29 = arith.maximumf %27, %28 : vector<256x128xf32>
      %c0_21 = arith.constant 0 : index
      %c0_22 = arith.constant 0 : index
      %30 = vector.load %arg12[%c0_21, %c0_22] : memref<128x128xf32, #tpu.memory_space<vmem>>, vector<128x128xf32>
      %cst_23 = arith.constant dense<0.000000e+00> : vector<256x128xf32>
      %31 = tpu.matmul %29, %30, %cst_23 {dimension_numbers = #tpu.dot_dimension_numbers<[1], [0], [0], [1], [0, 0, 1, 1], [], []>} : vector<256x128xf32>, vector<128x128xf32>, vector<256x128xf32> -> vector<256x128xf32>
      %c0_24 = arith.constant 0 : index
      %c0_25 = arith.constant 0 : index
      %32 = vector.load %arg13[%c0_24, %c0_25] : memref<1x128xf32, #tpu.memory_space<vmem>>, vector<1x128xf32>
      %33 = vector.broadcast %32 : vector<1x128xf32> to vector<256x128xf32>
      %34 = arith.addf %31, %33 : vector<256x128xf32>
      %cst_26 = arith.constant dense<0.000000e+00> : vector<256xf32>
      %35 = vector.multi_reduction <add>, %34, %cst_26 [1] : vector<256x128xf32> to vector<256xf32>
      %36 = vector.shape_cast %35 : vector<256xf32> to vector<256x1xf32>
      %cst_27 = arith.constant 1.280000e+02 : f32
      %37 = vector.broadcast %cst_27 : f32 to vector<256x1xf32>
      %38 = arith.divf %36, %37 : vector<256x1xf32>
      %39 = vector.broadcast %38 : vector<256x1xf32> to vector<256x128xf32>
      %40 = arith.subf %34, %39 : vector<256x128xf32>
      %41 = arith.mulf %40, %40 : vector<256x128xf32>
      %cst_28 = arith.constant dense<0.000000e+00> : vector<256xf32>
      %42 = vector.multi_reduction <add>, %41, %cst_28 [1] : vector<256x128xf32> to vector<256xf32>
      %43 = vector.shape_cast %42 : vector<256xf32> to vector<256x1xf32>
      %cst_29 = arith.constant 1.280000e+02 : f32
      %44 = vector.broadcast %cst_29 : f32 to vector<256x1xf32>
      %45 = arith.divf %43, %44 : vector<256x1xf32>
      %cst_30 = arith.constant 9.99999974E-6 : f32
      %46 = vector.broadcast %cst_30 : f32 to vector<256x1xf32>
      %47 = arith.addf %45, %46 : vector<256x1xf32>
      %48 = math.rsqrt %47 : vector<256x1xf32>
      %49 = vector.broadcast %48 : vector<256x1xf32> to vector<256x128xf32>
      %50 = arith.mulf %40, %49 : vector<256x128xf32>
      %c0_31 = arith.constant 0 : index
      %c0_32 = arith.constant 0 : index
      %51 = vector.load %arg14[%c0_31, %c0_32] : memref<1x128xf32, #tpu.memory_space<vmem>>, vector<1x128xf32>
      %52 = vector.broadcast %51 : vector<1x128xf32> to vector<256x128xf32>
      %53 = arith.mulf %50, %52 : vector<256x128xf32>
      %c0_33 = arith.constant 0 : index
      %c0_34 = arith.constant 0 : index
      %54 = vector.load %arg15[%c0_33, %c0_34] : memref<1x128xf32, #tpu.memory_space<vmem>>, vector<1x128xf32>
      %55 = vector.broadcast %54 : vector<1x128xf32> to vector<256x128xf32>
      %56 = arith.addf %53, %55 : vector<256x128xf32>
      %57 = arith.addf %56, %11 : vector<256x128xf32>
      %c0_35 = arith.constant 0 : index
      %c0_36 = arith.constant 0 : index
      %58 = vector.load %arg16[%c0_35, %c0_36] : memref<256x128xf32, #tpu.memory_space<vmem>>, vector<256x128xf32>
      tpu.vector_store %arg16[%c0_35, %c0_36], %57 {strides = array<i32>} : memref<256x128xf32, #tpu.memory_space<vmem>>, vector<256x128xf32>,
    } else {
    }
    return
  }
  func.func @transform_0(%arg0: i32, %arg1: i32, %arg2: memref<1xi32, #tpu.memory_space<smem>>, %arg3: memref<1xi32, #tpu.memory_space<smem>>) -> (i32, i32) {
    %c0_i32 = arith.constant 0 : i32
    %c0_i32_0 = arith.constant 0 : i32
    %c0_i32_1 = arith.constant 0 : i32
    return %c0_i32, %c0_i32_0 : i32, i32
  }
  func.func @transform_1(%arg0: i32, %arg1: i32, %arg2: memref<1xi32, #tpu.memory_space<smem>>, %arg3: memref<1xi32, #tpu.memory_space<smem>>) -> (i32, i32) {
    %c0_i32 = arith.constant 0 : i32
    %c0_i32_0 = arith.constant 0 : i32
    return %arg0, %c0_i32 : i32, i32
  }
  func.func @transform_2(%arg0: i32, %arg1: i32, %arg2: memref<1xi32, #tpu.memory_space<smem>>, %arg3: memref<1xi32, #tpu.memory_space<smem>>) -> (i32, i32) {
    %0 = arith.index_cast %arg0 : i32 to index
    %1 = memref.load %arg3[%0] : memref<1xi32, #tpu.memory_space<smem>>
    %c1_i32 = arith.constant 1 : i32
    %2 = arith.subi %1, %c1_i32 : i32
    %c0_i32 = arith.constant 0 : i32
    %3 = arith.maxsi %2, %c0_i32 : i32
    %4 = arith.minsi %arg1, %3 : i32
    %5 = arith.index_cast %arg0 : i32 to index
    %6 = memref.load %arg2[%5] : memref<1xi32, #tpu.memory_space<smem>>
    %7 = arith.addi %6, %4 : i32
    %c0_i32_0 = arith.constant 0 : i32
    %c0_i32_1 = arith.constant 0 : i32
    return %7, %c0_i32_0 : i32, i32
  }
  func.func @transform_3(%arg0: i32, %arg1: i32, %arg2: memref<1xi32, #tpu.memory_space<smem>>, %arg3: memref<1xi32, #tpu.memory_space<smem>>) -> (i32, i32) {
    %c0_i32 = arith.constant 0 : i32
    %c0_i32_0 = arith.constant 0 : i32
    %c0_i32_1 = arith.constant 0 : i32
    return %c0_i32, %c0_i32_0 : i32, i32
  }
  func.func @transform_4(%arg0: i32, %arg1: i32, %arg2: memref<1xi32, #tpu.memory_space<smem>>, %arg3: memref<1xi32, #tpu.memory_space<smem>>) -> (i32, i32) {
    %c0_i32 = arith.constant 0 : i32
    %c0_i32_0 = arith.constant 0 : i32
    %c0_i32_1 = arith.constant 0 : i32
    return %c0_i32, %c0_i32_0 : i32, i32
  }
  func.func @transform_5(%arg0: i32, %arg1: i32, %arg2: memref<1xi32, #tpu.memory_space<smem>>, %arg3: memref<1xi32, #tpu.memory_space<smem>>) -> (i32, i32) {
    %c0_i32 = arith.constant 0 : i32
    %c0_i32_0 = arith.constant 0 : i32
    %c0_i32_1 = arith.constant 0 : i32
    return %c0_i32, %c0_i32_0 : i32, i32
  }
  func.func @transform_6(%arg0: i32, %arg1: i32, %arg2: memref<1xi32, #tpu.memory_space<smem>>, %arg3: memref<1xi32, #tpu.memory_space<smem>>) -> (i32, i32) {
    %c0_i32 = arith.constant 0 : i32
    %c0_i32_0 = arith.constant 0 : i32
    %c0_i32_1 = arith.constant 0 : i32
    return %c0_i32, %c0_i32_0 : i32, i32
  }
  func.func @transform_7(%arg0: i32, %arg1: i32, %arg2: memref<1xi32, #tpu.memory_space<smem>>, %arg3: memref<1xi32, #tpu.memory_space<smem>>) -> (i32, i32) {
    %c0_i32 = arith.constant 0 : i32
    %c0_i32_0 = arith.constant 0 : i32
    %c0_i32_1 = arith.constant 0 : i32
    return %c0_i32, %c0_i32_0 : i32, i32
  }
  func.func @transform_8(%arg0: i32, %arg1: i32, %arg2: memref<1xi32, #tpu.memory_space<smem>>, %arg3: memref<1xi32, #tpu.memory_space<smem>>) -> (i32, i32) {
    %c0_i32 = arith.constant 0 : i32
    %c0_i32_0 = arith.constant 0 : i32
    %c0_i32_1 = arith.constant 0 : i32
    return %c0_i32, %c0_i32_0 : i32, i32
  }
  func.func @transform_9(%arg0: i32, %arg1: i32, %arg2: memref<1xi32, #tpu.memory_space<smem>>, %arg3: memref<1xi32, #tpu.memory_space<smem>>) -> (i32, i32) {
    %c0_i32 = arith.constant 0 : i32
    %c0_i32_0 = arith.constant 0 : i32
    %c0_i32_1 = arith.constant 0 : i32
    return %c0_i32, %c0_i32_0 : i32, i32
  }
  func.func @transform_10(%arg0: i32, %arg1: i32, %arg2: memref<1xi32, #tpu.memory_space<smem>>, %arg3: memref<1xi32, #tpu.memory_space<smem>>) -> (i32, i32) {
    %c0_i32 = arith.constant 0 : i32
    %c0_i32_0 = arith.constant 0 : i32
    %c0_i32_1 = arith.constant 0 : i32
    return %c0_i32, %c0_i32_0 : i32, i32
  }
  func.func @transform_11(%arg0: i32, %arg1: i32, %arg2: memref<1xi32, #tpu.memory_space<smem>>, %arg3: memref<1xi32, #tpu.memory_space<smem>>) -> (i32, i32) {
    %c0_i32 = arith.constant 0 : i32
    %c0_i32_0 = arith.constant 0 : i32
    %c0_i32_1 = arith.constant 0 : i32
    return %c0_i32, %c0_i32_0 : i32, i32
  }
  func.func @transform_12(%arg0: i32, %arg1: i32, %arg2: memref<1xi32, #tpu.memory_space<smem>>, %arg3: memref<1xi32, #tpu.memory_space<smem>>) -> (i32, i32) {
    %c0_i32 = arith.constant 0 : i32
    %c0_i32_0 = arith.constant 0 : i32
    return %arg0, %c0_i32 : i32, i32
  }
}

</mosaic_0001>

<llo_original>
// kernel: tpu_custom_call.1
$region0: #{tpu_custom_call.1}
  #allocation0 [shape = 'u32[]', space=smem, size = 0x4, offset = 0x4, fixed_abs, tag = 'smem constant byte address 0x4 - core index']
  #allocation1 [shape = 'u32[144,128]{1,0:T(1,128)}', space=vmem, size = 0x12000, scoped, tag = 'internal scratch']
  #allocation2 [shape = 'f32[256,128]{1,0:T(8,128)}', space=vmem, size = 0x20000, scoped, tag = 'scratch operand']
  #allocation3 [shape = 's32[1]{0}', space=sflag, size = 0x4, scoped, tag = 'scoped memory for tpu_custom_call.1']
  #allocation4 [shape = 's32[1]{0:T(128)S(6)}', space=smem, size = 0x200, scoped, tag = 'prefetched SMEM operand 0']
  #allocation5 [shape = 's32[1]{0:T(128)S(6)}', space=smem, size = 0x200, scoped, tag = 'prefetched SMEM operand 1']
  %s0 = inlined_call_operand.<no memory space> [shape: s32[1], index: 0, kind: input, shape index: {}]
  %s1 = inlined_call_operand.<no memory space> [shape: s32[1], index: 1, kind: input, shape index: {}]
  %s2 = inlined_call_operand.vmem [shape: s32[1,512], index: 2, kind: input, shape index: {}]
  %s3 = inlined_call_operand.hbm [shape: f32[256,128], index: 3, kind: input, shape index: {}]
  %s4 = inlined_call_operand.hbm [shape: bf16[512,256], index: 4, kind: input, shape index: {}]
  %s5 = inlined_call_operand.hbm [shape: f32[128,128], index: 5, kind: input, shape index: {}]
  %s6 = inlined_call_operand.hbm [shape: f32[128,128], index: 6, kind: input, shape index: {}]
  %s7 = inlined_call_operand.vmem [shape: f32[1,128], index: 7, kind: input, shape index: {}]
  %s8 = inlined_call_operand.hbm [shape: f32[128,128], index: 8, kind: input, shape index: {}]
  %s9 = inlined_call_operand.vmem [shape: f32[1,128], index: 9, kind: input, shape index: {}]
  %s10 = inlined_call_operand.hbm [shape: f32[128,128], index: 10, kind: input, shape index: {}]
  %s11 = inlined_call_operand.vmem [shape: f32[1,128], index: 11, kind: input, shape index: {}]
  %s12 = inlined_call_operand.vmem [shape: f32[1,128], index: 12, kind: input, shape index: {}]
  %s13 = inlined_call_operand.vmem [shape: f32[1,128], index: 13, kind: input, shape index: {}]
  %s14 = inlined_call_operand.hbm [shape: f32[256,128], index: 14, kind: output, shape index: {}]
  %s15 = sld [smem:[#allocation0]]
  $region94: #{tpu_custom_call.1} parent=0
    _
  %s17 = ssub.s32 1, %s15
  %s18 = scalar_select 0, %s17, %s15
  %19 = sst [smem:[#allocation4]] %s0
  %20 = sst [smem:[#allocation5]] %s1
  $region1: #{tpu_custom_call.1} parent=0
    #allocation6 [shape = 'u8[131072]{0}', space=vmem, size = 0x20000, scoped, tag = 'input window, operand 3, single buffered']
    #allocation7 [shape = 's32[1]{0}', space=sflag, size = 0x4, scoped, tag = 'scoped memory for tpu_custom_call.1']
    #allocation8 [shape = 's32[1]{0}', space=sflag, size = 0x4, scoped, tag = 'scoped memory for tpu_custom_call.1']
    #allocation9 [shape = 'u8[262144]{0}', space=vmem, size = 0x40000, scoped, tag = 'input window, operand 4, single buffered']
    #allocation10 [shape = 's32[1]{0}', space=sflag, size = 0x4, scoped, tag = 'scoped memory for tpu_custom_call.1']
    #allocation11 [shape = 'u8[65536]{0}', space=vmem, size = 0x10000, scoped, tag = 'input window, operand 5, single buffered']
    #allocation12 [shape = 'u8[65536]{0}', space=vmem, size = 0x10000, scoped, tag = 'input window, operand 6, single buffered']
    #allocation13 [shape = 's32[1]{0}', space=sflag, size = 0x4, scoped, tag = 'scoped memory for tpu_custom_call.1']
    #allocation14 [shape = 'u8[65536]{0}', space=vmem, size = 0x10000, scoped, tag = 'input window, operand 8, single buffered']
    #allocation15 [shape = 'u8[65536]{0}', space=vmem, size = 0x10000, scoped, tag = 'input window, operand 10, single buffered']
    #allocation16 [shape = 's32[1]{0}', space=sflag, size = 0x4, scoped, tag = 'scoped memory for tpu_custom_call.1']
    #allocation17 [shape = 'u8[131072]{0}', space=vmem, size = 0x20000, scoped, tag = 'output window, operand 0, single buffered']
    %21 = vsyncpa [#allocation7], 0
    %22 = vsyncpa [#allocation10], 0
    %23 = vsyncpa [#allocation13], 0
    %24 = vsyncpa [#allocation16], 0
    %25 = vsyncpa [#allocation8], 0
    // Predicated region
    $region2: #{tpu_custom_call.1} parent=1 // pred_check
      _
    $region3: #{tpu_custom_call.1} parent=1 // pred_check_branch
      %27 = sbr.rel (0) target = $region5
    $region4: #{tpu_custom_call.1} parent=1 // pred_region
      _
    $region5: #{tpu_custom_call.1} parent=1 // pred_fallthru
      _
    // Predicated region
    $region6: #{tpu_custom_call.1} parent=1 // pred_check
      _
    $region7: #{tpu_custom_call.1} parent=1 // pred_check_branch
      %29 = sbr.rel (0) target = $region9
    $region8: #{tpu_custom_call.1} parent=1 // pred_region
      %s31 = ssub.s32 4096, 4096
      %32 = vsyncadd [#allocation7], %s31
      %s33 = sshll.u32 [#allocation6], 4
      %s34 = int_to_ptr.vmem [resolvable:$true] %s33
      %39 = dma.hbm_to_vmem [thread:$0]  %s3, 4096, %s34, [#allocation7], 128, 128, 8
    $region9: #{tpu_custom_call.1} parent=1 // pred_fallthru
      _
    // Predicated region
    $region10: #{tpu_custom_call.1} parent=1 // pred_check
      _
    $region11: #{tpu_custom_call.1} parent=1 // pred_check_branch
      %41 = sbr.rel (0) target = $region13
    $region12: #{tpu_custom_call.1} parent=1 // pred_region
      %s42 = sld [smem:[#allocation5]]
      %s43 = ssub.s32 %s42, 1
      %p44 = scmp.gt.s32.totalorder %s43, 0
      %s45 = scalar_select %p44, %s43, 0
      %p46 = scmp.lt.s32.totalorder 0, %s45
      %s47 = scalar_select %p46, 0, %s45
      %s48 = sld [smem:[#allocation4]]
      %s49 = sadd.s32 %s48, %s47
      %s50 = smul.u32 64, %s49
      %s52 = ssub.s32 8192, 8192
      %53 = vsyncadd [#allocation10], %s52
      %s54 = smul.addr %s50, 2
      %s55 = smul.addr %s54, 64
      %s56 = scalar_lea.hbm %s4, %s55
      %s57 = sshll.u32 [#allocation9], 4
      %s58 = int_to_ptr.vmem [resolvable:$true] %s57
      %63 = dma.hbm_to_vmem [thread:$0]  %s56, 8192, %s58, [#allocation10], 128, 128, 8
    $region13: #{tpu_custom_call.1} parent=1 // pred_fallthru
      _
    // Predicated region
    $region14: #{tpu_custom_call.1} parent=1 // pred_check
      _
    $region15: #{tpu_custom_call.1} parent=1 // pred_check_branch
      %65 = sbr.rel (0) target = $region17
    $region16: #{tpu_custom_call.1} parent=1 // pred_region
      %s67 = ssub.s32 2048, 2048
      %68 = vsyncadd [#allocation10], %s67
      %s69 = sshll.u32 [#allocation11], 4
      %s70 = int_to_ptr.vmem [resolvable:$true] %s69
      %75 = dma.hbm_to_vmem [thread:$0]  %s5, 2048, %s70, [#allocation10], 128, 128, 8
    $region17: #{tpu_custom_call.1} parent=1 // pred_fallthru
      _
    // Predicated region
    $region18: #{tpu_custom_call.1} parent=1 // pred_check
      _
    $region19: #{tpu_custom_call.1} parent=1 // pred_check_branch
      %77 = sbr.rel (0) target = $region21
    $region20: #{tpu_custom_call.1} parent=1 // pred_region
      %s79 = ssub.s32 2048, 2048
      %80 = vsyncadd [#allocation13], %s79
      %s81 = sshll.u32 [#allocation12], 4
      %s82 = int_to_ptr.vmem [resolvable:$true] %s81
      %87 = dma.hbm_to_vmem [thread:$0]  %s6, 2048, %s82, [#allocation13], 128, 128, 8
    $region21: #{tpu_custom_call.1} parent=1 // pred_fallthru
      _
    // Predicated region
    $region22: #{tpu_custom_call.1} parent=1 // pred_check
      _
    $region23: #{tpu_custom_call.1} parent=1 // pred_check_branch
      %89 = sbr.rel (0) target = $region25
    $region24: #{tpu_custom_call.1} parent=1 // pred_region
      _
    $region25: #{tpu_custom_call.1} parent=1 // pred_fallthru
      _
    // Predicated region
    $region26: #{tpu_custom_call.1} parent=1 // pred_check
      _
    $region27: #{tpu_custom_call.1} parent=1 // pred_check_branch
      %91 = sbr.rel (0) target = $region29
    $region28: #{tpu_custom_call.1} parent=1 // pred_region
      %s93 = ssub.s32 2048, 2048
      %94 = vsyncadd [#allocation13], %s93
      %s95 = sshll.u32 [#allocation14], 4
      %s96 = int_to_ptr.vmem [resolvable:$true] %s95
      %101 = dma.hbm_to_vmem [thread:$0]  %s8, 2048, %s96, [#allocation13], 128, 128, 8
    $region29: #{tpu_custom_call.1} parent=1 // pred_fallthru
      _
    // Predicated region
    $region30: #{tpu_custom_call.1} parent=1 // pred_check
      _
    $region31: #{tpu_custom_call.1} parent=1 // pred_check_branch
      %103 = sbr.rel (0) target = $region33
    $region32: #{tpu_custom_call.1} parent=1 // pred_region
      _
    $region33: #{tpu_custom_call.1} parent=1 // pred_fallthru
      _
    // Predicated region
    $region34: #{tpu_custom_call.1} parent=1 // pred_check
      _
    $region35: #{tpu_custom_call.1} parent=1 // pred_check_branch
      %105 = sbr.rel (0) target = $region37
    $region36: #{tpu_custom_call.1} parent=1 // pred_region
      %s107 = ssub.s32 2048, 2048
      %108 = vsyncadd [#allocation16], %s107
      %s109 = sshll.u32 [#allocation15], 4
      %s110 = int_to_ptr.vmem [resolvable:$true] %s109
      %115 = dma.hbm_to_vmem [thread:$0]  %s10, 2048, %s110, [#allocation16], 128, 128, 8
    $region37: #{tpu_custom_call.1} parent=1 // pred_fallthru
      _
    // Predicated region
    $region38: #{tpu_custom_call.1} parent=1 // pred_check
      _
    $region39: #{tpu_custom_call.1} parent=1 // pred_check_branch
      %117 = sbr.rel (0) target = $region41
    $region40: #{tpu_custom_call.1} parent=1 // pred_region
      _
    $region41: #{tpu_custom_call.1} parent=1 // pred_fallthru
      _
    // Predicated region
    $region42: #{tpu_custom_call.1} parent=1 // pred_check
      _
    $region43: #{tpu_custom_call.1} parent=1 // pred_check_branch
      %119 = sbr.rel (0) target = $region45
    $region44: #{tpu_custom_call.1} parent=1 // pred_region
      _
    $region45: #{tpu_custom_call.1} parent=1 // pred_fallthru
      _
    // Predicated region
    $region46: #{tpu_custom_call.1} parent=1 // pred_check
      _
    $region47: #{tpu_custom_call.1} parent=1 // pred_check_branch
      %121 = sbr.rel (0) target = $region49
    $region48: #{tpu_custom_call.1} parent=1 // pred_region
      _
    $region49: #{tpu_custom_call.1} parent=1 // pred_fallthru
      _
    // Predicated region
    $region50: #{tpu_custom_call.1} parent=1 // pred_check
      _
    $region51: #{tpu_custom_call.1} parent=1 // pred_check_branch
      %123 = sbr.rel (0) target = $region53
    $region52: #{tpu_custom_call.1} parent=1 // pred_region
      %124 = dma.done [#allocation7], 4096
    $region53: #{tpu_custom_call.1} parent=1 // pred_fallthru
      _
    // Predicated region
    $region54: #{tpu_custom_call.1} parent=1 // pred_check
      _
    $region55: #{tpu_custom_call.1} parent=1 // pred_check_branch
      %126 = sbr.rel (0) target = $region57
    $region56: #{tpu_custom_call.1} parent=1 // pred_region
      %127 = dma.done [#allocation10], 8192
    $region57: #{tpu_custom_call.1} parent=1 // pred_fallthru
      _
    // Predicated region
    $region58: #{tpu_custom_call.1} parent=1 // pred_check
      _
    $region59: #{tpu_custom_call.1} parent=1 // pred_check_branch
      %129 = sbr.rel (0) target = $region61
    $region60: #{tpu_custom_call.1} parent=1 // pred_region
      %130 = dma.done [#allocation10], 2048
    $region61: #{tpu_custom_call.1} parent=1 // pred_fallthru
      _
    // Predicated region
    $region62: #{tpu_custom_call.1} parent=1 // pred_check
      _
    $region63: #{tpu_custom_call.1} parent=1 // pred_check_branch
      %132 = sbr.rel (0) target = $region65
    $region64: #{tpu_custom_call.1} parent=1 // pred_region
      %133 = dma.done [#allocation13], 2048
    $region65: #{tpu_custom_call.1} parent=1 // pred_fallthru
      _
    // Predicated region
    $region66: #{tpu_custom_call.1} parent=1 // pred_check
      _
    $region67: #{tpu_custom_call.1} parent=1 // pred_check_branch
      %135 = sbr.rel (0) target = $region69
    $region68: #{tpu_custom_call.1} parent=1 // pred_region
      %136 = dma.done [#allocation13], 2048
    $region69: #{tpu_custom_call.1} parent=1 // pred_fallthru
      _
    // Predicated region
    $region70: #{tpu_custom_call.1} parent=1 // pred_check
      _
    $region71: #{tpu_custom_call.1} parent=1 // pred_check_branch
      %138 = sbr.rel (0) target = $region73
    $region72: #{tpu_custom_call.1} parent=1 // pred_region
      %139 = dma.done [#allocation16], 2048
    $region73: #{tpu_custom_call.1} parent=1 // pred_fallthru
      _
    %s140 = sld [smem:[#allocation5]]
    %s141 = ssub.s32 %s140, 1
    %p142 = scmp.gt.s32.totalorder %s141, 0
    %s143 = scalar_select %p142, %s141, 0
    %p144 = scmp.lt.s32.totalorder 0, %s143
    %s145 = scalar_select %p144, 0, %s143
    %s146 = sld [smem:[#allocation4]]
    %s147 = sadd.s32 %s146, %s145
    %s148 = smul.u32 64, %s147
    %p149 = scmp.eq.s32.totalorder 0, 0
    // Predicated region
    $region74: #{tpu_custom_call.1} parent=1 // pred_check
      %p150 = pneg %p149
    $region75: #{tpu_custom_call.1} parent=1 // pred_check_branch
      %152 = sbr.rel (%p150) target = $region77
    $region76: #{tpu_custom_call.1} parent=1 // pred_region
      %153 = vst [vmem:[#allocation2] sm:$0xff] 0.0
      %154 = vst [vmem:[#allocation2 + $0x8] sm:$0xff] 0.0
      %155 = vst [vmem:[#allocation2 + $0x10] sm:$0xff] 0.0
      %156 = vst [vmem:[#allocation2 + $0x18] sm:$0xff] 0.0
      %157 = vst [vmem:[#allocation2 + $0x20] sm:$0xff] 0.0
      %158 = vst [vmem:[#allocation2 + $0x28] sm:$0xff] 0.0
      %159 = vst [vmem:[#allocation2 + $0x30] sm:$0xff] 0.0
      %160 = vst [vmem:[#allocation2 + $0x38] sm:$0xff] 0.0
      %161 = vst [vmem:[#allocation2 + $0x40] sm:$0xff] 0.0
      %162 = vst [vmem:[#allocation2 + $0x48] sm:$0xff] 0.0
      %163 = vst [vmem:[#allocation2 + $0x50] sm:$0xff] 0.0
      %164 = vst [vmem:[#allocation2 + $0x58] sm:$0xff] 0.0
      %165 = vst [vmem:[#allocation2 + $0x60] sm:$0xff] 0.0
      %166 = vst [vmem:[#allocation2 + $0x68] sm:$0xff] 0.0
      %167 = vst [vmem:[#allocation2 + $0x70] sm:$0xff] 0.0
      %168 = vst [vmem:[#allocation2 + $0x78] sm:$0xff] 0.0
      %169 = vst [vmem:[#allocation2 + $0x80] sm:$0xff] 0.0
      %170 = vst [vmem:[#allocation2 + $0x88] sm:$0xff] 0.0
      %171 = vst [vmem:[#allocation2 + $0x90] sm:$0xff] 0.0
      %172 = vst [vmem:[#allocation2 + $0x98] sm:$0xff] 0.0
      %173 = vst [vmem:[#allocation2 + $0xa0] sm:$0xff] 0.0
      %174 = vst [vmem:[#allocation2 + $0xa8] sm:$0xff] 0.0
      %175 = vst [vmem:[#allocation2 + $0xb0] sm:$0xff] 0.0
      %176 = vst [vmem:[#allocation2 + $0xb8] sm:$0xff] 0.0
      %177 = vst [vmem:[#allocation2 + $0xc0] sm:$0xff] 0.0
      %178 = vst [vmem:[#allocation2 + $0xc8] sm:$0xff] 0.0
      %179 = vst [vmem:[#allocation2 + $0xd0] sm:$0xff] 0.0
      %180 = vst [vmem:[#allocation2 + $0xd8] sm:$0xff] 0.0
      %181 = vst [vmem:[#allocation2 + $0xe0] sm:$0xff] 0.0
      %182 = vst [vmem:[#allocation2 + $0xe8] sm:$0xff] 0.0
      %183 = vst [vmem:[#allocation2 + $0xf0] sm:$0xff] 0.0
      %184 = vst [vmem:[#allocation2 + $0xf8] sm:$0xff] 0.0
    $region77: #{tpu_custom_call.1} parent=1 // pred_fallthru
      _
    %s185 = sld [smem:[#allocation5]]
    %p186 = scmp.lt.s32.totalorder 0, %s185
    // Predicated region
    $region78: #{tpu_custom_call.1} parent=1 // pred_check
      %p187 = pneg %p186
    $region79: #{tpu_custom_call.1} parent=1 // pred_check_branch
      %189 = sbr.rel (%p187) target = $region81
    $region80: #{tpu_custom_call.1} parent=1 // pred_region
      %s190 = sld [smem:[#allocation4]]
      %s191 = sadd.s32 %s190, 0
      %s192 = smul.u32 %s191, 4
      %s193 = scalar_lea.vmem %s2, %s192
      %v194 = vld [vmem:[%s193] sm:$0xf]
      %s195 = smul.u32 0, 256
      %v196 = vlaneseq
      %v197 = vshrl.u32 %v196, 7
      %v198 = vadd.s32 %v197, 8
      %v199 = vadd.s32 %v197, 16
      %v200 = vadd.s32 %v197, 24
      %v201 = vadd.s32 %v197, 32
      %v202 = vadd.s32 %v197, 40
      %v203 = vadd.s32 %v197, 48
      %v204 = vadd.s32 %v197, 56
      %v205 = vadd.s32 %v197, 64
      %v206 = vadd.s32 %v197, 72
      %v207 = vadd.s32 %v197, 80
      %v208 = vadd.s32 %v197, 88
      %v209 = vadd.s32 %v197, 96
      %v210 = vadd.s32 %v197, 104
      %v211 = vadd.s32 %v197, 112
      %v212 = vadd.s32 %v197, 120
      %v213 = vadd.s32 %v197, 128
      %v214 = vadd.s32 %v197, 136
      %v215 = vadd.s32 %v197, 144
      %v216 = vadd.s32 %v197, 152
      %v217 = vadd.s32 %v197, 160
      %v218 = vadd.s32 %v197, 168
      %v219 = vadd.s32 %v197, 176
      %v220 = vadd.s32 %v197, 184
      %v221 = vadd.s32 %v197, 192
      %v222 = vadd.s32 %v197, 200
      %v223 = vadd.s32 %v197, 208
      %v224 = vadd.s32 %v197, 216
      %v225 = vadd.s32 %v197, 224
      %v226 = vadd.s32 %v197, 232
      %v227 = vadd.s32 %v197, 240
      %v228 = vadd.s32 %v197, 248
      %v229 = vstv %s195
      %v230 = vadd.s32 %v229, %v197
      %v231 = vadd.s32 %v229, %v198
      %v232 = vadd.s32 %v229, %v199
      %v233 = vadd.s32 %v229, %v200
      %v234 = vadd.s32 %v229, %v201
      %v235 = vadd.s32 %v229, %v202
      %v236 = vadd.s32 %v229, %v203
      %v237 = vadd.s32 %v229, %v204
      %v238 = vadd.s32 %v229, %v205
      %v239 = vadd.s32 %v229, %v206
      %v240 = vadd.s32 %v229, %v207
      %v241 = vadd.s32 %v229, %v208
      %v242 = vadd.s32 %v229, %v209
      %v243 = vadd.s32 %v229, %v210
      %v244 = vadd.s32 %v229, %v211
      %v245 = vadd.s32 %v229, %v212
      %v246 = vadd.s32 %v229, %v213
      %v247 = vadd.s32 %v229, %v214
      %v248 = vadd.s32 %v229, %v215
      %v249 = vadd.s32 %v229, %v216
      %v250 = vadd.s32 %v229, %v217
      %v251 = vadd.s32 %v229, %v218
      %v252 = vadd.s32 %v229, %v219
      %v253 = vadd.s32 %v229, %v220
      %v254 = vadd.s32 %v229, %v221
      %v255 = vadd.s32 %v229, %v222
      %v256 = vadd.s32 %v229, %v223
      %v257 = vadd.s32 %v229, %v224
      %v258 = vadd.s32 %v229, %v225
      %v259 = vadd.s32 %v229, %v226
      %v260 = vadd.s32 %v229, %v227
      %v261 = vadd.s32 %v229, %v228
      %v262 = vlaneseq
      %v263 = vshrl.u32 %v262, 7
      %v264 = vsub.s32 0, %v263
      %v265 = vrot.slane %v194, %v264
      %v266 = vlaneseq
      %v267 = vshrl.u32 %v266, 7
      %v268 = vsub.s32 1, %v267
      %v269 = vrot.slane %v194, %v268
      %v270 = vlaneseq
      %v271 = vshrl.u32 %v270, 7
      %v272 = vsub.s32 2, %v271
      %v273 = vrot.slane %v194, %v272
      %v274 = vlaneseq
      %v275 = vshrl.u32 %v274, 7
      %v276 = vsub.s32 3, %v275
      %v277 = vrot.slane %v194, %v276
      %vm278 = vcmp.eq.s32.totalorder %v230, %v265
      %vm279 = vcmp.eq.s32.totalorder %v230, %v269
      %vm280 = vcmp.eq.s32.totalorder %v230, %v273
      %vm281 = vcmp.eq.s32.totalorder %v230, %v277
      %vm282 = vcmp.eq.s32.totalorder %v231, %v265
      %vm283 = vcmp.eq.s32.totalorder %v231, %v269
      %vm284 = vcmp.eq.s32.totalorder %v231, %v273
      %vm285 = vcmp.eq.s32.totalorder %v231, %v277
      %vm286 = vcmp.eq.s32.totalorder %v232, %v265
      %vm287 = vcmp.eq.s32.totalorder %v232, %v269
      %vm288 = vcmp.eq.s32.totalorder %v232, %v273
      %vm289 = vcmp.eq.s32.totalorder %v232, %v277
      %vm290 = vcmp.eq.s32.totalorder %v233, %v265
      %vm291 = vcmp.eq.s32.totalorder %v233, %v269
      %vm292 = vcmp.eq.s32.totalorder %v233, %v273
      %vm293 = vcmp.eq.s32.totalorder %v233, %v277
      %vm294 = vcmp.eq.s32.totalorder %v234, %v265
      %vm295 = vcmp.eq.s32.totalorder %v234, %v269
      %vm296 = vcmp.eq.s32.totalorder %v234, %v273
      %vm297 = vcmp.eq.s32.totalorder %v234, %v277
      %vm298 = vcmp.eq.s32.totalorder %v235, %v265
      %vm299 = vcmp.eq.s32.totalorder %v235, %v269
      %vm300 = vcmp.eq.s32.totalorder %v235, %v273
      %vm301 = vcmp.eq.s32.totalorder %v235, %v277
      %vm302 = vcmp.eq.s32.totalorder %v236, %v265
      %vm303 = vcmp.eq.s32.totalorder %v236, %v269
      %vm304 = vcmp.eq.s32.totalorder %v236, %v273
      %vm305 = vcmp.eq.s32.totalorder %v236, %v277
      %vm306 = vcmp.eq.s32.totalorder %v237, %v265
      %vm307 = vcmp.eq.s32.totalorder %v237, %v269
      %vm308 = vcmp.eq.s32.totalorder %v237, %v273
      %vm309 = vcmp.eq.s32.totalorder %v237, %v277
      %vm310 = vcmp.eq.s32.totalorder %v238, %v265
      %vm311 = vcmp.eq.s32.totalorder %v238, %v269
      %vm312 = vcmp.eq.s32.totalorder %v238, %v273
      %vm313 = vcmp.eq.s32.totalorder %v238, %v277
      %vm314 = vcmp.eq.s32.totalorder %v239, %v265
      %vm315 = vcmp.eq.s32.totalorder %v239, %v269
      %vm316 = vcmp.eq.s32.totalorder %v239, %v273
      %vm317 = vcmp.eq.s32.totalorder %v239, %v277
      %vm318 = vcmp.eq.s32.totalorder %v240, %v265
      %vm319 = vcmp.eq.s32.totalorder %v240, %v269
      %vm320 = vcmp.eq.s32.totalorder %v240, %v273
      %vm321 = vcmp.eq.s32.totalorder %v240, %v277
      %vm322 = vcmp.eq.s32.totalorder %v241, %v265
      %vm323 = vcmp.eq.s32.totalorder %v241, %v269
      %vm324 = vcmp.eq.s32.totalorder %v241, %v273
      %vm325 = vcmp.eq.s32.totalorder %v241, %v277
      %vm326 = vcmp.eq.s32.totalorder %v242, %v265
      %vm327 = vcmp.eq.s32.totalorder %v242, %v269
      %vm328 = vcmp.eq.s32.totalorder %v242, %v273
      %vm329 = vcmp.eq.s32.totalorder %v242, %v277
      %vm330 = vcmp.eq.s32.totalorder %v243, %v265
      %vm331 = vcmp.eq.s32.totalorder %v243, %v269
      %vm332 = vcmp.eq.s32.totalorder %v243, %v273
      %vm333 = vcmp.eq.s32.totalorder %v243, %v277
      %vm334 = vcmp.eq.s32.totalorder %v244, %v265
      %vm335 = vcmp.eq.s32.totalorder %v244, %v269
      %vm336 = vcmp.eq.s32.totalorder %v244, %v273
      %vm337 = vcmp.eq.s32.totalorder %v244, %v277
      %vm338 = vcmp.eq.s32.totalorder %v245, %v265
      %vm339 = vcmp.eq.s32.totalorder %v245, %v269
      %vm340 = vcmp.eq.s32.totalorder %v245, %v273
      %vm341 = vcmp.eq.s32.totalorder %v245, %v277
      %vm342 = vcmp.eq.s32.totalorder %v246, %v265
      %vm343 = vcmp.eq.s32.totalorder %v246, %v269
      %vm344 = vcmp.eq.s32.totalorder %v246, %v273
      %vm345 = vcmp.eq.s32.totalorder %v246, %v277
      %vm346 = vcmp.eq.s32.totalorder %v247, %v265
      %vm347 = vcmp.eq.s32.totalorder %v247, %v269
      %vm348 = vcmp.eq.s32.totalorder %v247, %v273
      %vm349 = vcmp.eq.s32.totalorder %v247, %v277
      %vm350 = vcmp.eq.s32.totalorder %v248, %v265
      %vm351 = vcmp.eq.s32.totalorder %v248, %v269
      %vm352 = vcmp.eq.s32.totalorder %v248, %v273
      %vm353 = vcmp.eq.s32.totalorder %v248, %v277
      %vm354 = vcmp.eq.s32.totalorder %v249, %v265
      %vm355 = vcmp.eq.s32.totalorder %v249, %v269
      %vm356 = vcmp.eq.s32.totalorder %v249, %v273
      %vm357 = vcmp.eq.s32.totalorder %v249, %v277
      %vm358 = vcmp.eq.s32.totalorder %v250, %v265
      %vm359 = vcmp.eq.s32.totalorder %v250, %v269
      %vm360 = vcmp.eq.s32.totalorder %v250, %v273
      %vm361 = vcmp.eq.s32.totalorder %v250, %v277
      %vm362 = vcmp.eq.s32.totalorder %v251, %v265
      %vm363 = vcmp.eq.s32.totalorder %v251, %v269
      %vm364 = vcmp.eq.s32.totalorder %v251, %v273
      %vm365 = vcmp.eq.s32.totalorder %v251, %v277
      %vm366 = vcmp.eq.s32.totalorder %v252, %v265
      %vm367 = vcmp.eq.s32.totalorder %v252, %v269
      %vm368 = vcmp.eq.s32.totalorder %v252, %v273
      %vm369 = vcmp.eq.s32.totalorder %v252, %v277
      %vm370 = vcmp.eq.s32.totalorder %v253, %v265
      %vm371 = vcmp.eq.s32.totalorder %v253, %v269
      %vm372 = vcmp.eq.s32.totalorder %v253, %v273
      %vm373 = vcmp.eq.s32.totalorder %v253, %v277
      %vm374 = vcmp.eq.s32.totalorder %v254, %v265
      %vm375 = vcmp.eq.s32.totalorder %v254, %v269
      %vm376 = vcmp.eq.s32.totalorder %v254, %v273
      %vm377 = vcmp.eq.s32.totalorder %v254, %v277
      %vm378 = vcmp.eq.s32.totalorder %v255, %v265
      %vm379 = vcmp.eq.s32.totalorder %v255, %v269
      %vm380 = vcmp.eq.s32.totalorder %v255, %v273
      %vm381 = vcmp.eq.s32.totalorder %v255, %v277
      %vm382 = vcmp.eq.s32.totalorder %v256, %v265
      %vm383 = vcmp.eq.s32.totalorder %v256, %v269
      %vm384 = vcmp.eq.s32.totalorder %v256, %v273
      %vm385 = vcmp.eq.s32.totalorder %v256, %v277
      %vm386 = vcmp.eq.s32.totalorder %v257, %v265
      %vm387 = vcmp.eq.s32.totalorder %v257, %v269
      %vm388 = vcmp.eq.s32.totalorder %v257, %v273
      %vm389 = vcmp.eq.s32.totalorder %v257, %v277
      %vm390 = vcmp.eq.s32.totalorder %v258, %v265
      %vm391 = vcmp.eq.s32.totalorder %v258, %v269
      %vm392 = vcmp.eq.s32.totalorder %v258, %v273
      %vm393 = vcmp.eq.s32.totalorder %v258, %v277
      %vm394 = vcmp.eq.s32.totalorder %v259, %v265
      %vm395 = vcmp.eq.s32.totalorder %v259, %v269
      %vm396 = vcmp.eq.s32.totalorder %v259, %v273
      %vm397 = vcmp.eq.s32.totalorder %v259, %v277
      %vm398 = vcmp.eq.s32.totalorder %v260, %v265
      %vm399 = vcmp.eq.s32.totalorder %v260, %v269
      %vm400 = vcmp.eq.s32.totalorder %v260, %v273
      %vm401 = vcmp.eq.s32.totalorder %v260, %v277
      %vm402 = vcmp.eq.s32.totalorder %v261, %v265
      %vm403 = vcmp.eq.s32.totalorder %v261, %v269
      %vm404 = vcmp.eq.s32.totalorder %v261, %v273
      %vm405 = vcmp.eq.s32.totalorder %v261, %v277
      %v406 = vsel %vm278, 1, 0
      %v407 = vsel %vm279, 1, 0
      %v408 = vsel %vm280, 1, 0
      %v409 = vsel %vm281, 1, 0
      %v410 = vsel %vm282, 1, 0
      %v411 = vsel %vm283, 1, 0
      %v412 = vsel %vm284, 1, 0
      %v413 = vsel %vm285, 1, 0
      %v414 = vsel %vm286, 1, 0
      %v415 = vsel %vm287, 1, 0
      %v416 = vsel %vm288, 1, 0
      %v417 = vsel %vm289, 1, 0
      %v418 = vsel %vm290, 1, 0
      %v419 = vsel %vm291, 1, 0
      %v420 = vsel %vm292, 1, 0
      %v421 = vsel %vm293, 1, 0
      %v422 = vsel %vm294, 1, 0
      %v423 = vsel %vm295, 1, 0
      %v424 = vsel %vm296, 1, 0
      %v425 = vsel %vm297, 1, 0
      %v426 = vsel %vm298, 1, 0
      %v427 = vsel %vm299, 1, 0
      %v428 = vsel %vm300, 1, 0
      %v429 = vsel %vm301, 1, 0
      %v430 = vsel %vm302, 1, 0
      %v431 = vsel %vm303, 1, 0
      %v432 = vsel %vm304, 1, 0
      %v433 = vsel %vm305, 1, 0
      %v434 = vsel %vm306, 1, 0
      %v435 = vsel %vm307, 1, 0
      %v436 = vsel %vm308, 1, 0
      %v437 = vsel %vm309, 1, 0
      %v438 = vsel %vm310, 1, 0
      %v439 = vsel %vm311, 1, 0
      %v440 = vsel %vm312, 1, 0
      %v441 = vsel %vm313, 1, 0
      %v442 = vsel %vm314, 1, 0
      %v443 = vsel %vm315, 1, 0
      %v444 = vsel %vm316, 1, 0
      %v445 = vsel %vm317, 1, 0
      %v446 = vsel %vm318, 1, 0
      %v447 = vsel %vm319, 1, 0
      %v448 = vsel %vm320, 1, 0
      %v449 = vsel %vm321, 1, 0
      %v450 = vsel %vm322, 1, 0
      %v451 = vsel %vm323, 1, 0
      %v452 = vsel %vm324, 1, 0
      %v453 = vsel %vm325, 1, 0
      %v454 = vsel %vm326, 1, 0
      %v455 = vsel %vm327, 1, 0
      %v456 = vsel %vm328, 1, 0
      %v457 = vsel %vm329, 1, 0
      %v458 = vsel %vm330, 1, 0
      %v459 = vsel %vm331, 1, 0
      %v460 = vsel %vm332, 1, 0
      %v461 = vsel %vm333, 1, 0
      %v462 = vsel %vm334, 1, 0
      %v463 = vsel %vm335, 1, 0
      %v464 = vsel %vm336, 1, 0
      %v465 = vsel %vm337, 1, 0
      %v466 = vsel %vm338, 1, 0
      %v467 = vsel %vm339, 1, 0
      %v468 = vsel %vm340, 1, 0
      %v469 = vsel %vm341, 1, 0
      %v470 = vsel %vm342, 1, 0
      %v471 = vsel %vm343, 1, 0
      %v472 = vsel %vm344, 1, 0
      %v473 = vsel %vm345, 1, 0
      %v474 = vsel %vm346, 1, 0
      %v475 = vsel %vm347, 1, 0
      %v476 = vsel %vm348, 1, 0
      %v477 = vsel %vm349, 1, 0
      %v478 = vsel %vm350, 1, 0
      %v479 = vsel %vm351, 1, 0
      %v480 = vsel %vm352, 1, 0
      %v481 = vsel %vm353, 1, 0
      %v482 = vsel %vm354, 1, 0
      %v483 = vsel %vm355, 1, 0
      %v484 = vsel %vm356, 1, 0
      %v485 = vsel %vm357, 1, 0
      %v486 = vsel %vm358, 1, 0
      %v487 = vsel %vm359, 1, 0
      %v488 = vsel %vm360, 1, 0
      %v489 = vsel %vm361, 1, 0
      %v490 = vsel %vm362, 1, 0
      %v491 = vsel %vm363, 1, 0
      %v492 = vsel %vm364, 1, 0
      %v493 = vsel %vm365, 1, 0
      %v494 = vsel %vm366, 1, 0
      %v495 = vsel %vm367, 1, 0
      %v496 = vsel %vm368, 1, 0
      %v497 = vsel %vm369, 1, 0
      %v498 = vsel %vm370, 1, 0
      %v499 = vsel %vm371, 1, 0
      %v500 = vsel %vm372, 1, 0
      %v501 = vsel %vm373, 1, 0
      %v502 = vsel %vm374, 1, 0
      %v503 = vsel %vm375, 1, 0
      %v504 = vsel %vm376, 1, 0
      %v505 = vsel %vm377, 1, 0
      %v506 = vsel %vm378, 1, 0
      %v507 = vsel %vm379, 1, 0
      %v508 = vsel %vm380, 1, 0
      %v509 = vsel %vm381, 1, 0
      %v510 = vsel %vm382, 1, 0
      %v511 = vsel %vm383, 1, 0
      %v512 = vsel %vm384, 1, 0
      %v513 = vsel %vm385, 1, 0
      %v514 = vsel %vm386, 1, 0
      %v515 = vsel %vm387, 1, 0
      %v516 = vsel %vm388, 1, 0
      %v517 = vsel %vm389, 1, 0
      %v518 = vsel %vm390, 1, 0
      %v519 = vsel %vm391, 1, 0
      %v520 = vsel %vm392, 1, 0
      %v521 = vsel %vm393, 1, 0
      %v522 = vsel %vm394, 1, 0
      %v523 = vsel %vm395, 1, 0
      %v524 = vsel %vm396, 1, 0
      %v525 = vsel %vm397, 1, 0
      %v526 = vsel %vm398, 1, 0
      %v527 = vsel %vm399, 1, 0
      %v528 = vsel %vm400, 1, 0
      %v529 = vsel %vm401, 1, 0
      %v530 = vsel %vm402, 1, 0
      %v531 = vsel %vm403, 1, 0
      %v532 = vsel %vm404, 1, 0
      %v533 = vsel %vm405, 1, 0
      %v534 = vcvt.s32.f32 %v406
      %v535 = vcvt.s32.f32 %v407
      %v536 = vcvt.s32.f32 %v408
      %v537 = vcvt.s32.f32 %v409
      %v538 = vcvt.s32.f32 %v410
      %v539 = vcvt.s32.f32 %v411
      %v540 = vcvt.s32.f32 %v412
      %v541 = vcvt.s32.f32 %v413
      %v542 = vcvt.s32.f32 %v414
      %v543 = vcvt.s32.f32 %v415
      %v544 = vcvt.s32.f32 %v416
      %v545 = vcvt.s32.f32 %v417
      %v546 = vcvt.s32.f32 %v418
      %v547 = vcvt.s32.f32 %v419
      %v548 = vcvt.s32.f32 %v420
      %v549 = vcvt.s32.f32 %v421
      %v550 = vcvt.s32.f32 %v422
      %v551 = vcvt.s32.f32 %v423
      %v552 = vcvt.s32.f32 %v424
      %v553 = vcvt.s32.f32 %v425
      %v554 = vcvt.s32.f32 %v426
      %v555 = vcvt.s32.f32 %v427
      %v556 = vcvt.s32.f32 %v428
      %v557 = vcvt.s32.f32 %v429
      %v558 = vcvt.s32.f32 %v430
      %v559 = vcvt.s32.f32 %v431
      %v560 = vcvt.s32.f32 %v432
      %v561 = vcvt.s32.f32 %v433
      %v562 = vcvt.s32.f32 %v434
      %v563 = vcvt.s32.f32 %v435
      %v564 = vcvt.s32.f32 %v436
      %v565 = vcvt.s32.f32 %v437
      %v566 = vcvt.s32.f32 %v438
      %v567 = vcvt.s32.f32 %v439
      %v568 = vcvt.s32.f32 %v440
      %v569 = vcvt.s32.f32 %v441
      %v570 = vcvt.s32.f32 %v442
      %v571 = vcvt.s32.f32 %v443
      %v572 = vcvt.s32.f32 %v444
      %v573 = vcvt.s32.f32 %v445
      %v574 = vcvt.s32.f32 %v446
      %v575 = vcvt.s32.f32 %v447
      %v576 = vcvt.s32.f32 %v448
      %v577 = vcvt.s32.f32 %v449
      %v578 = vcvt.s32.f32 %v450
      %v579 = vcvt.s32.f32 %v451
      %v580 = vcvt.s32.f32 %v452
      %v581 = vcvt.s32.f32 %v453
      %v582 = vcvt.s32.f32 %v454
      %v583 = vcvt.s32.f32 %v455
      %v584 = vcvt.s32.f32 %v456
      %v585 = vcvt.s32.f32 %v457
      %v586 = vcvt.s32.f32 %v458
      %v587 = vcvt.s32.f32 %v459
      %v588 = vcvt.s32.f32 %v460
      %v589 = vcvt.s32.f32 %v461
      %v590 = vcvt.s32.f32 %v462
      %v591 = vcvt.s32.f32 %v463
      %v592 = vcvt.s32.f32 %v464
      %v593 = vcvt.s32.f32 %v465
      %v594 = vcvt.s32.f32 %v466
      %v595 = vcvt.s32.f32 %v467
      %v596 = vcvt.s32.f32 %v468
      %v597 = vcvt.s32.f32 %v469
      %v598 = vcvt.s32.f32 %v470
      %v599 = vcvt.s32.f32 %v471
      %v600 = vcvt.s32.f32 %v472
      %v601 = vcvt.s32.f32 %v473
      %v602 = vcvt.s32.f32 %v474
      %v603 = vcvt.s32.f32 %v475
      %v604 = vcvt.s32.f32 %v476
      %v605 = vcvt.s32.f32 %v477
      %v606 = vcvt.s32.f32 %v478
      %v607 = vcvt.s32.f32 %v479
      %v608 = vcvt.s32.f32 %v480
      %v609 = vcvt.s32.f32 %v481
      %v610 = vcvt.s32.f32 %v482
      %v611 = vcvt.s32.f32 %v483
      %v612 = vcvt.s32.f32 %v484
      %v613 = vcvt.s32.f32 %v485
      %v614 = vcvt.s32.f32 %v486
      %v615 = vcvt.s32.f32 %v487
      %v616 = vcvt.s32.f32 %v488
      %v617 = vcvt.s32.f32 %v489
      %v618 = vcvt.s32.f32 %v490
      %v619 = vcvt.s32.f32 %v491
      %v620 = vcvt.s32.f32 %v492
      %v621 = vcvt.s32.f32 %v493
      %v622 = vcvt.s32.f32 %v494
      %v623 = vcvt.s32.f32 %v495
      %v624 = vcvt.s32.f32 %v496
      %v625 = vcvt.s32.f32 %v497
      %v626 = vcvt.s32.f32 %v498
      %v627 = vcvt.s32.f32 %v499
      %v628 = vcvt.s32.f32 %v500
      %v629 = vcvt.s32.f32 %v501
      %v630 = vcvt.s32.f32 %v502
      %v631 = vcvt.s32.f32 %v503
      %v632 = vcvt.s32.f32 %v504
      %v633 = vcvt.s32.f32 %v505
      %v634 = vcvt.s32.f32 %v506
      %v635 = vcvt.s32.f32 %v507
      %v636 = vcvt.s32.f32 %v508
      %v637 = vcvt.s32.f32 %v509
      %v638 = vcvt.s32.f32 %v510
      %v639 = vcvt.s32.f32 %v511
      %v640 = vcvt.s32.f32 %v512
      %v641 = vcvt.s32.f32 %v513
      %v642 = vcvt.s32.f32 %v514
      %v643 = vcvt.s32.f32 %v515
      %v644 = vcvt.s32.f32 %v516
      %v645 = vcvt.s32.f32 %v517
      %v646 = vcvt.s32.f32 %v518
      %v647 = vcvt.s32.f32 %v519
      %v648 = vcvt.s32.f32 %v520
      %v649 = vcvt.s32.f32 %v521
      %v650 = vcvt.s32.f32 %v522
      %v651 = vcvt.s32.f32 %v523
      %v652 = vcvt.s32.f32 %v524
      %v653 = vcvt.s32.f32 %v525
      %v654 = vcvt.s32.f32 %v526
      %v655 = vcvt.s32.f32 %v527
      %v656 = vcvt.s32.f32 %v528
      %v657 = vcvt.s32.f32 %v529
      %v658 = vcvt.s32.f32 %v530
      %v659 = vcvt.s32.f32 %v531
      %v660 = vcvt.s32.f32 %v532
      %v661 = vcvt.s32.f32 %v533
      %v662 = vpack.c.bf16 %v538, %v534
      %v663 = vpack.c.bf16 %v539, %v535
      %v664 = vpack.c.bf16 %v540, %v536
      %v665 = vpack.c.bf16 %v541, %v537
      %v666 = vpack.c.bf16 %v546, %v542
      %v667 = vpack.c.bf16 %v547, %v543
      %v668 = vpack.c.bf16 %v548, %v544
      %v669 = vpack.c.bf16 %v549, %v545
      %v670 = vpack.c.bf16 %v554, %v550
      %v671 = vpack.c.bf16 %v555, %v551
      %v672 = vpack.c.bf16 %v556, %v552
      %v673 = vpack.c.bf16 %v557, %v553
      %v674 = vpack.c.bf16 %v562, %v558
      %v675 = vpack.c.bf16 %v563, %v559
      %v676 = vpack.c.bf16 %v564, %v560
      %v677 = vpack.c.bf16 %v565, %v561
      %v678 = vpack.c.bf16 %v570, %v566
      %v679 = vpack.c.bf16 %v571, %v567
      %v680 = vpack.c.bf16 %v572, %v568
      %v681 = vpack.c.bf16 %v573, %v569
      %v682 = vpack.c.bf16 %v578, %v574
      %v683 = vpack.c.bf16 %v579, %v575
      %v684 = vpack.c.bf16 %v580, %v576
      %v685 = vpack.c.bf16 %v581, %v577
      %v686 = vpack.c.bf16 %v586, %v582
      %v687 = vpack.c.bf16 %v587, %v583
      %v688 = vpack.c.bf16 %v588, %v584
      %v689 = vpack.c.bf16 %v589, %v585
      %v690 = vpack.c.bf16 %v594, %v590
      %v691 = vpack.c.bf16 %v595, %v591
      %v692 = vpack.c.bf16 %v596, %v592
      %v693 = vpack.c.bf16 %v597, %v593
      %v694 = vpack.c.bf16 %v602, %v598
      %v695 = vpack.c.bf16 %v603, %v599
      %v696 = vpack.c.bf16 %v604, %v600
      %v697 = vpack.c.bf16 %v605, %v601
      %v698 = vpack.c.bf16 %v610, %v606
      %v699 = vpack.c.bf16 %v611, %v607
      %v700 = vpack.c.bf16 %v612, %v608
      %v701 = vpack.c.bf16 %v613, %v609
      %v702 = vpack.c.bf16 %v618, %v614
      %v703 = vpack.c.bf16 %v619, %v615
      %v704 = vpack.c.bf16 %v620, %v616
      %v705 = vpack.c.bf16 %v621, %v617
      %v706 = vpack.c.bf16 %v626, %v622
      %v707 = vpack.c.bf16 %v627, %v623
      %v708 = vpack.c.bf16 %v628, %v624
      %v709 = vpack.c.bf16 %v629, %v625
      %v710 = vpack.c.bf16 %v634, %v630
      %v711 = vpack.c.bf16 %v635, %v631
      %v712 = vpack.c.bf16 %v636, %v632
      %v713 = vpack.c.bf16 %v637, %v633
      %v714 = vpack.c.bf16 %v642, %v638
      %v715 = vpack.c.bf16 %v643, %v639
      %v716 = vpack.c.bf16 %v644, %v640
      %v717 = vpack.c.bf16 %v645, %v641
      %v718 = vpack.c.bf16 %v650, %v646
      %v719 = vpack.c.bf16 %v651, %v647
      %v720 = vpack.c.bf16 %v652, %v648
      %v721 = vpack.c.bf16 %v653, %v649
      %v722 = vpack.c.bf16 %v658, %v654
      %v723 = vpack.c.bf16 %v659, %v655
      %v724 = vpack.c.bf16 %v660, %v656
      %v725 = vpack.c.bf16 %v661, %v657
      %v726 = vld [vmem:[#allocation9] sm:$0xff]
      %v727 = vld [vmem:[#allocation9 + $0x8] sm:$0xff]
      %v728 = vld [vmem:[#allocation9 + $0x10] sm:$0xff]
      %v729 = vld [vmem:[#allocation9 + $0x18] sm:$0xff]
      %v730 = vld [vmem:[#allocation9 + $0x20] sm:$0xff]
      %v731 = vld [vmem:[#allocation9 + $0x28] sm:$0xff]
      %v732 = vld [vmem:[#allocation9 + $0x30] sm:$0xff]
      %v733 = vld [vmem:[#allocation9 + $0x38] sm:$0xff]
      %v734 = vld [vmem:[#allocation9 + $0x40] sm:$0xff]
      %v735 = vld [vmem:[#allocation9 + $0x48] sm:$0xff]
      %v736 = vld [vmem:[#allocation9 + $0x50] sm:$0xff]
      %v737 = vld [vmem:[#allocation9 + $0x58] sm:$0xff]
      %v738 = vld [vmem:[#allocation9 + $0x60] sm:$0xff]
      %v739 = vld [vmem:[#allocation9 + $0x68] sm:$0xff]
      %v740 = vld [vmem:[#allocation9 + $0x70] sm:$0xff]
      %v741 = vld [vmem:[#allocation9 + $0x78] sm:$0xff]
      %v742 = vld [vmem:[#allocation9 + $0x80] sm:$0xff]
      %v743 = vld [vmem:[#allocation9 + $0x88] sm:$0xff]
      %v744 = vld [vmem:[#allocation9 + $0x90] sm:$0xff]
      %v745 = vld [vmem:[#allocation9 + $0x98] sm:$0xff]
      %v746 = vld [vmem:[#allocation9 + $0xa0] sm:$0xff]
      %v747 = vld [vmem:[#allocation9 + $0xa8] sm:$0xff]
      %v748 = vld [vmem:[#allocation9 + $0xb0] sm:$0xff]
      %v749 = vld [vmem:[#allocation9 + $0xb8] sm:$0xff]
      %v750 = vld [vmem:[#allocation9 + $0xc0] sm:$0xff]
      %v751 = vld [vmem:[#allocation9 + $0xc8] sm:$0xff]
      %v752 = vld [vmem:[#allocation9 + $0xd0] sm:$0xff]
      %v753 = vld [vmem:[#allocation9 + $0xd8] sm:$0xff]
      %v754 = vld [vmem:[#allocation9 + $0xe0] sm:$0xff]
      %v755 = vld [vmem:[#allocation9 + $0xe8] sm:$0xff]
      %v756 = vld [vmem:[#allocation9 + $0xf0] sm:$0xff]
      %v757 = vld [vmem:[#allocation9 + $0xf8] sm:$0xff]
      %v758 = vld [vmem:[#allocation9 + $0x100] sm:$0xff]
      %v759 = vld [vmem:[#allocation9 + $0x108] sm:$0xff]
      %v760 = vld [vmem:[#allocation9 + $0x110] sm:$0xff]
      %v761 = vld [vmem:[#allocation9 + $0x118] sm:$0xff]
      %v762 = vld [vmem:[#allocation9 + $0x120] sm:$0xff]
      %v763 = vld [vmem:[#allocation9 + $0x128] sm:$0xff]
      %v764 = vld [vmem:[#allocation9 + $0x130] sm:$0xff]
      %v765 = vld [vmem:[#allocation9 + $0x138] sm:$0xff]
      %v766 = vld [vmem:[#allocation9 + $0x140] sm:$0xff]
      %v767 = vld [vmem:[#allocation9 + $0x148] sm:$0xff]
      %v768 = vld [vmem:[#allocation9 + $0x150] sm:$0xff]
      %v769 = vld [vmem:[#allocation9 + $0x158] sm:$0xff]
      %v770 = vld [vmem:[#allocation9 + $0x160] sm:$0xff]
      %v771 = vld [vmem:[#allocation9 + $0x168] sm:$0xff]
      %v772 = vld [vmem:[#allocation9 + $0x170] sm:$0xff]
      %v773 = vld [vmem:[#allocation9 + $0x178] sm:$0xff]
      %v774 = vld [vmem:[#allocation9 + $0x180] sm:$0xff]
      %v775 = vld [vmem:[#allocation9 + $0x188] sm:$0xff]
      %v776 = vld [vmem:[#allocation9 + $0x190] sm:$0xff]
      %v777 = vld [vmem:[#allocation9 + $0x198] sm:$0xff]
      %v778 = vld [vmem:[#allocation9 + $0x1a0] sm:$0xff]
      %v779 = vld [vmem:[#allocation9 + $0x1a8] sm:$0xff]
      %v780 = vld [vmem:[#allocation9 + $0x1b0] sm:$0xff]
      %v781 = vld [vmem:[#allocation9 + $0x1b8] sm:$0xff]
      %v782 = vld [vmem:[#allocation9 + $0x1c0] sm:$0xff]
      %v783 = vld [vmem:[#allocation9 + $0x1c8] sm:$0xff]
      %v784 = vld [vmem:[#allocation9 + $0x1d0] sm:$0xff]
      %v785 = vld [vmem:[#allocation9 + $0x1d8] sm:$0xff]
      %v786 = vld [vmem:[#allocation9 + $0x1e0] sm:$0xff]
      %v787 = vld [vmem:[#allocation9 + $0x1e8] sm:$0xff]
      %v788 = vld [vmem:[#allocation9 + $0x1f0] sm:$0xff]
      %v789 = vld [vmem:[#allocation9 + $0x1f8] sm:$0xff]
      %v854 = vunpack.c.l.b16 %v726
      %v855 = vunpack.c.h.b16 %v726
      %v856 = vunpack.c.l.b16 %v727
      %v857 = vunpack.c.h.b16 %v727
      %v858 = vunpack.c.l.b16 %v728
      %v859 = vunpack.c.h.b16 %v728
      %v860 = vunpack.c.l.b16 %v729
      %v861 = vunpack.c.h.b16 %v729
      %v862 = vunpack.c.l.b16 %v730
      %v863 = vunpack.c.h.b16 %v730
      %v864 = vunpack.c.l.b16 %v731
      %v865 = vunpack.c.h.b16 %v731
      %v866 = vunpack.c.l.b16 %v732
      %v867 = vunpack.c.h.b16 %v732
      %v868 = vunpack.c.l.b16 %v733
      %v869 = vunpack.c.h.b16 %v733
      %v870 = vunpack.c.l.b16 %v734
      %v871 = vunpack.c.h.b16 %v734
      %v872 = vunpack.c.l.b16 %v735
      %v873 = vunpack.c.h.b16 %v735
      %v874 = vunpack.c.l.b16 %v736
      %v875 = vunpack.c.h.b16 %v736
      %v876 = vunpack.c.l.b16 %v737
      %v877 = vunpack.c.h.b16 %v737
      %v878 = vunpack.c.l.b16 %v738
      %v879 = vunpack.c.h.b16 %v738
      %v880 = vunpack.c.l.b16 %v739
      %v881 = vunpack.c.h.b16 %v739
      %v882 = vunpack.c.l.b16 %v740
      %v883 = vunpack.c.h.b16 %v740
      %v884 = vunpack.c.l.b16 %v741
      %v885 = vunpack.c.h.b16 %v741
      %v886 = vunpack.c.l.b16 %v742
      %v887 = vunpack.c.h.b16 %v742
      %v888 = vunpack.c.l.b16 %v743
      %v889 = vunpack.c.h.b16 %v743
      %v890 = vunpack.c.l.b16 %v744
      %v891 = vunpack.c.h.b16 %v744
      %v892 = vunpack.c.l.b16 %v745
      %v893 = vunpack.c.h.b16 %v745
      %v894 = vunpack.c.l.b16 %v746
      %v895 = vunpack.c.h.b16 %v746
      %v896 = vunpack.c.l.b16 %v747
      %v897 = vunpack.c.h.b16 %v747
      %v898 = vunpack.c.l.b16 %v748
      %v899 = vunpack.c.h.b16 %v748
      %v900 = vunpack.c.l.b16 %v749
      %v901 = vunpack.c.h.b16 %v749
      %v902 = vunpack.c.l.b16 %v750
      %v903 = vunpack.c.h.b16 %v750
      %v904 = vunpack.c.l.b16 %v751
      %v905 = vunpack.c.h.b16 %v751
      %v906 = vunpack.c.l.b16 %v752
      %v907 = vunpack.c.h.b16 %v752
      %v908 = vunpack.c.l.b16 %v753
      %v909 = vunpack.c.h.b16 %v753
      %v910 = vunpack.c.l.b16 %v754
      %v911 = vunpack.c.h.b16 %v754
      %v912 = vunpack.c.l.b16 %v755
      %v913 = vunpack.c.h.b16 %v755
      %v914 = vunpack.c.l.b16 %v756
      %v915 = vunpack.c.h.b16 %v756
      %v916 = vunpack.c.l.b16 %v757
      %v917 = vunpack.c.h.b16 %v757
      %v918 = vunpack.c.l.b16 %v758
      %v919 = vunpack.c.h.b16 %v758
      %v920 = vunpack.c.l.b16 %v759
      %v921 = vunpack.c.h.b16 %v759
      %v922 = vunpack.c.l.b16 %v760
      %v923 = vunpack.c.h.b16 %v760
      %v924 = vunpack.c.l.b16 %v761
      %v925 = vunpack.c.h.b16 %v761
      %v926 = vunpack.c.l.b16 %v762
      %v927 = vunpack.c.h.b16 %v762
      %v928 = vunpack.c.l.b16 %v763
      %v929 = vunpack.c.h.b16 %v763
      %v930 = vunpack.c.l.b16 %v764
      %v931 = vunpack.c.h.b16 %v764
      %v932 = vunpack.c.l.b16 %v765
      %v933 = vunpack.c.h.b16 %v765
      %v934 = vunpack.c.l.b16 %v766
      %v935 = vunpack.c.h.b16 %v766
      %v936 = vunpack.c.l.b16 %v767
      %v937 = vunpack.c.h.b16 %v767
      %v938 = vunpack.c.l.b16 %v768
      %v939 = vunpack.c.h.b16 %v768
      %v940 = vunpack.c.l.b16 %v769
      %v941 = vunpack.c.h.b16 %v769
      %v942 = vunpack.c.l.b16 %v770
      %v943 = vunpack.c.h.b16 %v770
      %v944 = vunpack.c.l.b16 %v771
      %v945 = vunpack.c.h.b16 %v771
      %v946 = vunpack.c.l.b16 %v772
      %v947 = vunpack.c.h.b16 %v772
      %v948 = vunpack.c.l.b16 %v773
      %v949 = vunpack.c.h.b16 %v773
      %v950 = vunpack.c.l.b16 %v774
      %v951 = vunpack.c.h.b16 %v774
      %v952 = vunpack.c.l.b16 %v775
      %v953 = vunpack.c.h.b16 %v775
      %v954 = vunpack.c.l.b16 %v776
      %v955 = vunpack.c.h.b16 %v776
      %v956 = vunpack.c.l.b16 %v777
      %v957 = vunpack.c.h.b16 %v777
      %v958 = vunpack.c.l.b16 %v778
      %v959 = vunpack.c.h.b16 %v778
      %v960 = vunpack.c.l.b16 %v779
      %v961 = vunpack.c.h.b16 %v779
      %v962 = vunpack.c.l.b16 %v780
      %v963 = vunpack.c.h.b16 %v780
      %v964 = vunpack.c.l.b16 %v781
      %v965 = vunpack.c.h.b16 %v781
      %v966 = vunpack.c.l.b16 %v782
      %v967 = vunpack.c.h.b16 %v782
      %v968 = vunpack.c.l.b16 %v783
      %v969 = vunpack.c.h.b16 %v783
      %v970 = vunpack.c.l.b16 %v784
      %v971 = vunpack.c.h.b16 %v784
      %v972 = vunpack.c.l.b16 %v785
      %v973 = vunpack.c.h.b16 %v785
      %v974 = vunpack.c.l.b16 %v786
      %v975 = vunpack.c.h.b16 %v786
      %v976 = vunpack.c.l.b16 %v787
      %v977 = vunpack.c.h.b16 %v787
      %v978 = vunpack.c.l.b16 %v788
      %v979 = vunpack.c.h.b16 %v788
      %v980 = vunpack.c.l.b16 %v789
      %v981 = vunpack.c.h.b16 %v789
      %v982 = vpack.c.b16 %v856, %v854
      %v983 = vpack.c.b16 %v857, %v855
      %v984 = vpack.c.b16 %v860, %v858
      %v985 = vpack.c.b16 %v861, %v859
      %v986 = vpack.c.b16 %v864, %v862
      %v987 = vpack.c.b16 %v865, %v863
      %v988 = vpack.c.b16 %v868, %v866
      %v989 = vpack.c.b16 %v869, %v867
      %v990 = vpack.c.b16 %v872, %v870
      %v991 = vpack.c.b16 %v873, %v871
      %v992 = vpack.c.b16 %v876, %v874
      %v993 = vpack.c.b16 %v877, %v875
      %v994 = vpack.c.b16 %v880, %v878
      %v995 = vpack.c.b16 %v881, %v879
      %v996 = vpack.c.b16 %v884, %v882
      %v997 = vpack.c.b16 %v885, %v883
      %v998 = vpack.c.b16 %v888, %v886
      %v999 = vpack.c.b16 %v889, %v887
      %v1000 = vpack.c.b16 %v892, %v890
      %v1001 = vpack.c.b16 %v893, %v891
      %v1002 = vpack.c.b16 %v896, %v894
      %v1003 = vpack.c.b16 %v897, %v895
      %v1004 = vpack.c.b16 %v900, %v898
      %v1005 = vpack.c.b16 %v901, %v899
      %v1006 = vpack.c.b16 %v904, %v902
      %v1007 = vpack.c.b16 %v905, %v903
      %v1008 = vpack.c.b16 %v908, %v906
      %v1009 = vpack.c.b16 %v909, %v907
      %v1010 = vpack.c.b16 %v912, %v910
      %v1011 = vpack.c.b16 %v913, %v911
      %v1012 = vpack.c.b16 %v916, %v914
      %v1013 = vpack.c.b16 %v917, %v915
      %v1014 = vpack.c.b16 %v920, %v918
      %v1015 = vpack.c.b16 %v921, %v919
      %v1016 = vpack.c.b16 %v924, %v922
      %v1017 = vpack.c.b16 %v925, %v923
      %v1018 = vpack.c.b16 %v928, %v926
      %v1019 = vpack.c.b16 %v929, %v927
      %v1020 = vpack.c.b16 %v932, %v930
      %v1021 = vpack.c.b16 %v933, %v931
      %v1022 = vpack.c.b16 %v936, %v934
      %v1023 = vpack.c.b16 %v937, %v935
      %v1024 = vpack.c.b16 %v940, %v938
      %v1025 = vpack.c.b16 %v941, %v939
      %v1026 = vpack.c.b16 %v944, %v942
      %v1027 = vpack.c.b16 %v945, %v943
      %v1028 = vpack.c.b16 %v948, %v946
      %v1029 = vpack.c.b16 %v949, %v947
      %v1030 = vpack.c.b16 %v952, %v950
      %v1031 = vpack.c.b16 %v953, %v951
      %v1032 = vpack.c.b16 %v956, %v954
      %v1033 = vpack.c.b16 %v957, %v955
      %v1034 = vpack.c.b16 %v960, %v958
      %v1035 = vpack.c.b16 %v961, %v959
      %v1036 = vpack.c.b16 %v964, %v962
      %v1037 = vpack.c.b16 %v965, %v963
      %v1038 = vpack.c.b16 %v968, %v966
      %v1039 = vpack.c.b16 %v969, %v967
      %v1040 = vpack.c.b16 %v972, %v970
      %v1041 = vpack.c.b16 %v973, %v971
      %v1042 = vpack.c.b16 %v976, %v974
      %v1043 = vpack.c.b16 %v977, %v975
      %v1044 = vpack.c.b16 %v980, %v978
      %v1045 = vpack.c.b16 %v981, %v979
      %1110 = vmatprep.subr.bf16.mxu0 %v983
      %1111 = vmatpush1.bf16.msra.mxu0 %v982
      %1112 = vmatprep.subr.bf16.mxu0 %v985
      %1113 = vmatpush1.bf16.msra.mxu0 %v984
      %1114 = vmatprep.subr.bf16.mxu0 %v987
      %1115 = vmatpush1.bf16.msra.mxu0 %v986
      %1116 = vmatprep.subr.bf16.mxu0 %v989
      %1117 = vmatpush1.bf16.msra.mxu0 %v988
      %1118 = vmatprep.subr.bf16.mxu0 %v991
      %1119 = vmatpush1.bf16.msra.mxu0 %v990
      %1120 = vmatprep.subr.bf16.mxu0 %v993
      %1121 = vmatpush1.bf16.msra.mxu0 %v992
      %1122 = vmatprep.subr.bf16.mxu0 %v995
      %1123 = vmatpush1.bf16.msra.mxu0 %v994
      %1124 = vmatprep.subr.bf16.mxu0 %v997
      %1125 = vmatpush1.bf16.msra.mxu0 %v996
      %1126 = vmatprep.subr.bf16.mxu0 %v999
      %1127 = vmatpush1.bf16.msra.mxu0 %v998
      %1128 = vmatprep.subr.bf16.mxu0 %v1001
      %1129 = vmatpush1.bf16.msra.mxu0 %v1000
      %1130 = vmatprep.subr.bf16.mxu0 %v1003
      %1131 = vmatpush1.bf16.msra.mxu0 %v1002
      %1132 = vmatprep.subr.bf16.mxu0 %v1005
      %1133 = vmatpush1.bf16.msra.mxu0 %v1004
      %1134 = vmatprep.subr.bf16.mxu0 %v1007
      %1135 = vmatpush1.bf16.msra.mxu0 %v1006
      %1136 = vmatprep.subr.bf16.mxu0 %v1009
      %1137 = vmatpush1.bf16.msra.mxu0 %v1008
      %1138 = vmatprep.subr.bf16.mxu0 %v1011
      %1139 = vmatpush1.bf16.msra.mxu0 %v1010
      %1140 = vmatprep.subr.bf16.mxu0 %v1013
      %1141 = vmatpush1.bf16.msra.mxu0 %v1012
      %1142 = vmatprep.mubr.bf16.mxu0 %v663
      %1143 = vmatmul.mubr.bf16.gmra.mrb[0].mxu0 %v662
      %v1144 = vpop.f32.mrb[0].mxu0
      %v1145 = vadd.f32 0.0, %v1144
      %v1146 = vpop.f32.mrb[0].mxu0
      %v1147 = vadd.f32 0.0, %v1146
      %v1148 = vpop.f32.mrb[0].mxu0
      %v1149 = vadd.f32 0.0, %v1148
      %v1150 = vpop.f32.mrb[0].mxu0
      %v1151 = vadd.f32 0.0, %v1150
      %1152 = vmatprep.mubr.bf16.mxu0 %v667
      %1153 = vmatmul.mubr.bf16.gmra.mrb[0].mxu0 %v666
      %v1154 = vpop.f32.mrb[0].mxu0
      %v1155 = vadd.f32 0.0, %v1154
      %v1156 = vpop.f32.mrb[0].mxu0
      %v1157 = vadd.f32 0.0, %v1156
      %v1158 = vpop.f32.mrb[0].mxu0
      %v1159 = vadd.f32 0.0, %v1158
      %v1160 = vpop.f32.mrb[0].mxu0
      %v1161 = vadd.f32 0.0, %v1160
      %1162 = vmatprep.mubr.bf16.mxu0 %v671
      %1163 = vmatmul.mubr.bf16.gmra.mrb[0].mxu0 %v670
      %v1164 = vpop.f32.mrb[0].mxu0
      %v1165 = vadd.f32 0.0, %v1164
      %v1166 = vpop.f32.mrb[0].mxu0
      %v1167 = vadd.f32 0.0, %v1166
      %v1168 = vpop.f32.mrb[0].mxu0
      %v1169 = vadd.f32 0.0, %v1168
      %v1170 = vpop.f32.mrb[0].mxu0
      %v1171 = vadd.f32 0.0, %v1170
      %1172 = vmatprep.mubr.bf16.mxu0 %v675
      %1173 = vmatmul.mubr.bf16.gmra.mrb[0].mxu0 %v674
      %v1174 = vpop.f32.mrb[0].mxu0
      %v1175 = vadd.f32 0.0, %v1174
      %v1176 = vpop.f32.mrb[0].mxu0
      %v1177 = vadd.f32 0.0, %v1176
      %v1178 = vpop.f32.mrb[0].mxu0
      %v1179 = vadd.f32 0.0, %v1178
      %v1180 = vpop.f32.mrb[0].mxu0
      %v1181 = vadd.f32 0.0, %v1180
      %1182 = vmatprep.mubr.bf16.mxu0 %v679
      %1183 = vmatmul.mubr.bf16.gmra.mrb[0].mxu0 %v678
      %v1184 = vpop.f32.mrb[0].mxu0
      %v1185 = vadd.f32 0.0, %v1184
      %v1186 = vpop.f32.mrb[0].mxu0
      %v1187 = vadd.f32 0.0, %v1186
      %v1188 = vpop.f32.mrb[0].mxu0
      %v1189 = vadd.f32 0.0, %v1188
      %v1190 = vpop.f32.mrb[0].mxu0
      %v1191 = vadd.f32 0.0, %v1190
      %1192 = vmatprep.mubr.bf16.mxu0 %v683
      %1193 = vmatmul.mubr.bf16.gmra.mrb[0].mxu0 %v682
      %v1194 = vpop.f32.mrb[0].mxu0
      %v1195 = vadd.f32 0.0, %v1194
      %v1196 = vpop.f32.mrb[0].mxu0
      %v1197 = vadd.f32 0.0, %v1196
      %v1198 = vpop.f32.mrb[0].mxu0
      %v1199 = vadd.f32 0.0, %v1198
      %v1200 = vpop.f32.mrb[0].mxu0
      %v1201 = vadd.f32 0.0, %v1200
      %1202 = vmatprep.mubr.bf16.mxu0 %v687
      %1203 = vmatmul.mubr.bf16.gmra.mrb[0].mxu0 %v686
      %v1204 = vpop.f32.mrb[0].mxu0
      %v1205 = vadd.f32 0.0, %v1204
      %v1206 = vpop.f32.mrb[0].mxu0
      %v1207 = vadd.f32 0.0, %v1206
      %v1208 = vpop.f32.mrb[0].mxu0
      %v1209 = vadd.f32 0.0, %v1208
      %v1210 = vpop.f32.mrb[0].mxu0
      %v1211 = vadd.f32 0.0, %v1210
      %1212 = vmatprep.mubr.bf16.mxu0 %v691
      %1213 = vmatmul.mubr.bf16.gmra.mrb[0].mxu0 %v690
      %v1214 = vpop.f32.mrb[0].mxu0
      %v1215 = vadd.f32 0.0, %v1214
      %v1216 = vpop.f32.mrb[0].mxu0
      %v1217 = vadd.f32 0.0, %v1216
      %v1218 = vpop.f32.mrb[0].mxu0
      %v1219 = vadd.f32 0.0, %v1218
      %v1220 = vpop.f32.mrb[0].mxu0
      %v1221 = vadd.f32 0.0, %v1220
      %1222 = vmatprep.mubr.bf16.mxu0 %v695
      %1223 = vmatmul.mubr.bf16.gmra.mrb[0].mxu0 %v694
      %v1224 = vpop.f32.mrb[0].mxu0
      %v1225 = vadd.f32 0.0, %v1224
      %v1226 = vpop.f32.mrb[0].mxu0
      %v1227 = vadd.f32 0.0, %v1226
      %v1228 = vpop.f32.mrb[0].mxu0
      %v1229 = vadd.f32 0.0, %v1228
      %v1230 = vpop.f32.mrb[0].mxu0
      %v1231 = vadd.f32 0.0, %v1230
      %1232 = vmatprep.mubr.bf16.mxu0 %v699
      %1233 = vmatmul.mubr.bf16.gmra.mrb[0].mxu0 %v698
      %v1234 = vpop.f32.mrb[0].mxu0
      %v1235 = vadd.f32 0.0, %v1234
      %v1236 = vpop.f32.mrb[0].mxu0
      %v1237 = vadd.f32 0.0, %v1236
      %v1238 = vpop.f32.mrb[0].mxu0
      %v1239 = vadd.f32 0.0, %v1238
      %v1240 = vpop.f32.mrb[0].mxu0
      %v1241 = vadd.f32 0.0, %v1240
      %1242 = vmatprep.mubr.bf16.mxu0 %v703
      %1243 = vmatmul.mubr.bf16.gmra.mrb[0].mxu0 %v702
      %v1244 = vpop.f32.mrb[0].mxu0
      %v1245 = vadd.f32 0.0, %v1244
      %v1246 = vpop.f32.mrb[0].mxu0
      %v1247 = vadd.f32 0.0, %v1246
      %v1248 = vpop.f32.mrb[0].mxu0
      %v1249 = vadd.f32 0.0, %v1248
      %v1250 = vpop.f32.mrb[0].mxu0
      %v1251 = vadd.f32 0.0, %v1250
      %1252 = vmatprep.mubr.bf16.mxu0 %v707
      %1253 = vmatmul.mubr.bf16.gmra.mrb[0].mxu0 %v706
      %v1254 = vpop.f32.mrb[0].mxu0
      %v1255 = vadd.f32 0.0, %v1254
      %v1256 = vpop.f32.mrb[0].mxu0
      %v1257 = vadd.f32 0.0, %v1256
      %v1258 = vpop.f32.mrb[0].mxu0
      %v1259 = vadd.f32 0.0, %v1258
      %v1260 = vpop.f32.mrb[0].mxu0
      %v1261 = vadd.f32 0.0, %v1260
      %1262 = vmatprep.mubr.bf16.mxu0 %v711
      %1263 = vmatmul.mubr.bf16.gmra.mrb[0].mxu0 %v710
      %v1264 = vpop.f32.mrb[0].mxu0
      %v1265 = vadd.f32 0.0, %v1264
      %v1266 = vpop.f32.mrb[0].mxu0
      %v1267 = vadd.f32 0.0, %v1266
      %v1268 = vpop.f32.mrb[0].mxu0
      %v1269 = vadd.f32 0.0, %v1268
      %v1270 = vpop.f32.mrb[0].mxu0
      %v1271 = vadd.f32 0.0, %v1270
      %1272 = vmatprep.mubr.bf16.mxu0 %v715
      %1273 = vmatmul.mubr.bf16.gmra.mrb[0].mxu0 %v714
      %v1274 = vpop.f32.mrb[0].mxu0
      %v1275 = vadd.f32 0.0, %v1274
      %v1276 = vpop.f32.mrb[0].mxu0
      %v1277 = vadd.f32 0.0, %v1276
      %v1278 = vpop.f32.mrb[0].mxu0
      %v1279 = vadd.f32 0.0, %v1278
      %v1280 = vpop.f32.mrb[0].mxu0
      %v1281 = vadd.f32 0.0, %v1280
      %1282 = vmatprep.mubr.bf16.mxu0 %v719
      %1283 = vmatmul.mubr.bf16.gmra.mrb[0].mxu0 %v718
      %v1284 = vpop.f32.mrb[0].mxu0
      %v1285 = vadd.f32 0.0, %v1284
      %v1286 = vpop.f32.mrb[0].mxu0
      %v1287 = vadd.f32 0.0, %v1286
      %v1288 = vpop.f32.mrb[0].mxu0
      %v1289 = vadd.f32 0.0, %v1288
      %v1290 = vpop.f32.mrb[0].mxu0
      %v1291 = vadd.f32 0.0, %v1290
      %1292 = vmatprep.mubr.bf16.mxu0 %v723
      %1293 = vmatmul.mubr.bf16.gmra.mrb[0].mxu0 %v722
      %v1294 = vpop.f32.mrb[0].mxu0
      %v1295 = vadd.f32 0.0, %v1294
      %v1296 = vpop.f32.mrb[0].mxu0
      %v1297 = vadd.f32 0.0, %v1296
      %v1298 = vpop.f32.mrb[0].mxu0
      %v1299 = vadd.f32 0.0, %v1298
      %v1300 = vpop.f32.mrb[0].mxu0
      %v1301 = vadd.f32 0.0, %v1300
      %1302 = vdwg.mxu0
      %1303 = vmatprep.subr.bf16.mxu0 %v1015
      %1304 = vmatpush1.bf16.msra.mxu0 %v1014
      %1305 = vmatprep.subr.bf16.mxu0 %v1017
      %1306 = vmatpush1.bf16.msra.mxu0 %v1016
      %1307 = vmatprep.subr.bf16.mxu0 %v1019
      %1308 = vmatpush1.bf16.msra.mxu0 %v1018
      %1309 = vmatprep.subr.bf16.mxu0 %v1021
      %1310 = vmatpush1.bf16.msra.mxu0 %v1020
      %1311 = vmatprep.subr.bf16.mxu0 %v1023
      %1312 = vmatpush1.bf16.msra.mxu0 %v1022
      %1313 = vmatprep.subr.bf16.mxu0 %v1025
      %1314 = vmatpush1.bf16.msra.mxu0 %v1024
      %1315 = vmatprep.subr.bf16.mxu0 %v1027
      %1316 = vmatpush1.bf16.msra.mxu0 %v1026
      %1317 = vmatprep.subr.bf16.mxu0 %v1029
      %1318 = vmatpush1.bf16.msra.mxu0 %v1028
      %1319 = vmatprep.subr.bf16.mxu0 %v1031
      %1320 = vmatpush1.bf16.msra.mxu0 %v1030
      %1321 = vmatprep.subr.bf16.mxu0 %v1033
      %1322 = vmatpush1.bf16.msra.mxu0 %v1032
      %1323 = vmatprep.subr.bf16.mxu0 %v1035
      %1324 = vmatpush1.bf16.msra.mxu0 %v1034
      %1325 = vmatprep.subr.bf16.mxu0 %v1037
      %1326 = vmatpush1.bf16.msra.mxu0 %v1036
      %1327 = vmatprep.subr.bf16.mxu0 %v1039
      %1328 = vmatpush1.bf16.msra.mxu0 %v1038
      %1329 = vmatprep.subr.bf16.mxu0 %v1041
      %1330 = vmatpush1.bf16.msra.mxu0 %v1040
      %1331 = vmatprep.subr.bf16.mxu0 %v1043
      %1332 = vmatpush1.bf16.msra.mxu0 %v1042
      %1333 = vmatprep.subr.bf16.mxu0 %v1045
      %1334 = vmatpush1.bf16.msra.mxu0 %v1044
      %1335 = vmatprep.mubr.bf16.mxu0 %v665
      %1336 = vmatmul.mubr.bf16.gmra.mrb[0].mxu0 %v664
      %v1337 = vpop.f32.mrb[0].mxu0
      %v1338 = vadd.f32 %v1145, %v1337
      %v1339 = vpop.f32.mrb[0].mxu0
      %v1340 = vadd.f32 %v1147, %v1339
      %v1341 = vpop.f32.mrb[0].mxu0
      %v1342 = vadd.f32 %v1149, %v1341
      %v1343 = vpop.f32.mrb[0].mxu0
      %v1344 = vadd.f32 %v1151, %v1343
      %1345 = vmatprep.mubr.bf16.mxu0 %v669
      %1346 = vmatmul.mubr.bf16.gmra.mrb[0].mxu0 %v668
      %v1347 = vpop.f32.mrb[0].mxu0
      %v1348 = vadd.f32 %v1155, %v1347
      %v1349 = vpop.f32.mrb[0].mxu0
      %v1350 = vadd.f32 %v1157, %v1349
      %v1351 = vpop.f32.mrb[0].mxu0
      %v1352 = vadd.f32 %v1159, %v1351
      %v1353 = vpop.f32.mrb[0].mxu0
      %v1354 = vadd.f32 %v1161, %v1353
      %1355 = vmatprep.mubr.bf16.mxu0 %v673
      %1356 = vmatmul.mubr.bf16.gmra.mrb[0].mxu0 %v672
      %v1357 = vpop.f32.mrb[0].mxu0
      %v1358 = vadd.f32 %v1165, %v1357
      %v1359 = vpop.f32.mrb[0].mxu0
      %v1360 = vadd.f32 %v1167, %v1359
      %v1361 = vpop.f32.mrb[0].mxu0
      %v1362 = vadd.f32 %v1169, %v1361
      %v1363 = vpop.f32.mrb[0].mxu0
      %v1364 = vadd.f32 %v1171, %v1363
      %1365 = vmatprep.mubr.bf16.mxu0 %v677
      %1366 = vmatmul.mubr.bf16.gmra.mrb[0].mxu0 %v676
      %v1367 = vpop.f32.mrb[0].mxu0
      %v1368 = vadd.f32 %v1175, %v1367
      %v1369 = vpop.f32.mrb[0].mxu0
      %v1370 = vadd.f32 %v1177, %v1369
      %v1371 = vpop.f32.mrb[0].mxu0
      %v1372 = vadd.f32 %v1179, %v1371
      %v1373 = vpop.f32.mrb[0].mxu0
      %v1374 = vadd.f32 %v1181, %v1373
      %1375 = vmatprep.mubr.bf16.mxu0 %v681
      %1376 = vmatmul.mubr.bf16.gmra.mrb[0].mxu0 %v680
      %v1377 = vpop.f32.mrb[0].mxu0
      %v1378 = vadd.f32 %v1185, %v1377
      %v1379 = vpop.f32.mrb[0].mxu0
      %v1380 = vadd.f32 %v1187, %v1379
      %v1381 = vpop.f32.mrb[0].mxu0
      %v1382 = vadd.f32 %v1189, %v1381
      %v1383 = vpop.f32.mrb[0].mxu0
      %v1384 = vadd.f32 %v1191, %v1383
      %1385 = vmatprep.mubr.bf16.mxu0 %v685
      %1386 = vmatmul.mubr.bf16.gmra.mrb[0].mxu0 %v684
      %v1387 = vpop.f32.mrb[0].mxu0
      %v1388 = vadd.f32 %v1195, %v1387
      %v1389 = vpop.f32.mrb[0].mxu0
      %v1390 = vadd.f32 %v1197, %v1389
      %v1391 = vpop.f32.mrb[0].mxu0
      %v1392 = vadd.f32 %v1199, %v1391
      %v1393 = vpop.f32.mrb[0].mxu0
      %v1394 = vadd.f32 %v1201, %v1393
      %1395 = vmatprep.mubr.bf16.mxu0 %v689
      %1396 = vmatmul.mubr.bf16.gmra.mrb[0].mxu0 %v688
      %v1397 = vpop.f32.mrb[0].mxu0
      %v1398 = vadd.f32 %v1205, %v1397
      %v1399 = vpop.f32.mrb[0].mxu0
      %v1400 = vadd.f32 %v1207, %v1399
      %v1401 = vpop.f32.mrb[0].mxu0
      %v1402 = vadd.f32 %v1209, %v1401
      %v1403 = vpop.f32.mrb[0].mxu0
      %v1404 = vadd.f32 %v1211, %v1403
      %1405 = vmatprep.mubr.bf16.mxu0 %v693
      %1406 = vmatmul.mubr.bf16.gmra.mrb[0].mxu0 %v692
      %v1407 = vpop.f32.mrb[0].mxu0
      %v1408 = vadd.f32 %v1215, %v1407
      %v1409 = vpop.f32.mrb[0].mxu0
      %v1410 = vadd.f32 %v1217, %v1409
      %v1411 = vpop.f32.mrb[0].mxu0
      %v1412 = vadd.f32 %v1219, %v1411
      %v1413 = vpop.f32.mrb[0].mxu0
      %v1414 = vadd.f32 %v1221, %v1413
      %1415 = vmatprep.mubr.bf16.mxu0 %v697
      %1416 = vmatmul.mubr.bf16.gmra.mrb[0].mxu0 %v696
      %v1417 = vpop.f32.mrb[0].mxu0
      %v1418 = vadd.f32 %v1225, %v1417
      %v1419 = vpop.f32.mrb[0].mxu0
      %v1420 = vadd.f32 %v1227, %v1419
      %v1421 = vpop.f32.mrb[0].mxu0
      %v1422 = vadd.f32 %v1229, %v1421
      %v1423 = vpop.f32.mrb[0].mxu0
      %v1424 = vadd.f32 %v1231, %v1423
      %1425 = vmatprep.mubr.bf16.mxu0 %v701
      %1426 = vmatmul.mubr.bf16.gmra.mrb[0].mxu0 %v700
      %v1427 = vpop.f32.mrb[0].mxu0
      %v1428 = vadd.f32 %v1235, %v1427
      %v1429 = vpop.f32.mrb[0].mxu0
      %v1430 = vadd.f32 %v1237, %v1429
      %v1431 = vpop.f32.mrb[0].mxu0
      %v1432 = vadd.f32 %v1239, %v1431
      %v1433 = vpop.f32.mrb[0].mxu0
      %v1434 = vadd.f32 %v1241, %v1433
      %1435 = vmatprep.mubr.bf16.mxu0 %v705
      %1436 = vmatmul.mubr.bf16.gmra.mrb[0].mxu0 %v704
      %v1437 = vpop.f32.mrb[0].mxu0
      %v1438 = vadd.f32 %v1245, %v1437
      %v1439 = vpop.f32.mrb[0].mxu0
      %v1440 = vadd.f32 %v1247, %v1439
      %v1441 = vpop.f32.mrb[0].mxu0
      %v1442 = vadd.f32 %v1249, %v1441
      %v1443 = vpop.f32.mrb[0].mxu0
      %v1444 = vadd.f32 %v1251, %v1443
      %1445 = vmatprep.mubr.bf16.mxu0 %v709
      %1446 = vmatmul.mubr.bf16.gmra.mrb[0].mxu0 %v708
      %v1447 = vpop.f32.mrb[0].mxu0
      %v1448 = vadd.f32 %v1255, %v1447
      %v1449 = vpop.f32.mrb[0].mxu0
      %v1450 = vadd.f32 %v1257, %v1449
      %v1451 = vpop.f32.mrb[0].mxu0
      %v1452 = vadd.f32 %v1259, %v1451
      %v1453 = vpop.f32.mrb[0].mxu0
      %v1454 = vadd.f32 %v1261, %v1453
      %1455 = vmatprep.mubr.bf16.mxu0 %v713
      %1456 = vmatmul.mubr.bf16.gmra.mrb[0].mxu0 %v712
      %v1457 = vpop.f32.mrb[0].mxu0
      %v1458 = vadd.f32 %v1265, %v1457
      %v1459 = vpop.f32.mrb[0].mxu0
      %v1460 = vadd.f32 %v1267, %v1459
      %v1461 = vpop.f32.mrb[0].mxu0
      %v1462 = vadd.f32 %v1269, %v1461
      %v1463 = vpop.f32.mrb[0].mxu0
      %v1464 = vadd.f32 %v1271, %v1463
      %1465 = vmatprep.mubr.bf16.mxu0 %v717
      %1466 = vmatmul.mubr.bf16.gmra.mrb[0].mxu0 %v716
      %v1467 = vpop.f32.mrb[0].mxu0
      %v1468 = vadd.f32 %v1275, %v1467
      %v1469 = vpop.f32.mrb[0].mxu0
      %v1470 = vadd.f32 %v1277, %v1469
      %v1471 = vpop.f32.mrb[0].mxu0
      %v1472 = vadd.f32 %v1279, %v1471
      %v1473 = vpop.f32.mrb[0].mxu0
      %v1474 = vadd.f32 %v1281, %v1473
      %1475 = vmatprep.mubr.bf16.mxu0 %v721
      %1476 = vmatmul.mubr.bf16.gmra.mrb[0].mxu0 %v720
      %v1477 = vpop.f32.mrb[0].mxu0
      %v1478 = vadd.f32 %v1285, %v1477
      %v1479 = vpop.f32.mrb[0].mxu0
      %v1480 = vadd.f32 %v1287, %v1479
      %v1481 = vpop.f32.mrb[0].mxu0
      %v1482 = vadd.f32 %v1289, %v1481
      %v1483 = vpop.f32.mrb[0].mxu0
      %v1484 = vadd.f32 %v1291, %v1483
      %1485 = vmatprep.mubr.bf16.mxu0 %v725
      %1486 = vmatmul.mubr.bf16.gmra.mrb[0].mxu0 %v724
      %v1487 = vpop.f32.mrb[0].mxu0
      %v1488 = vadd.f32 %v1295, %v1487
      %v1489 = vpop.f32.mrb[0].mxu0
      %v1490 = vadd.f32 %v1297, %v1489
      %v1491 = vpop.f32.mrb[0].mxu0
      %v1492 = vadd.f32 %v1299, %v1491
      %v1493 = vpop.f32.mrb[0].mxu0
      %v1494 = vadd.f32 %v1301, %v1493
      %1495 = vdwg.mxu0
      %v1496 = vld [vmem:[#allocation2] sm:$0xff]
      %v1497 = vld [vmem:[#allocation2 + $0x8] sm:$0xff]
      %v1498 = vld [vmem:[#allocation2 + $0x10] sm:$0xff]
      %v1499 = vld [vmem:[#allocation2 + $0x18] sm:$0xff]
      %v1500 = vld [vmem:[#allocation2 + $0x20] sm:$0xff]
      %v1501 = vld [vmem:[#allocation2 + $0x28] sm:$0xff]
      %v1502 = vld [vmem:[#allocation2 + $0x30] sm:$0xff]
      %v1503 = vld [vmem:[#allocation2 + $0x38] sm:$0xff]
      %v1504 = vld [vmem:[#allocation2 + $0x40] sm:$0xff]
      %v1505 = vld [vmem:[#allocation2 + $0x48] sm:$0xff]
      %v1506 = vld [vmem:[#allocation2 + $0x50] sm:$0xff]
      %v1507 = vld [vmem:[#allocation2 + $0x58] sm:$0xff]
      %v1508 = vld [vmem:[#allocation2 + $0x60] sm:$0xff]
      %v1509 = vld [vmem:[#allocation2 + $0x68] sm:$0xff]
      %v1510 = vld [vmem:[#allocation2 + $0x70] sm:$0xff]
      %v1511 = vld [vmem:[#allocation2 + $0x78] sm:$0xff]
      %v1512 = vld [vmem:[#allocation2 + $0x80] sm:$0xff]
      %v1513 = vld [vmem:[#allocation2 + $0x88] sm:$0xff]
      %v1514 = vld [vmem:[#allocation2 + $0x90] sm:$0xff]
      %v1515 = vld [vmem:[#allocation2 + $0x98] sm:$0xff]
      %v1516 = vld [vmem:[#allocation2 + $0xa0] sm:$0xff]
      %v1517 = vld [vmem:[#allocation2 + $0xa8] sm:$0xff]
      %v1518 = vld [vmem:[#allocation2 + $0xb0] sm:$0xff]
      %v1519 = vld [vmem:[#allocation2 + $0xb8] sm:$0xff]
      %v1520 = vld [vmem:[#allocation2 + $0xc0] sm:$0xff]
      %v1521 = vld [vmem:[#allocation2 + $0xc8] sm:$0xff]
      %v1522 = vld [vmem:[#allocation2 + $0xd0] sm:$0xff]
      %v1523 = vld [vmem:[#allocation2 + $0xd8] sm:$0xff]
      %v1524 = vld [vmem:[#allocation2 + $0xe0] sm:$0xff]
      %v1525 = vld [vmem:[#allocation2 + $0xe8] sm:$0xff]
      %v1526 = vld [vmem:[#allocation2 + $0xf0] sm:$0xff]
      %v1527 = vld [vmem:[#allocation2 + $0xf8] sm:$0xff]
      %v1528 = vadd.f32 %v1338, %v1340
      %v1529 = vadd.f32 %v1342, %v1344
      %v1530 = vadd.f32 %v1348, %v1350
      %v1531 = vadd.f32 %v1352, %v1354
      %v1532 = vadd.f32 %v1358, %v1360
      %v1533 = vadd.f32 %v1362, %v1364
      %v1534 = vadd.f32 %v1368, %v1370
      %v1535 = vadd.f32 %v1372, %v1374
      %v1536 = vadd.f32 %v1378, %v1380
      %v1537 = vadd.f32 %v1382, %v1384
      %v1538 = vadd.f32 %v1388, %v1390
      %v1539 = vadd.f32 %v1392, %v1394
      %v1540 = vadd.f32 %v1398, %v1400
      %v1541 = vadd.f32 %v1402, %v1404
      %v1542 = vadd.f32 %v1408, %v1410
      %v1543 = vadd.f32 %v1412, %v1414
      %v1544 = vadd.f32 %v1418, %v1420
      %v1545 = vadd.f32 %v1422, %v1424
      %v1546 = vadd.f32 %v1428, %v1430
      %v1547 = vadd.f32 %v1432, %v1434
      %v1548 = vadd.f32 %v1438, %v1440
      %v1549 = vadd.f32 %v1442, %v1444
      %v1550 = vadd.f32 %v1448, %v1450
      %v1551 = vadd.f32 %v1452, %v1454
      %v1552 = vadd.f32 %v1458, %v1460
      %v1553 = vadd.f32 %v1462, %v1464
      %v1554 = vadd.f32 %v1468, %v1470
      %v1555 = vadd.f32 %v1472, %v1474
      %v1556 = vadd.f32 %v1478, %v1480
      %v1557 = vadd.f32 %v1482, %v1484
      %v1558 = vadd.f32 %v1488, %v1490
      %v1559 = vadd.f32 %v1492, %v1494
      %v1560 = vadd.f32 %v1496, %v1528
      %v1561 = vadd.f32 %v1497, %v1529
      %v1562 = vadd.f32 %v1498, %v1530
      %v1563 = vadd.f32 %v1499, %v1531
      %v1564 = vadd.f32 %v1500, %v1532
      %v1565 = vadd.f32 %v1501, %v1533
      %v1566 = vadd.f32 %v1502, %v1534
      %v1567 = vadd.f32 %v1503, %v1535
      %v1568 = vadd.f32 %v1504, %v1536
      %v1569 = vadd.f32 %v1505, %v1537
      %v1570 = vadd.f32 %v1506, %v1538
      %v1571 = vadd.f32 %v1507, %v1539
      %v1572 = vadd.f32 %v1508, %v1540
      %v1573 = vadd.f32 %v1509, %v1541
      %v1574 = vadd.f32 %v1510, %v1542
      %v1575 = vadd.f32 %v1511, %v1543
      %v1576 = vadd.f32 %v1512, %v1544
      %v1577 = vadd.f32 %v1513, %v1545
      %v1578 = vadd.f32 %v1514, %v1546
      %v1579 = vadd.f32 %v1515, %v1547
      %v1580 = vadd.f32 %v1516, %v1548
      %v1581 = vadd.f32 %v1517, %v1549
      %v1582 = vadd.f32 %v1518, %v1550
      %v1583 = vadd.f32 %v1519, %v1551
      %v1584 = vadd.f32 %v1520, %v1552
      %v1585 = vadd.f32 %v1521, %v1553
      %v1586 = vadd.f32 %v1522, %v1554
      %v1587 = vadd.f32 %v1523, %v1555
      %v1588 = vadd.f32 %v1524, %v1556
      %v1589 = vadd.f32 %v1525, %v1557
      %v1590 = vadd.f32 %v1526, %v1558
      %v1591 = vadd.f32 %v1527, %v1559
      %1592 = vst [vmem:[#allocation2] sm:$0xff] %v1560
      %1593 = vst [vmem:[#allocation2 + $0x8] sm:$0xff] %v1561
      %1594 = vst [vmem:[#allocation2 + $0x10] sm:$0xff] %v1562
      %1595 = vst [vmem:[#allocation2 + $0x18] sm:$0xff] %v1563
      %1596 = vst [vmem:[#allocation2 + $0x20] sm:$0xff] %v1564
      %1597 = vst [vmem:[#allocation2 + $0x28] sm:$0xff] %v1565
      %1598 = vst [vmem:[#allocation2 + $0x30] sm:$0xff] %v1566
      %1599 = vst [vmem:[#allocation2 + $0x38] sm:$0xff] %v1567
      %1600 = vst [vmem:[#allocation2 + $0x40] sm:$0xff] %v1568
      %1601 = vst [vmem:[#allocation2 + $0x48] sm:$0xff] %v1569
      %1602 = vst [vmem:[#allocation2 + $0x50] sm:$0xff] %v1570
      %1603 = vst [vmem:[#allocation2 + $0x58] sm:$0xff] %v1571
      %1604 = vst [vmem:[#allocation2 + $0x60] sm:$0xff] %v1572
      %1605 = vst [vmem:[#allocation2 + $0x68] sm:$0xff] %v1573
      %1606 = vst [vmem:[#allocation2 + $0x70] sm:$0xff] %v1574
      %1607 = vst [vmem:[#allocation2 + $0x78] sm:$0xff] %v1575
      %1608 = vst [vmem:[#allocation2 + $0x80] sm:$0xff] %v1576
      %1609 = vst [vmem:[#allocation2 + $0x88] sm:$0xff] %v1577
      %1610 = vst [vmem:[#allocation2 + $0x90] sm:$0xff] %v1578
      %1611 = vst [vmem:[#allocation2 + $0x98] sm:$0xff] %v1579
      %1612 = vst [vmem:[#allocation2 + $0xa0] sm:$0xff] %v1580
      %1613 = vst [vmem:[#allocation2 + $0xa8] sm:$0xff] %v1581
      %1614 = vst [vmem:[#allocation2 + $0xb0] sm:$0xff] %v1582
      %1615 = vst [vmem:[#allocation2 + $0xb8] sm:$0xff] %v1583
      %1616 = vst [vmem:[#allocation2 + $0xc0] sm:$0xff] %v1584
      %1617 = vst [vmem:[#allocation2 + $0xc8] sm:$0xff] %v1585
      %1618 = vst [vmem:[#allocation2 + $0xd0] sm:$0xff] %v1586
      %1619 = vst [vmem:[#allocation2 + $0xd8] sm:$0xff] %v1587
      %1620 = vst [vmem:[#allocation2 + $0xe0] sm:$0xff] %v1588
      %1621 = vst [vmem:[#allocation2 + $0xe8] sm:$0xff] %v1589
      %1622 = vst [vmem:[#allocation2 + $0xf0] sm:$0xff] %v1590
      %1623 = vst [vmem:[#allocation2 + $0xf8] sm:$0xff] %v1591
    $region81: #{tpu_custom_call.1} parent=1 // pred_fallthru
      _
    // Predicated region
    $region82: #{tpu_custom_call.1} parent=1 // pred_check
      %p1624 = pneg %p149
    $region83: #{tpu_custom_call.1} parent=1 // pred_check_branch
      %1626 = sbr.rel (%p1624) target = $region85
    $region84: #{tpu_custom_call.1} parent=1 // pred_region
      %v1627 = vld [vmem:[#allocation6] sm:$0xff]
      %v1628 = vld [vmem:[#allocation6 + $0x8] sm:$0xff]
      %v1629 = vld [vmem:[#allocation6 + $0x10] sm:$0xff]
      %v1630 = vld [vmem:[#allocation6 + $0x18] sm:$0xff]
      %v1631 = vld [vmem:[#allocation6 + $0x20] sm:$0xff]
      %v1632 = vld [vmem:[#allocation6 + $0x28] sm:$0xff]
      %v1633 = vld [vmem:[#allocation6 + $0x30] sm:$0xff]
      %v1634 = vld [vmem:[#allocation6 + $0x38] sm:$0xff]
      %v1635 = vld [vmem:[#allocation6 + $0x40] sm:$0xff]
      %v1636 = vld [vmem:[#allocation6 + $0x48] sm:$0xff]
      %v1637 = vld [vmem:[#allocation6 + $0x50] sm:$0xff]
      %v1638 = vld [vmem:[#allocation6 + $0x58] sm:$0xff]
      %v1639 = vld [vmem:[#allocation6 + $0x60] sm:$0xff]
      %v1640 = vld [vmem:[#allocation6 + $0x68] sm:$0xff]
      %v1641 = vld [vmem:[#allocation6 + $0x70] sm:$0xff]
      %v1642 = vld [vmem:[#allocation6 + $0x78] sm:$0xff]
      %v1643 = vld [vmem:[#allocation6 + $0x80] sm:$0xff]
      %v1644 = vld [vmem:[#allocation6 + $0x88] sm:$0xff]
      %v1645 = vld [vmem:[#allocation6 + $0x90] sm:$0xff]
      %v1646 = vld [vmem:[#allocation6 + $0x98] sm:$0xff]
      %v1647 = vld [vmem:[#allocation6 + $0xa0] sm:$0xff]
      %v1648 = vld [vmem:[#allocation6 + $0xa8] sm:$0xff]
      %v1649 = vld [vmem:[#allocation6 + $0xb0] sm:$0xff]
      %v1650 = vld [vmem:[#allocation6 + $0xb8] sm:$0xff]
      %v1651 = vld [vmem:[#allocation6 + $0xc0] sm:$0xff]
      %v1652 = vld [vmem:[#allocation6 + $0xc8] sm:$0xff]
      %v1653 = vld [vmem:[#allocation6 + $0xd0] sm:$0xff]
      %v1654 = vld [vmem:[#allocation6 + $0xd8] sm:$0xff]
      %v1655 = vld [vmem:[#allocation6 + $0xe0] sm:$0xff]
      %v1656 = vld [vmem:[#allocation6 + $0xe8] sm:$0xff]
      %v1657 = vld [vmem:[#allocation6 + $0xf0] sm:$0xff]
      %v1658 = vld [vmem:[#allocation6 + $0xf8] sm:$0xff]
      %v1659 = vld [vmem:[#allocation2] sm:$0xff]
      %v1660 = vld [vmem:[#allocation2 + $0x8] sm:$0xff]
      %v1661 = vld [vmem:[#allocation2 + $0x10] sm:$0xff]
      %v1662 = vld [vmem:[#allocation2 + $0x18] sm:$0xff]
      %v1663 = vld [vmem:[#allocation2 + $0x20] sm:$0xff]
      %v1664 = vld [vmem:[#allocation2 + $0x28] sm:$0xff]
      %v1665 = vld [vmem:[#allocation2 + $0x30] sm:$0xff]
      %v1666 = vld [vmem:[#allocation2 + $0x38] sm:$0xff]
      %v1667 = vld [vmem:[#allocation2 + $0x40] sm:$0xff]
      %v1668 = vld [vmem:[#allocation2 + $0x48] sm:$0xff]
      %v1669 = vld [vmem:[#allocation2 + $0x50] sm:$0xff]
      %v1670 = vld [vmem:[#allocation2 + $0x58] sm:$0xff]
      %v1671 = vld [vmem:[#allocation2 + $0x60] sm:$0xff]
      %v1672 = vld [vmem:[#allocation2 + $0x68] sm:$0xff]
      %v1673 = vld [vmem:[#allocation2 + $0x70] sm:$0xff]
      %v1674 = vld [vmem:[#allocation2 + $0x78] sm:$0xff]
      %v1675 = vld [vmem:[#allocation2 + $0x80] sm:$0xff]
      %v1676 = vld [vmem:[#allocation2 + $0x88] sm:$0xff]
      %v1677 = vld [vmem:[#allocation2 + $0x90] sm:$0xff]
      %v1678 = vld [vmem:[#allocation2 + $0x98] sm:$0xff]
      %v1679 = vld [vmem:[#allocation2 + $0xa0] sm:$0xff]
      %v1680 = vld [vmem:[#allocation2 + $0xa8] sm:$0xff]
      %v1681 = vld [vmem:[#allocation2 + $0xb0] sm:$0xff]
      %v1682 = vld [vmem:[#allocation2 + $0xb8] sm:$0xff]
      %v1683 = vld [vmem:[#allocation2 + $0xc0] sm:$0xff]
      %v1684 = vld [vmem:[#allocation2 + $0xc8] sm:$0xff]
      %v1685 = vld [vmem:[#allocation2 + $0xd0] sm:$0xff]
      %v1686 = vld [vmem:[#allocation2 + $0xd8] sm:$0xff]
      %v1687 = vld [vmem:[#allocation2 + $0xe0] sm:$0xff]
      %v1688 = vld [vmem:[#allocation2 + $0xe8] sm:$0xff]
      %v1689 = vld [vmem:[#allocation2 + $0xf0] sm:$0xff]
      %v1690 = vld [vmem:[#allocation2 + $0xf8] sm:$0xff]
      %v1691 = vld [vmem:[#allocation11] sm:$0xff]
      %v1692 = vld [vmem:[#allocation11 + $0x8] sm:$0xff]
      %v1693 = vld [vmem:[#allocation11 + $0x10] sm:$0xff]
      %v1694 = vld [vmem:[#allocation11 + $0x18] sm:$0xff]
      %v1695 = vld [vmem:[#allocation11 + $0x20] sm:$0xff]
      %v1696 = vld [vmem:[#allocation11 + $0x28] sm:$0xff]
      %v1697 = vld [vmem:[#allocation11 + $0x30] sm:$0xff]
      %v1698 = vld [vmem:[#allocation11 + $0x38] sm:$0xff]
      %v1699 = vld [vmem:[#allocation11 + $0x40] sm:$0xff]
      %v1700 = vld [vmem:[#allocation11 + $0x48] sm:$0xff]
      %v1701 = vld [vmem:[#allocation11 + $0x50] sm:$0xff]
      %v1702 = vld [vmem:[#allocation11 + $0x58] sm:$0xff]
      %v1703 = vld [vmem:[#allocation11 + $0x60] sm:$0xff]
      %v1704 = vld [vmem:[#allocation11 + $0x68] sm:$0xff]
      %v1705 = vld [vmem:[#allocation11 + $0x70] sm:$0xff]
      %v1706 = vld [vmem:[#allocation11 + $0x78] sm:$0xff]
      %v1707 = vld [vmem:[#allocation12] sm:$0xff]
      %v1708 = vld [vmem:[#allocation12 + $0x8] sm:$0xff]
      %v1709 = vld [vmem:[#allocation12 + $0x10] sm:$0xff]
      %v1710 = vld [vmem:[#allocation12 + $0x18] sm:$0xff]
      %v1711 = vld [vmem:[#allocation12 + $0x20] sm:$0xff]
      %v1712 = vld [vmem:[#allocation12 + $0x28] sm:$0xff]
      %v1713 = vld [vmem:[#allocation12 + $0x30] sm:$0xff]
      %v1714 = vld [vmem:[#allocation12 + $0x38] sm:$0xff]
      %v1715 = vld [vmem:[#allocation12 + $0x40] sm:$0xff]
      %v1716 = vld [vmem:[#allocation12 + $0x48] sm:$0xff]
      %v1717 = vld [vmem:[#allocation12 + $0x50] sm:$0xff]
      %v1718 = vld [vmem:[#allocation12 + $0x58] sm:$0xff]
      %v1719 = vld [vmem:[#allocation12 + $0x60] sm:$0xff]
      %v1720 = vld [vmem:[#allocation12 + $0x68] sm:$0xff]
      %v1721 = vld [vmem:[#allocation12 + $0x70] sm:$0xff]
      %v1722 = vld [vmem:[#allocation12 + $0x78] sm:$0xff]
      %1723 = vmatprep.subr.mxu0 0.0
      %1724 = vmatpush1.msra.mxu0 %v1707
      %1725 = vmatprep.subr.mxu0 0.0
      %1726 = vmatpush1.msra.mxu0 %v1708
      %1727 = vmatprep.subr.mxu0 0.0
      %1728 = vmatpush1.msra.mxu0 %v1709
      %1729 = vmatprep.subr.mxu0 0.0
      %1730 = vmatpush1.msra.mxu0 %v1710
      %1731 = vmatprep.subr.mxu0 0.0
      %1732 = vmatpush1.msra.mxu0 %v1711
      %1733 = vmatprep.subr.mxu0 0.0
      %1734 = vmatpush1.msra.mxu0 %v1712
      %1735 = vmatprep.subr.mxu0 0.0
      %1736 = vmatpush1.msra.mxu0 %v1713
      %1737 = vmatprep.subr.mxu0 0.0
      %1738 = vmatpush1.msra.mxu0 %v1714
      %1739 = vmatprep.subr.mxu0 0.0
      %1740 = vmatpush1.msra.mxu0 %v1715
      %1741 = vmatprep.subr.mxu0 0.0
      %1742 = vmatpush1.msra.mxu0 %v1716
      %1743 = vmatprep.subr.mxu0 0.0
      %1744 = vmatpush1.msra.mxu0 %v1717
      %1745 = vmatprep.subr.mxu0 0.0
      %1746 = vmatpush1.msra.mxu0 %v1718
      %1747 = vmatprep.subr.mxu0 0.0
      %1748 = vmatpush1.msra.mxu0 %v1719
      %1749 = vmatprep.subr.mxu0 0.0
      %1750 = vmatpush1.msra.mxu0 %v1720
      %1751 = vmatprep.subr.mxu0 0.0
      %1752 = vmatpush1.msra.mxu0 %v1721
      %1753 = vmatprep.subr.mxu0 0.0
      %1754 = vmatpush1.msra.mxu0 %v1722
      %1755 = vmatprep.subr.mxu0 0.0
      %1756 = vmatpush1.msra.mxu0 0.0
      %1757 = vmatprep.subr.mxu0 0.0
      %1758 = vmatpush1.msra.mxu0 0.0
      %1759 = vmatprep.subr.mxu0 0.0
      %1760 = vmatpush1.msra.mxu0 0.0
      %1761 = vmatprep.subr.mxu0 0.0
      %1762 = vmatpush1.msra.mxu0 0.0
      %1763 = vmatprep.subr.mxu0 0.0
      %1764 = vmatpush1.msra.mxu0 0.0
      %1765 = vmatprep.subr.mxu0 0.0
      %1766 = vmatpush1.msra.mxu0 0.0
      %1767 = vmatprep.subr.mxu0 0.0
      %1768 = vmatpush1.msra.mxu0 0.0
      %1769 = vmatprep.subr.mxu0 0.0
      %1770 = vmatpush1.msra.mxu0 0.0
      %1771 = vmatprep.subr.mxu0 0.0
      %1772 = vmatpush1.msra.mxu0 0.0
      %1773 = vmatprep.subr.mxu0 0.0
      %1774 = vmatpush1.msra.mxu0 0.0
      %1775 = vmatprep.subr.mxu0 0.0
      %1776 = vmatpush1.msra.mxu0 0.0
      %1777 = vmatprep.subr.mxu0 0.0
      %1778 = vmatpush1.msra.mxu0 0.0
      %1779 = vmatprep.subr.mxu0 0.0
      %1780 = vmatpush1.msra.mxu0 0.0
      %1781 = vmatprep.subr.mxu0 0.0
      %1782 = vmatpush1.msra.mxu0 0.0
      %1783 = vmatprep.subr.mxu0 0.0
      %1784 = vmatpush1.msra.mxu0 0.0
      %1785 = vmatprep.subr.mxu0 0.0
      %1786 = vmatpush1.msra.mxu0 0.0
      %1787 = vmatprep.mubr.f32.mxu0 0.0
      %1788 = vmatmul.mubr.f32.gmra.mrb[0].mxu0 %v1659
      %v1789 = vpop.f32.mrb[0].mxu0
      %v1790 = vadd.f32 0.0, %v1789
      %v1791 = vpop.f32.mrb[0].mxu0
      %1792 = vmatprep.mubr.f32.mxu0 0.0
      %1793 = vmatmul.mubr.f32.gmra.mrb[0].mxu0 %v1660
      %v1794 = vpop.f32.mrb[0].mxu0
      %v1795 = vadd.f32 0.0, %v1794
      %v1796 = vpop.f32.mrb[0].mxu0
      %1797 = vmatprep.mubr.f32.mxu0 0.0
      %1798 = vmatmul.mubr.f32.gmra.mrb[0].mxu0 %v1661
      %v1799 = vpop.f32.mrb[0].mxu0
      %v1800 = vadd.f32 0.0, %v1799
      %v1801 = vpop.f32.mrb[0].mxu0
      %1802 = vmatprep.mubr.f32.mxu0 0.0
      %1803 = vmatmul.mubr.f32.gmra.mrb[0].mxu0 %v1662
      %v1804 = vpop.f32.mrb[0].mxu0
      %v1805 = vadd.f32 0.0, %v1804
      %v1806 = vpop.f32.mrb[0].mxu0
      %1807 = vmatprep.mubr.f32.mxu0 0.0
      %1808 = vmatmul.mubr.f32.gmra.mrb[0].mxu0 %v1663
      %v1809 = vpop.f32.mrb[0].mxu0
      %v1810 = vadd.f32 0.0, %v1809
      %v1811 = vpop.f32.mrb[0].mxu0
      %1812 = vmatprep.mubr.f32.mxu0 0.0
      %1813 = vmatmul.mubr.f32.gmra.mrb[0].mxu0 %v1664
      %v1814 = vpop.f32.mrb[0].mxu0
      %v1815 = vadd.f32 0.0, %v1814
      %v1816 = vpop.f32.mrb[0].mxu0
      %1817 = vmatprep.mubr.f32.mxu0 0.0
      %1818 = vmatmul.mubr.f32.gmra.mrb[0].mxu0 %v1665
      %v1819 = vpop.f32.mrb[0].mxu0
      %v1820 = vadd.f32 0.0, %v1819
      %v1821 = vpop.f32.mrb[0].mxu0
      %1822 = vmatprep.mubr.f32.mxu0 0.0
      %1823 = vmatmul.mubr.f32.gmra.mrb[0].mxu0 %v1666
      %v1824 = vpop.f32.mrb[0].mxu0
      %v1825 = vadd.f32 0.0, %v1824
      %v1826 = vpop.f32.mrb[0].mxu0
      %1827 = vmatprep.mubr.f32.mxu0 0.0
      %1828 = vmatmul.mubr.f32.gmra.mrb[0].mxu0 %v1667
      %v1829 = vpop.f32.mrb[0].mxu0
      %v1830 = vadd.f32 0.0, %v1829
      %v1831 = vpop.f32.mrb[0].mxu0
      %1832 = vmatprep.mubr.f32.mxu0 0.0
      %1833 = vmatmul.mubr.f32.gmra.mrb[0].mxu0 %v1668
      %v1834 = vpop.f32.mrb[0].mxu0
      %v1835 = vadd.f32 0.0, %v1834
      %v1836 = vpop.f32.mrb[0].mxu0
      %1837 = vmatprep.mubr.f32.mxu0 0.0
      %1838 = vmatmul.mubr.f32.gmra.mrb[0].mxu0 %v1669
      %v1839 = vpop.f32.mrb[0].mxu0
      %v1840 = vadd.f32 0.0, %v1839
      %v1841 = vpop.f32.mrb[0].mxu0
      %1842 = vmatprep.mubr.f32.mxu0 0.0
      %1843 = vmatmul.mubr.f32.gmra.mrb[0].mxu0 %v1670
      %v1844 = vpop.f32.mrb[0].mxu0
      %v1845 = vadd.f32 0.0, %v1844
      %v1846 = vpop.f32.mrb[0].mxu0
      %1847 = vmatprep.mubr.f32.mxu0 0.0
      %1848 = vmatmul.mubr.f32.gmra.mrb[0].mxu0 %v1671
      %v1849 = vpop.f32.mrb[0].mxu0
      %v1850 = vadd.f32 0.0, %v1849
      %v1851 = vpop.f32.mrb[0].mxu0
      %1852 = vmatprep.mubr.f32.mxu0 0.0
      %1853 = vmatmul.mubr.f32.gmra.mrb[0].mxu0 %v1672
      %v1854 = vpop.f32.mrb[0].mxu0
      %v1855 = vadd.f32 0.0, %v1854
      %v1856 = vpop.f32.mrb[0].mxu0
      %1857 = vmatprep.mubr.f32.mxu0 0.0
      %1858 = vmatmul.mubr.f32.gmra.mrb[0].mxu0 %v1673
      %v1859 = vpop.f32.mrb[0].mxu0
      %v1860 = vadd.f32 0.0, %v1859
      %v1861 = vpop.f32.mrb[0].mxu0
      %1862 = vmatprep.mubr.f32.mxu0 0.0
      %1863 = vmatmul.mubr.f32.gmra.mrb[0].mxu0 %v1674
      %v1864 = vpop.f32.mrb[0].mxu0
      %v1865 = vadd.f32 0.0, %v1864
      %v1866 = vpop.f32.mrb[0].mxu0
      %1867 = vmatprep.mubr.f32.mxu0 0.0
      %1868 = vmatmul.mubr.f32.gmra.mrb[0].mxu0 %v1675
      %v1869 = vpop.f32.mrb[0].mxu0
      %v1870 = vadd.f32 0.0, %v1869
      %v1871 = vpop.f32.mrb[0].mxu0
      %1872 = vmatprep.mubr.f32.mxu0 0.0
      %1873 = vmatmul.mubr.f32.gmra.mrb[0].mxu0 %v1676
      %v1874 = vpop.f32.mrb[0].mxu0
      %v1875 = vadd.f32 0.0, %v1874
      %v1876 = vpop.f32.mrb[0].mxu0
      %1877 = vmatprep.mubr.f32.mxu0 0.0
      %1878 = vmatmul.mubr.f32.gmra.mrb[0].mxu0 %v1677
      %v1879 = vpop.f32.mrb[0].mxu0
      %v1880 = vadd.f32 0.0, %v1879
      %v1881 = vpop.f32.mrb[0].mxu0
      %1882 = vmatprep.mubr.f32.mxu0 0.0
      %1883 = vmatmul.mubr.f32.gmra.mrb[0].mxu0 %v1678
      %v1884 = vpop.f32.mrb[0].mxu0
      %v1885 = vadd.f32 0.0, %v1884
      %v1886 = vpop.f32.mrb[0].mxu0
      %1887 = vmatprep.mubr.f32.mxu0 0.0
      %1888 = vmatmul.mubr.f32.gmra.mrb[0].mxu0 %v1679
      %v1889 = vpop.f32.mrb[0].mxu0
      %v1890 = vadd.f32 0.0, %v1889
      %v1891 = vpop.f32.mrb[0].mxu0
      %1892 = vmatprep.mubr.f32.mxu0 0.0
      %1893 = vmatmul.mubr.f32.gmra.mrb[0].mxu0 %v1680
      %v1894 = vpop.f32.mrb[0].mxu0
      %v1895 = vadd.f32 0.0, %v1894
      %v1896 = vpop.f32.mrb[0].mxu0
      %1897 = vmatprep.mubr.f32.mxu0 0.0
      %1898 = vmatmul.mubr.f32.gmra.mrb[0].mxu0 %v1681
      %v1899 = vpop.f32.mrb[0].mxu0
      %v1900 = vadd.f32 0.0, %v1899
      %v1901 = vpop.f32.mrb[0].mxu0
      %1902 = vmatprep.mubr.f32.mxu0 0.0
      %1903 = vmatmul.mubr.f32.gmra.mrb[0].mxu0 %v1682
      %v1904 = vpop.f32.mrb[0].mxu0
      %v1905 = vadd.f32 0.0, %v1904
      %v1906 = vpop.f32.mrb[0].mxu0
      %1907 = vmatprep.mubr.f32.mxu0 0.0
      %1908 = vmatmul.mubr.f32.gmra.mrb[0].mxu0 %v1683
      %v1909 = vpop.f32.mrb[0].mxu0
      %v1910 = vadd.f32 0.0, %v1909
      %v1911 = vpop.f32.mrb[0].mxu0
      %1912 = vmatprep.mubr.f32.mxu0 0.0
      %1913 = vmatmul.mubr.f32.gmra.mrb[0].mxu0 %v1684
      %v1914 = vpop.f32.mrb[0].mxu0
      %v1915 = vadd.f32 0.0, %v1914
      %v1916 = vpop.f32.mrb[0].mxu0
      %1917 = vmatprep.mubr.f32.mxu0 0.0
      %1918 = vmatmul.mubr.f32.gmra.mrb[0].mxu0 %v1685
      %v1919 = vpop.f32.mrb[0].mxu0
      %v1920 = vadd.f32 0.0, %v1919
      %v1921 = vpop.f32.mrb[0].mxu0
      %1922 = vmatprep.mubr.f32.mxu0 0.0
      %1923 = vmatmul.mubr.f32.gmra.mrb[0].mxu0 %v1686
      %v1924 = vpop.f32.mrb[0].mxu0
      %v1925 = vadd.f32 0.0, %v1924
      %v1926 = vpop.f32.mrb[0].mxu0
      %1927 = vmatprep.mubr.f32.mxu0 0.0
      %1928 = vmatmul.mubr.f32.gmra.mrb[0].mxu0 %v1687
      %v1929 = vpop.f32.mrb[0].mxu0
      %v1930 = vadd.f32 0.0, %v1929
      %v1931 = vpop.f32.mrb[0].mxu0
      %1932 = vmatprep.mubr.f32.mxu0 0.0
      %1933 = vmatmul.mubr.f32.gmra.mrb[0].mxu0 %v1688
      %v1934 = vpop.f32.mrb[0].mxu0
      %v1935 = vadd.f32 0.0, %v1934
      %v1936 = vpop.f32.mrb[0].mxu0
      %1937 = vmatprep.mubr.f32.mxu0 0.0
      %1938 = vmatmul.mubr.f32.gmra.mrb[0].mxu0 %v1689
      %v1939 = vpop.f32.mrb[0].mxu0
      %v1940 = vadd.f32 0.0, %v1939
      %v1941 = vpop.f32.mrb[0].mxu0
      %1942 = vmatprep.mubr.f32.mxu0 0.0
      %1943 = vmatmul.mubr.f32.gmra.mrb[0].mxu0 %v1690
      %v1944 = vpop.f32.mrb[0].mxu0
      %v1945 = vadd.f32 0.0, %v1944
      %v1946 = vpop.f32.mrb[0].mxu0
      %1947 = vdwg.mxu0
      %1948 = vmatprep.subr.mxu0 0.0
      %1949 = vmatpush1.msra.mxu0 %v1691
      %1950 = vmatprep.subr.mxu0 0.0
      %1951 = vmatpush1.msra.mxu0 %v1692
      %1952 = vmatprep.subr.mxu0 0.0
      %1953 = vmatpush1.msra.mxu0 %v1693
      %1954 = vmatprep.subr.mxu0 0.0
      %1955 = vmatpush1.msra.mxu0 %v1694
      %1956 = vmatprep.subr.mxu0 0.0
      %1957 = vmatpush1.msra.mxu0 %v1695
      %1958 = vmatprep.subr.mxu0 0.0
      %1959 = vmatpush1.msra.mxu0 %v1696
      %1960 = vmatprep.subr.mxu0 0.0
      %1961 = vmatpush1.msra.mxu0 %v1697
      %1962 = vmatprep.subr.mxu0 0.0
      %1963 = vmatpush1.msra.mxu0 %v1698
      %1964 = vmatprep.subr.mxu0 0.0
      %1965 = vmatpush1.msra.mxu0 %v1699
      %1966 = vmatprep.subr.mxu0 0.0
      %1967 = vmatpush1.msra.mxu0 %v1700
      %1968 = vmatprep.subr.mxu0 0.0
      %1969 = vmatpush1.msra.mxu0 %v1701
      %1970 = vmatprep.subr.mxu0 0.0
      %1971 = vmatpush1.msra.mxu0 %v1702
      %1972 = vmatprep.subr.mxu0 0.0
      %1973 = vmatpush1.msra.mxu0 %v1703
      %1974 = vmatprep.subr.mxu0 0.0
      %1975 = vmatpush1.msra.mxu0 %v1704
      %1976 = vmatprep.subr.mxu0 0.0
      %1977 = vmatpush1.msra.mxu0 %v1705
      %1978 = vmatprep.subr.mxu0 0.0
      %1979 = vmatpush1.msra.mxu0 %v1706
      %1980 = vmatprep.subr.mxu0 0.0
      %1981 = vmatpush1.msra.mxu0 0.0
      %1982 = vmatprep.subr.mxu0 0.0
      %1983 = vmatpush1.msra.mxu0 0.0
      %1984 = vmatprep.subr.mxu0 0.0
      %1985 = vmatpush1.msra.mxu0 0.0
      %1986 = vmatprep.subr.mxu0 0.0
      %1987 = vmatpush1.msra.mxu0 0.0
      %1988 = vmatprep.subr.mxu0 0.0
      %1989 = vmatpush1.msra.mxu0 0.0
      %1990 = vmatprep.subr.mxu0 0.0
      %1991 = vmatpush1.msra.mxu0 0.0
      %1992 = vmatprep.subr.mxu0 0.0
      %1993 = vmatpush1.msra.mxu0 0.0
      %1994 = vmatprep.subr.mxu0 0.0
      %1995 = vmatpush1.msra.mxu0 0.0
      %1996 = vmatprep.subr.mxu0 0.0
      %1997 = vmatpush1.msra.mxu0 0.0
      %1998 = vmatprep.subr.mxu0 0.0
      %1999 = vmatpush1.msra.mxu0 0.0
      %2000 = vmatprep.subr.mxu0 0.0
      %2001 = vmatpush1.msra.mxu0 0.0
      %2002 = vmatprep.subr.mxu0 0.0
      %2003 = vmatpush1.msra.mxu0 0.0
      %2004 = vmatprep.subr.mxu0 0.0
      %2005 = vmatpush1.msra.mxu0 0.0
      %2006 = vmatprep.subr.mxu0 0.0
      %2007 = vmatpush1.msra.mxu0 0.0
      %2008 = vmatprep.subr.mxu0 0.0
      %2009 = vmatpush1.msra.mxu0 0.0
      %2010 = vmatprep.subr.mxu0 0.0
      %2011 = vmatpush1.msra.mxu0 0.0
      %2012 = vmatprep.mubr.f32.mxu0 0.0
      %2013 = vmatmul.mubr.f32.gmra.mrb[0].mxu0 %v1627
      %v2014 = vpop.f32.mrb[0].mxu0
      %v2015 = vadd.f32 %v1790, %v2014
      %v2016 = vpop.f32.mrb[0].mxu0
      %2017 = vmatprep.mubr.f32.mxu0 0.0
      %2018 = vmatmul.mubr.f32.gmra.mrb[0].mxu0 %v1628
      %v2019 = vpop.f32.mrb[0].mxu0
      %v2020 = vadd.f32 %v1795, %v2019
      %v2021 = vpop.f32.mrb[0].mxu0
      %2022 = vmatprep.mubr.f32.mxu0 0.0
      %2023 = vmatmul.mubr.f32.gmra.mrb[0].mxu0 %v1629
      %v2024 = vpop.f32.mrb[0].mxu0
      %v2025 = vadd.f32 %v1800, %v2024
      %v2026 = vpop.f32.mrb[0].mxu0
      %2027 = vmatprep.mubr.f32.mxu0 0.0
      %2028 = vmatmul.mubr.f32.gmra.mrb[0].mxu0 %v1630
      %v2029 = vpop.f32.mrb[0].mxu0
      %v2030 = vadd.f32 %v1805, %v2029
      %v2031 = vpop.f32.mrb[0].mxu0
      %2032 = vmatprep.mubr.f32.mxu0 0.0
      %2033 = vmatmul.mubr.f32.gmra.mrb[0].mxu0 %v1631
      %v2034 = vpop.f32.mrb[0].mxu0
      %v2035 = vadd.f32 %v1810, %v2034
      %v2036 = vpop.f32.mrb[0].mxu0
      %2037 = vmatprep.mubr.f32.mxu0 0.0
      %2038 = vmatmul.mubr.f32.gmra.mrb[0].mxu0 %v1632
      %v2039 = vpop.f32.mrb[0].mxu0
      %v2040 = vadd.f32 %v1815, %v2039
      %v2041 = vpop.f32.mrb[0].mxu0
      %2042 = vmatprep.mubr.f32.mxu0 0.0
      %2043 = vmatmul.mubr.f32.gmra.mrb[0].mxu0 %v1633
      %v2044 = vpop.f32.mrb[0].mxu0
      %v2045 = vadd.f32 %v1820, %v2044
      %v2046 = vpop.f32.mrb[0].mxu0
      %2047 = vmatprep.mubr.f32.mxu0 0.0
      %2048 = vmatmul.mubr.f32.gmra.mrb[0].mxu0 %v1634
      %v2049 = vpop.f32.mrb[0].mxu0
      %v2050 = vadd.f32 %v1825, %v2049
      %v2051 = vpop.f32.mrb[0].mxu0
      %2052 = vmatprep.mubr.f32.mxu0 0.0
      %2053 = vmatmul.mubr.f32.gmra.mrb[0].mxu0 %v1635
      %v2054 = vpop.f32.mrb[0].mxu0
      %v2055 = vadd.f32 %v1830, %v2054
      %v2056 = vpop.f32.mrb[0].mxu0
      %2057 = vmatprep.mubr.f32.mxu0 0.0
      %2058 = vmatmul.mubr.f32.gmra.mrb[0].mxu0 %v1636
      %v2059 = vpop.f32.mrb[0].mxu0
      %v2060 = vadd.f32 %v1835, %v2059
      %v2061 = vpop.f32.mrb[0].mxu0
      %2062 = vmatprep.mubr.f32.mxu0 0.0
      %2063 = vmatmul.mubr.f32.gmra.mrb[0].mxu0 %v1637
      %v2064 = vpop.f32.mrb[0].mxu0
      %v2065 = vadd.f32 %v1840, %v2064
      %v2066 = vpop.f32.mrb[0].mxu0
      %2067 = vmatprep.mubr.f32.mxu0 0.0
      %2068 = vmatmul.mubr.f32.gmra.mrb[0].mxu0 %v1638
      %v2069 = vpop.f32.mrb[0].mxu0
      %v2070 = vadd.f32 %v1845, %v2069
      %v2071 = vpop.f32.mrb[0].mxu0
      %2072 = vmatprep.mubr.f32.mxu0 0.0
      %2073 = vmatmul.mubr.f32.gmra.mrb[0].mxu0 %v1639
      %v2074 = vpop.f32.mrb[0].mxu0
      %v2075 = vadd.f32 %v1850, %v2074
      %v2076 = vpop.f32.mrb[0].mxu0
      %2077 = vmatprep.mubr.f32.mxu0 0.0
      %2078 = vmatmul.mubr.f32.gmra.mrb[0].mxu0 %v1640
      %v2079 = vpop.f32.mrb[0].mxu0
      %v2080 = vadd.f32 %v1855, %v2079
      %v2081 = vpop.f32.mrb[0].mxu0
      %2082 = vmatprep.mubr.f32.mxu0 0.0
      %2083 = vmatmul.mubr.f32.gmra.mrb[0].mxu0 %v1641
      %v2084 = vpop.f32.mrb[0].mxu0
      %v2085 = vadd.f32 %v1860, %v2084
      %v2086 = vpop.f32.mrb[0].mxu0
      %2087 = vmatprep.mubr.f32.mxu0 0.0
      %2088 = vmatmul.mubr.f32.gmra.mrb[0].mxu0 %v1642
      %v2089 = vpop.f32.mrb[0].mxu0
      %v2090 = vadd.f32 %v1865, %v2089
      %v2091 = vpop.f32.mrb[0].mxu0
      %2092 = vmatprep.mubr.f32.mxu0 0.0
      %2093 = vmatmul.mubr.f32.gmra.mrb[0].mxu0 %v1643
      %v2094 = vpop.f32.mrb[0].mxu0
      %v2095 = vadd.f32 %v1870, %v2094
      %v2096 = vpop.f32.mrb[0].mxu0
      %2097 = vmatprep.mubr.f32.mxu0 0.0
      %2098 = vmatmul.mubr.f32.gmra.mrb[0].mxu0 %v1644
      %v2099 = vpop.f32.mrb[0].mxu0
      %v2100 = vadd.f32 %v1875, %v2099
      %v2101 = vpop.f32.mrb[0].mxu0
      %2102 = vmatprep.mubr.f32.mxu0 0.0
      %2103 = vmatmul.mubr.f32.gmra.mrb[0].mxu0 %v1645
      %v2104 = vpop.f32.mrb[0].mxu0
      %v2105 = vadd.f32 %v1880, %v2104
      %v2106 = vpop.f32.mrb[0].mxu0
      %2107 = vmatprep.mubr.f32.mxu0 0.0
      %2108 = vmatmul.mubr.f32.gmra.mrb[0].mxu0 %v1646
      %v2109 = vpop.f32.mrb[0].mxu0
      %v2110 = vadd.f32 %v1885, %v2109
      %v2111 = vpop.f32.mrb[0].mxu0
      %2112 = vmatprep.mubr.f32.mxu0 0.0
      %2113 = vmatmul.mubr.f32.gmra.mrb[0].mxu0 %v1647
      %v2114 = vpop.f32.mrb[0].mxu0
      %v2115 = vadd.f32 %v1890, %v2114
      %v2116 = vpop.f32.mrb[0].mxu0
      %2117 = vmatprep.mubr.f32.mxu0 0.0
      %2118 = vmatmul.mubr.f32.gmra.mrb[0].mxu0 %v1648
      %v2119 = vpop.f32.mrb[0].mxu0
      %v2120 = vadd.f32 %v1895, %v2119
      %v2121 = vpop.f32.mrb[0].mxu0
      %2122 = vmatprep.mubr.f32.mxu0 0.0
      %2123 = vmatmul.mubr.f32.gmra.mrb[0].mxu0 %v1649
      %v2124 = vpop.f32.mrb[0].mxu0
      %v2125 = vadd.f32 %v1900, %v2124
      %v2126 = vpop.f32.mrb[0].mxu0
      %2127 = vmatprep.mubr.f32.mxu0 0.0
      %2128 = vmatmul.mubr.f32.gmra.mrb[0].mxu0 %v1650
      %v2129 = vpop.f32.mrb[0].mxu0
      %v2130 = vadd.f32 %v1905, %v2129
      %v2131 = vpop.f32.mrb[0].mxu0
      %2132 = vmatprep.mubr.f32.mxu0 0.0
      %2133 = vmatmul.mubr.f32.gmra.mrb[0].mxu0 %v1651
      %v2134 = vpop.f32.mrb[0].mxu0
      %v2135 = vadd.f32 %v1910, %v2134
      %v2136 = vpop.f32.mrb[0].mxu0
      %2137 = vmatprep.mubr.f32.mxu0 0.0
      %2138 = vmatmul.mubr.f32.gmra.mrb[0].mxu0 %v1652
      %v2139 = vpop.f32.mrb[0].mxu0
      %v2140 = vadd.f32 %v1915, %v2139
      %v2141 = vpop.f32.mrb[0].mxu0
      %2142 = vmatprep.mubr.f32.mxu0 0.0
      %2143 = vmatmul.mubr.f32.gmra.mrb[0].mxu0 %v1653
      %v2144 = vpop.f32.mrb[0].mxu0
      %v2145 = vadd.f32 %v1920, %v2144
      %v2146 = vpop.f32.mrb[0].mxu0
      %2147 = vmatprep.mubr.f32.mxu0 0.0
      %2148 = vmatmul.mubr.f32.gmra.mrb[0].mxu0 %v1654
      %v2149 = vpop.f32.mrb[0].mxu0
      %v2150 = vadd.f32 %v1925, %v2149
      %v2151 = vpop.f32.mrb[0].mxu0
      %2152 = vmatprep.mubr.f32.mxu0 0.0
      %2153 = vmatmul.mubr.f32.gmra.mrb[0].mxu0 %v1655
      %v2154 = vpop.f32.mrb[0].mxu0
      %v2155 = vadd.f32 %v1930, %v2154
      %v2156 = vpop.f32.mrb[0].mxu0
      %2157 = vmatprep.mubr.f32.mxu0 0.0
      %2158 = vmatmul.mubr.f32.gmra.mrb[0].mxu0 %v1656
      %v2159 = vpop.f32.mrb[0].mxu0
      %v2160 = vadd.f32 %v1935, %v2159
      %v2161 = vpop.f32.mrb[0].mxu0
      %2162 = vmatprep.mubr.f32.mxu0 0.0
      %2163 = vmatmul.mubr.f32.gmra.mrb[0].mxu0 %v1657
      %v2164 = vpop.f32.mrb[0].mxu0
      %v2165 = vadd.f32 %v1940, %v2164
      %v2166 = vpop.f32.mrb[0].mxu0
      %2167 = vmatprep.mubr.f32.mxu0 0.0
      %2168 = vmatmul.mubr.f32.gmra.mrb[0].mxu0 %v1658
      %v2169 = vpop.f32.mrb[0].mxu0
      %v2170 = vadd.f32 %v1945, %v2169
      %v2171 = vpop.f32.mrb[0].mxu0
      %2172 = vdwg.mxu0
      %v2173 = vld [vmem:[%s7] sm:$0x1]
      %v2175 = vlaneseq
      %v2176 = vshrl.u32 %v2175, 7
      %v2177 = vsub.s32 0, %v2176
      %v2178 = vrot.slane %v2173, %v2177
      %v2180 = vadd.f32 %v2015, %v2178
      %v2181 = vadd.f32 %v2020, %v2178
      %v2182 = vadd.f32 %v2025, %v2178
      %v2183 = vadd.f32 %v2030, %v2178
      %v2184 = vadd.f32 %v2035, %v2178
      %v2185 = vadd.f32 %v2040, %v2178
      %v2186 = vadd.f32 %v2045, %v2178
      %v2187 = vadd.f32 %v2050, %v2178
      %v2188 = vadd.f32 %v2055, %v2178
      %v2189 = vadd.f32 %v2060, %v2178
      %v2190 = vadd.f32 %v2065, %v2178
      %v2191 = vadd.f32 %v2070, %v2178
      %v2192 = vadd.f32 %v2075, %v2178
      %v2193 = vadd.f32 %v2080, %v2178
      %v2194 = vadd.f32 %v2085, %v2178
      %v2195 = vadd.f32 %v2090, %v2178
      %v2196 = vadd.f32 %v2095, %v2178
      %v2197 = vadd.f32 %v2100, %v2178
      %v2198 = vadd.f32 %v2105, %v2178
      %v2199 = vadd.f32 %v2110, %v2178
      %v2200 = vadd.f32 %v2115, %v2178
      %v2201 = vadd.f32 %v2120, %v2178
      %v2202 = vadd.f32 %v2125, %v2178
      %v2203 = vadd.f32 %v2130, %v2178
      %v2204 = vadd.f32 %v2135, %v2178
      %v2205 = vadd.f32 %v2140, %v2178
      %v2206 = vadd.f32 %v2145, %v2178
      %v2207 = vadd.f32 %v2150, %v2178
      %v2208 = vadd.f32 %v2155, %v2178
      %v2209 = vadd.f32 %v2160, %v2178
      %v2210 = vadd.f32 %v2165, %v2178
      %v2211 = vadd.f32 %v2170, %v2178
      %v2212 = vmax.f32 %v2180, 0.0
      %v2213 = vmax.f32 %v2181, 0.0
      %v2214 = vmax.f32 %v2182, 0.0
      %v2215 = vmax.f32 %v2183, 0.0
      %v2216 = vmax.f32 %v2184, 0.0
      %v2217 = vmax.f32 %v2185, 0.0
      %v2218 = vmax.f32 %v2186, 0.0
      %v2219 = vmax.f32 %v2187, 0.0
      %v2220 = vmax.f32 %v2188, 0.0
      %v2221 = vmax.f32 %v2189, 0.0
      %v2222 = vmax.f32 %v2190, 0.0
      %v2223 = vmax.f32 %v2191, 0.0
      %v2224 = vmax.f32 %v2192, 0.0
      %v2225 = vmax.f32 %v2193, 0.0
      %v2226 = vmax.f32 %v2194, 0.0
      %v2227 = vmax.f32 %v2195, 0.0
      %v2228 = vmax.f32 %v2196, 0.0
      %v2229 = vmax.f32 %v2197, 0.0
      %v2230 = vmax.f32 %v2198, 0.0
      %v2231 = vmax.f32 %v2199, 0.0
      %v2232 = vmax.f32 %v2200, 0.0
      %v2233 = vmax.f32 %v2201, 0.0
      %v2234 = vmax.f32 %v2202, 0.0
      %v2235 = vmax.f32 %v2203, 0.0
      %v2236 = vmax.f32 %v2204, 0.0
      %v2237 = vmax.f32 %v2205, 0.0
      %v2238 = vmax.f32 %v2206, 0.0
      %v2239 = vmax.f32 %v2207, 0.0
      %v2240 = vmax.f32 %v2208, 0.0
      %v2241 = vmax.f32 %v2209, 0.0
      %v2242 = vmax.f32 %v2210, 0.0
      %v2243 = vmax.f32 %v2211, 0.0
      %v2244 = vld [vmem:[#allocation14] sm:$0xff]
      %v2245 = vld [vmem:[#allocation14 + $0x8] sm:$0xff]
      %v2246 = vld [vmem:[#allocation14 + $0x10] sm:$0xff]
      %v2247 = vld [vmem:[#allocation14 + $0x18] sm:$0xff]
      %v2248 = vld [vmem:[#allocation14 + $0x20] sm:$0xff]
      %v2249 = vld [vmem:[#allocation14 + $0x28] sm:$0xff]
      %v2250 = vld [vmem:[#allocation14 + $0x30] sm:$0xff]
      %v2251 = vld [vmem:[#allocation14 + $0x38] sm:$0xff]
      %v2252 = vld [vmem:[#allocation14 + $0x40] sm:$0xff]
      %v2253 = vld [vmem:[#allocation14 + $0x48] sm:$0xff]
      %v2254 = vld [vmem:[#allocation14 + $0x50] sm:$0xff]
      %v2255 = vld [vmem:[#allocation14 + $0x58] sm:$0xff]
      %v2256 = vld [vmem:[#allocation14 + $0x60] sm:$0xff]
      %v2257 = vld [vmem:[#allocation14 + $0x68] sm:$0xff]
      %v2258 = vld [vmem:[#allocation14 + $0x70] sm:$0xff]
      %v2259 = vld [vmem:[#allocation14 + $0x78] sm:$0xff]
      %v2260 = vld [vmem:[%s9] sm:$0x1]
      %v2262 = vlaneseq
      %v2263 = vshrl.u32 %v2262, 7
      %v2264 = vsub.s32 0, %v2263
      %v2265 = vrot.slane %v2260, %v2264
      %2267 = vmatprep.subr.mxu0 0.0
      %2268 = vmatpush1.msra.mxu0 %v2244
      %2269 = vmatprep.subr.mxu0 0.0
      %2270 = vmatpush1.msra.mxu0 %v2245
      %2271 = vmatprep.subr.mxu0 0.0
      %2272 = vmatpush1.msra.mxu0 %v2246
      %2273 = vmatprep.subr.mxu0 0.0
      %2274 = vmatpush1.msra.mxu0 %v2247
      %2275 = vmatprep.subr.mxu0 0.0
      %2276 = vmatpush1.msra.mxu0 %v2248
      %2277 = vmatprep.subr.mxu0 0.0
      %2278 = vmatpush1.msra.mxu0 %v2249
      %2279 = vmatprep.subr.mxu0 0.0
      %2280 = vmatpush1.msra.mxu0 %v2250
      %2281 = vmatprep.subr.mxu0 0.0
      %2282 = vmatpush1.msra.mxu0 %v2251
      %2283 = vmatprep.subr.mxu0 0.0
      %2284 = vmatpush1.msra.mxu0 %v2252
      %2285 = vmatprep.subr.mxu0 0.0
      %2286 = vmatpush1.msra.mxu0 %v2253
      %2287 = vmatprep.subr.mxu0 0.0
      %2288 = vmatpush1.msra.mxu0 %v2254
      %2289 = vmatprep.subr.mxu0 0.0
      %2290 = vmatpush1.msra.mxu0 %v2255
      %2291 = vmatprep.subr.mxu0 0.0
      %2292 = vmatpush1.msra.mxu0 %v2256
      %2293 = vmatprep.subr.mxu0 0.0
      %2294 = vmatpush1.msra.mxu0 %v2257
      %2295 = vmatprep.subr.mxu0 0.0
      %2296 = vmatpush1.msra.mxu0 %v2258
      %2297 = vmatprep.subr.mxu0 0.0
      %2298 = vmatpush1.msra.mxu0 %v2259
      %2299 = vmatprep.subr.mxu0 0.0
      %2300 = vmatpush1.msra.mxu0 0.0
      %2301 = vmatprep.subr.mxu0 0.0
      %2302 = vmatpush1.msra.mxu0 0.0
      %2303 = vmatprep.subr.mxu0 0.0
      %2304 = vmatpush1.msra.mxu0 0.0
      %2305 = vmatprep.subr.mxu0 0.0
      %2306 = vmatpush1.msra.mxu0 0.0
      %2307 = vmatprep.subr.mxu0 0.0
      %2308 = vmatpush1.msra.mxu0 0.0
      %2309 = vmatprep.subr.mxu0 0.0
      %2310 = vmatpush1.msra.mxu0 0.0
      %2311 = vmatprep.subr.mxu0 0.0
      %2312 = vmatpush1.msra.mxu0 0.0
      %2313 = vmatprep.subr.mxu0 0.0
      %2314 = vmatpush1.msra.mxu0 0.0
      %2315 = vmatprep.subr.mxu0 0.0
      %2316 = vmatpush1.msra.mxu0 0.0
      %2317 = vmatprep.subr.mxu0 0.0
      %2318 = vmatpush1.msra.mxu0 0.0
      %2319 = vmatprep.subr.mxu0 0.0
      %2320 = vmatpush1.msra.mxu0 0.0
      %2321 = vmatprep.subr.mxu0 0.0
      %2322 = vmatpush1.msra.mxu0 0.0
      %2323 = vmatprep.subr.mxu0 0.0
      %2324 = vmatpush1.msra.mxu0 0.0
      %2325 = vmatprep.subr.mxu0 0.0
      %2326 = vmatpush1.msra.mxu0 0.0
      %2327 = vmatprep.subr.mxu0 0.0
      %2328 = vmatpush1.msra.mxu0 0.0
      %2329 = vmatprep.subr.mxu0 0.0
      %2330 = vmatpush1.msra.mxu0 0.0
      %2331 = vmatprep.mubr.f32.mxu0 0.0
      %2332 = vmatmul.mubr.f32.gmra.mrb[0].mxu0 %v2212
      %v2333 = vpop.f32.mrb[0].mxu0
      %v2334 = vadd.f32 %v2265, %v2333
      %v2335 = vpop.f32.mrb[0].mxu0
      %2336 = vmatprep.mubr.f32.mxu0 0.0
      %2337 = vmatmul.mubr.f32.gmra.mrb[0].mxu0 %v2213
      %v2338 = vpop.f32.mrb[0].mxu0
      %v2339 = vadd.f32 %v2265, %v2338
      %v2340 = vpop.f32.mrb[0].mxu0
      %2341 = vmatprep.mubr.f32.mxu0 0.0
      %2342 = vmatmul.mubr.f32.gmra.mrb[0].mxu0 %v2214
      %v2343 = vpop.f32.mrb[0].mxu0
      %v2344 = vadd.f32 %v2265, %v2343
      %v2345 = vpop.f32.mrb[0].mxu0
      %2346 = vmatprep.mubr.f32.mxu0 0.0
      %2347 = vmatmul.mubr.f32.gmra.mrb[0].mxu0 %v2215
      %v2348 = vpop.f32.mrb[0].mxu0
      %v2349 = vadd.f32 %v2265, %v2348
      %v2350 = vpop.f32.mrb[0].mxu0
      %2351 = vmatprep.mubr.f32.mxu0 0.0
      %2352 = vmatmul.mubr.f32.gmra.mrb[0].mxu0 %v2216
      %v2353 = vpop.f32.mrb[0].mxu0
      %v2354 = vadd.f32 %v2265, %v2353
      %v2355 = vpop.f32.mrb[0].mxu0
      %2356 = vmatprep.mubr.f32.mxu0 0.0
      %2357 = vmatmul.mubr.f32.gmra.mrb[0].mxu0 %v2217
      %v2358 = vpop.f32.mrb[0].mxu0
      %v2359 = vadd.f32 %v2265, %v2358
      %v2360 = vpop.f32.mrb[0].mxu0
      %2361 = vmatprep.mubr.f32.mxu0 0.0
      %2362 = vmatmul.mubr.f32.gmra.mrb[0].mxu0 %v2218
      %v2363 = vpop.f32.mrb[0].mxu0
      %v2364 = vadd.f32 %v2265, %v2363
      %v2365 = vpop.f32.mrb[0].mxu0
      %2366 = vmatprep.mubr.f32.mxu0 0.0
      %2367 = vmatmul.mubr.f32.gmra.mrb[0].mxu0 %v2219
      %v2368 = vpop.f32.mrb[0].mxu0
      %v2369 = vadd.f32 %v2265, %v2368
      %v2370 = vpop.f32.mrb[0].mxu0
      %2371 = vmatprep.mubr.f32.mxu0 0.0
      %2372 = vmatmul.mubr.f32.gmra.mrb[0].mxu0 %v2220
      %v2373 = vpop.f32.mrb[0].mxu0
      %v2374 = vadd.f32 %v2265, %v2373
      %v2375 = vpop.f32.mrb[0].mxu0
      %2376 = vmatprep.mubr.f32.mxu0 0.0
      %2377 = vmatmul.mubr.f32.gmra.mrb[0].mxu0 %v2221
      %v2378 = vpop.f32.mrb[0].mxu0
      %v2379 = vadd.f32 %v2265, %v2378
      %v2380 = vpop.f32.mrb[0].mxu0
      %2381 = vmatprep.mubr.f32.mxu0 0.0
      %2382 = vmatmul.mubr.f32.gmra.mrb[0].mxu0 %v2222
      %v2383 = vpop.f32.mrb[0].mxu0
      %v2384 = vadd.f32 %v2265, %v2383
      %v2385 = vpop.f32.mrb[0].mxu0
      %2386 = vmatprep.mubr.f32.mxu0 0.0
      %2387 = vmatmul.mubr.f32.gmra.mrb[0].mxu0 %v2223
      %v2388 = vpop.f32.mrb[0].mxu0
      %v2389 = vadd.f32 %v2265, %v2388
      %v2390 = vpop.f32.mrb[0].mxu0
      %2391 = vmatprep.mubr.f32.mxu0 0.0
      %2392 = vmatmul.mubr.f32.gmra.mrb[0].mxu0 %v2224
      %v2393 = vpop.f32.mrb[0].mxu0
      %v2394 = vadd.f32 %v2265, %v2393
      %v2395 = vpop.f32.mrb[0].mxu0
      %2396 = vmatprep.mubr.f32.mxu0 0.0
      %2397 = vmatmul.mubr.f32.gmra.mrb[0].mxu0 %v2225
      %v2398 = vpop.f32.mrb[0].mxu0
      %v2399 = vadd.f32 %v2265, %v2398
      %v2400 = vpop.f32.mrb[0].mxu0
      %2401 = vmatprep.mubr.f32.mxu0 0.0
      %2402 = vmatmul.mubr.f32.gmra.mrb[0].mxu0 %v2226
      %v2403 = vpop.f32.mrb[0].mxu0
      %v2404 = vadd.f32 %v2265, %v2403
      %v2405 = vpop.f32.mrb[0].mxu0
      %2406 = vmatprep.mubr.f32.mxu0 0.0
      %2407 = vmatmul.mubr.f32.gmra.mrb[0].mxu0 %v2227
      %v2408 = vpop.f32.mrb[0].mxu0
      %v2409 = vadd.f32 %v2265, %v2408
      %v2410 = vpop.f32.mrb[0].mxu0
      %2411 = vmatprep.mubr.f32.mxu0 0.0
      %2412 = vmatmul.mubr.f32.gmra.mrb[0].mxu0 %v2228
      %v2413 = vpop.f32.mrb[0].mxu0
      %v2414 = vadd.f32 %v2265, %v2413
      %v2415 = vpop.f32.mrb[0].mxu0
      %2416 = vmatprep.mubr.f32.mxu0 0.0
      %2417 = vmatmul.mubr.f32.gmra.mrb[0].mxu0 %v2229
      %v2418 = vpop.f32.mrb[0].mxu0
      %v2419 = vadd.f32 %v2265, %v2418
      %v2420 = vpop.f32.mrb[0].mxu0
      %2421 = vmatprep.mubr.f32.mxu0 0.0
      %2422 = vmatmul.mubr.f32.gmra.mrb[0].mxu0 %v2230
      %v2423 = vpop.f32.mrb[0].mxu0
      %v2424 = vadd.f32 %v2265, %v2423
      %v2425 = vpop.f32.mrb[0].mxu0
      %2426 = vmatprep.mubr.f32.mxu0 0.0
      %2427 = vmatmul.mubr.f32.gmra.mrb[0].mxu0 %v2231
      %v2428 = vpop.f32.mrb[0].mxu0
      %v2429 = vadd.f32 %v2265, %v2428
      %v2430 = vpop.f32.mrb[0].mxu0
      %2431 = vmatprep.mubr.f32.mxu0 0.0
      %2432 = vmatmul.mubr.f32.gmra.mrb[0].mxu0 %v2232
      %v2433 = vpop.f32.mrb[0].mxu0
      %v2434 = vadd.f32 %v2265, %v2433
      %v2435 = vpop.f32.mrb[0].mxu0
      %2436 = vmatprep.mubr.f32.mxu0 0.0
      %2437 = vmatmul.mubr.f32.gmra.mrb[0].mxu0 %v2233
      %v2438 = vpop.f32.mrb[0].mxu0
      %v2439 = vadd.f32 %v2265, %v2438
      %v2440 = vpop.f32.mrb[0].mxu0
      %2441 = vmatprep.mubr.f32.mxu0 0.0
      %2442 = vmatmul.mubr.f32.gmra.mrb[0].mxu0 %v2234
      %v2443 = vpop.f32.mrb[0].mxu0
      %v2444 = vadd.f32 %v2265, %v2443
      %v2445 = vpop.f32.mrb[0].mxu0
      %2446 = vmatprep.mubr.f32.mxu0 0.0
      %2447 = vmatmul.mubr.f32.gmra.mrb[0].mxu0 %v2235
      %v2448 = vpop.f32.mrb[0].mxu0
      %v2449 = vadd.f32 %v2265, %v2448
      %v2450 = vpop.f32.mrb[0].mxu0
      %2451 = vmatprep.mubr.f32.mxu0 0.0
      %2452 = vmatmul.mubr.f32.gmra.mrb[0].mxu0 %v2236
      %v2453 = vpop.f32.mrb[0].mxu0
      %v2454 = vadd.f32 %v2265, %v2453
      %v2455 = vpop.f32.mrb[0].mxu0
      %2456 = vmatprep.mubr.f32.mxu0 0.0
      %2457 = vmatmul.mubr.f32.gmra.mrb[0].mxu0 %v2237
      %v2458 = vpop.f32.mrb[0].mxu0
      %v2459 = vadd.f32 %v2265, %v2458
      %v2460 = vpop.f32.mrb[0].mxu0
      %2461 = vmatprep.mubr.f32.mxu0 0.0
      %2462 = vmatmul.mubr.f32.gmra.mrb[0].mxu0 %v2238
      %v2463 = vpop.f32.mrb[0].mxu0
      %v2464 = vadd.f32 %v2265, %v2463
      %v2465 = vpop.f32.mrb[0].mxu0
      %2466 = vmatprep.mubr.f32.mxu0 0.0
      %2467 = vmatmul.mubr.f32.gmra.mrb[0].mxu0 %v2239
      %v2468 = vpop.f32.mrb[0].mxu0
      %v2469 = vadd.f32 %v2265, %v2468
      %v2470 = vpop.f32.mrb[0].mxu0
      %2471 = vmatprep.mubr.f32.mxu0 0.0
      %2472 = vmatmul.mubr.f32.gmra.mrb[0].mxu0 %v2240
      %v2473 = vpop.f32.mrb[0].mxu0
      %v2474 = vadd.f32 %v2265, %v2473
      %v2475 = vpop.f32.mrb[0].mxu0
      %2476 = vmatprep.mubr.f32.mxu0 0.0
      %2477 = vmatmul.mubr.f32.gmra.mrb[0].mxu0 %v2241
      %v2478 = vpop.f32.mrb[0].mxu0
      %v2479 = vadd.f32 %v2265, %v2478
      %v2480 = vpop.f32.mrb[0].mxu0
      %2481 = vmatprep.mubr.f32.mxu0 0.0
      %2482 = vmatmul.mubr.f32.gmra.mrb[0].mxu0 %v2242
      %v2483 = vpop.f32.mrb[0].mxu0
      %v2484 = vadd.f32 %v2265, %v2483
      %v2485 = vpop.f32.mrb[0].mxu0
      %2486 = vmatprep.mubr.f32.mxu0 0.0
      %2487 = vmatmul.mubr.f32.gmra.mrb[0].mxu0 %v2243
      %v2488 = vpop.f32.mrb[0].mxu0
      %v2489 = vadd.f32 %v2265, %v2488
      %v2490 = vpop.f32.mrb[0].mxu0
      %2491 = vdwg.mxu0
      %v2492 = vmax.f32 %v2334, 0.0
      %v2493 = vmax.f32 %v2339, 0.0
      %v2494 = vmax.f32 %v2344, 0.0
      %v2495 = vmax.f32 %v2349, 0.0
      %v2496 = vmax.f32 %v2354, 0.0
      %v2497 = vmax.f32 %v2359, 0.0
      %v2498 = vmax.f32 %v2364, 0.0
      %v2499 = vmax.f32 %v2369, 0.0
      %v2500 = vmax.f32 %v2374, 0.0
      %v2501 = vmax.f32 %v2379, 0.0
      %v2502 = vmax.f32 %v2384, 0.0
      %v2503 = vmax.f32 %v2389, 0.0
      %v2504 = vmax.f32 %v2394, 0.0
      %v2505 = vmax.f32 %v2399, 0.0
      %v2506 = vmax.f32 %v2404, 0.0
      %v2507 = vmax.f32 %v2409, 0.0
      %v2508 = vmax.f32 %v2414, 0.0
      %v2509 = vmax.f32 %v2419, 0.0
      %v2510 = vmax.f32 %v2424, 0.0
      %v2511 = vmax.f32 %v2429, 0.0
      %v2512 = vmax.f32 %v2434, 0.0
      %v2513 = vmax.f32 %v2439, 0.0
      %v2514 = vmax.f32 %v2444, 0.0
      %v2515 = vmax.f32 %v2449, 0.0
      %v2516 = vmax.f32 %v2454, 0.0
      %v2517 = vmax.f32 %v2459, 0.0
      %v2518 = vmax.f32 %v2464, 0.0
      %v2519 = vmax.f32 %v2469, 0.0
      %v2520 = vmax.f32 %v2474, 0.0
      %v2521 = vmax.f32 %v2479, 0.0
      %v2522 = vmax.f32 %v2484, 0.0
      %v2523 = vmax.f32 %v2489, 0.0
      %v2524 = vld [vmem:[#allocation15] sm:$0xff]
      %v2525 = vld [vmem:[#allocation15 + $0x8] sm:$0xff]
      %v2526 = vld [vmem:[#allocation15 + $0x10] sm:$0xff]
      %v2527 = vld [vmem:[#allocation15 + $0x18] sm:$0xff]
      %v2528 = vld [vmem:[#allocation15 + $0x20] sm:$0xff]
      %v2529 = vld [vmem:[#allocation15 + $0x28] sm:$0xff]
      %v2530 = vld [vmem:[#allocation15 + $0x30] sm:$0xff]
      %v2531 = vld [vmem:[#allocation15 + $0x38] sm:$0xff]
      %v2532 = vld [vmem:[#allocation15 + $0x40] sm:$0xff]
      %v2533 = vld [vmem:[#allocation15 + $0x48] sm:$0xff]
      %v2534 = vld [vmem:[#allocation15 + $0x50] sm:$0xff]
      %v2535 = vld [vmem:[#allocation15 + $0x58] sm:$0xff]
      %v2536 = vld [vmem:[#allocation15 + $0x60] sm:$0xff]
      %v2537 = vld [vmem:[#allocation15 + $0x68] sm:$0xff]
      %v2538 = vld [vmem:[#allocation15 + $0x70] sm:$0xff]
      %v2539 = vld [vmem:[#allocation15 + $0x78] sm:$0xff]
      %v2540 = vld [vmem:[%s11] sm:$0x1]
      %v2542 = vlaneseq
      %v2543 = vshrl.u32 %v2542, 7
      %v2544 = vsub.s32 0, %v2543
      %v2545 = vrot.slane %v2540, %v2544
      %2547 = vmatprep.subr.mxu0 0.0
      %2548 = vmatpush1.msra.mxu0 %v2524
      %2549 = vmatprep.subr.mxu0 0.0
      %2550 = vmatpush1.msra.mxu0 %v2525
      %2551 = vmatprep.subr.mxu0 0.0
      %2552 = vmatpush1.msra.mxu0 %v2526
      %2553 = vmatprep.subr.mxu0 0.0
      %2554 = vmatpush1.msra.mxu0 %v2527
      %2555 = vmatprep.subr.mxu0 0.0
      %2556 = vmatpush1.msra.mxu0 %v2528
      %2557 = vmatprep.subr.mxu0 0.0
      %2558 = vmatpush1.msra.mxu0 %v2529
      %2559 = vmatprep.subr.mxu0 0.0
      %2560 = vmatpush1.msra.mxu0 %v2530
      %2561 = vmatprep.subr.mxu0 0.0
      %2562 = vmatpush1.msra.mxu0 %v2531
      %2563 = vmatprep.subr.mxu0 0.0
      %2564 = vmatpush1.msra.mxu0 %v2532
      %2565 = vmatprep.subr.mxu0 0.0
      %2566 = vmatpush1.msra.mxu0 %v2533
      %2567 = vmatprep.subr.mxu0 0.0
      %2568 = vmatpush1.msra.mxu0 %v2534
      %2569 = vmatprep.subr.mxu0 0.0
      %2570 = vmatpush1.msra.mxu0 %v2535
      %2571 = vmatprep.subr.mxu0 0.0
      %2572 = vmatpush1.msra.mxu0 %v2536
      %2573 = vmatprep.subr.mxu0 0.0
      %2574 = vmatpush1.msra.mxu0 %v2537
      %2575 = vmatprep.subr.mxu0 0.0
      %2576 = vmatpush1.msra.mxu0 %v2538
      %2577 = vmatprep.subr.mxu0 0.0
      %2578 = vmatpush1.msra.mxu0 %v2539
      %2579 = vmatprep.subr.mxu0 0.0
      %2580 = vmatpush1.msra.mxu0 0.0
      %2581 = vmatprep.subr.mxu0 0.0
      %2582 = vmatpush1.msra.mxu0 0.0
      %2583 = vmatprep.subr.mxu0 0.0
      %2584 = vmatpush1.msra.mxu0 0.0
      %2585 = vmatprep.subr.mxu0 0.0
      %2586 = vmatpush1.msra.mxu0 0.0
      %2587 = vmatprep.subr.mxu0 0.0
      %2588 = vmatpush1.msra.mxu0 0.0
      %2589 = vmatprep.subr.mxu0 0.0
      %2590 = vmatpush1.msra.mxu0 0.0
      %2591 = vmatprep.subr.mxu0 0.0
      %2592 = vmatpush1.msra.mxu0 0.0
      %2593 = vmatprep.subr.mxu0 0.0
      %2594 = vmatpush1.msra.mxu0 0.0
      %2595 = vmatprep.subr.mxu0 0.0
      %2596 = vmatpush1.msra.mxu0 0.0
      %2597 = vmatprep.subr.mxu0 0.0
      %2598 = vmatpush1.msra.mxu0 0.0
      %2599 = vmatprep.subr.mxu0 0.0
      %2600 = vmatpush1.msra.mxu0 0.0
      %2601 = vmatprep.subr.mxu0 0.0
      %2602 = vmatpush1.msra.mxu0 0.0
      %2603 = vmatprep.subr.mxu0 0.0
      %2604 = vmatpush1.msra.mxu0 0.0
      %2605 = vmatprep.subr.mxu0 0.0
      %2606 = vmatpush1.msra.mxu0 0.0
      %2607 = vmatprep.subr.mxu0 0.0
      %2608 = vmatpush1.msra.mxu0 0.0
      %2609 = vmatprep.subr.mxu0 0.0
      %2610 = vmatpush1.msra.mxu0 0.0
      %2611 = vmatprep.mubr.f32.mxu0 0.0
      %2612 = vmatmul.mubr.f32.gmra.mrb[0].mxu0 %v2492
      %v2613 = vpop.f32.mrb[0].mxu0
      %v2614 = vadd.f32 %v2545, %v2613
      %v2615 = vpop.f32.mrb[0].mxu0
      %2616 = vmatprep.mubr.f32.mxu0 0.0
      %2617 = vmatmul.mubr.f32.gmra.mrb[0].mxu0 %v2493
      %v2618 = vpop.f32.mrb[0].mxu0
      %v2619 = vadd.f32 %v2545, %v2618
      %v2620 = vpop.f32.mrb[0].mxu0
      %2621 = vmatprep.mubr.f32.mxu0 0.0
      %2622 = vmatmul.mubr.f32.gmra.mrb[0].mxu0 %v2494
      %v2623 = vpop.f32.mrb[0].mxu0
      %v2624 = vadd.f32 %v2545, %v2623
      %v2625 = vpop.f32.mrb[0].mxu0
      %2626 = vmatprep.mubr.f32.mxu0 0.0
      %2627 = vmatmul.mubr.f32.gmra.mrb[0].mxu0 %v2495
      %v2628 = vpop.f32.mrb[0].mxu0
      %v2629 = vadd.f32 %v2545, %v2628
      %v2630 = vpop.f32.mrb[0].mxu0
      %2631 = vmatprep.mubr.f32.mxu0 0.0
      %2632 = vmatmul.mubr.f32.gmra.mrb[0].mxu0 %v2496
      %v2633 = vpop.f32.mrb[0].mxu0
      %v2634 = vadd.f32 %v2545, %v2633
      %v2635 = vpop.f32.mrb[0].mxu0
      %2636 = vmatprep.mubr.f32.mxu0 0.0
      %2637 = vmatmul.mubr.f32.gmra.mrb[0].mxu0 %v2497
      %v2638 = vpop.f32.mrb[0].mxu0
      %v2639 = vadd.f32 %v2545, %v2638
      %v2640 = vpop.f32.mrb[0].mxu0
      %2641 = vmatprep.mubr.f32.mxu0 0.0
      %2642 = vmatmul.mubr.f32.gmra.mrb[0].mxu0 %v2498
      %v2643 = vpop.f32.mrb[0].mxu0
      %v2644 = vadd.f32 %v2545, %v2643
      %v2645 = vpop.f32.mrb[0].mxu0
      %2646 = vmatprep.mubr.f32.mxu0 0.0
      %2647 = vmatmul.mubr.f32.gmra.mrb[0].mxu0 %v2499
      %v2648 = vpop.f32.mrb[0].mxu0
      %v2649 = vadd.f32 %v2545, %v2648
      %v2650 = vpop.f32.mrb[0].mxu0
      %2651 = vmatprep.mubr.f32.mxu0 0.0
      %2652 = vmatmul.mubr.f32.gmra.mrb[0].mxu0 %v2500
      %v2653 = vpop.f32.mrb[0].mxu0
      %v2654 = vadd.f32 %v2545, %v2653
      %v2655 = vpop.f32.mrb[0].mxu0
      %2656 = vmatprep.mubr.f32.mxu0 0.0
      %2657 = vmatmul.mubr.f32.gmra.mrb[0].mxu0 %v2501
      %v2658 = vpop.f32.mrb[0].mxu0
      %v2659 = vadd.f32 %v2545, %v2658
      %v2660 = vpop.f32.mrb[0].mxu0
      %2661 = vmatprep.mubr.f32.mxu0 0.0
      %2662 = vmatmul.mubr.f32.gmra.mrb[0].mxu0 %v2502
      %v2663 = vpop.f32.mrb[0].mxu0
      %v2664 = vadd.f32 %v2545, %v2663
      %v2665 = vpop.f32.mrb[0].mxu0
      %2666 = vmatprep.mubr.f32.mxu0 0.0
      %2667 = vmatmul.mubr.f32.gmra.mrb[0].mxu0 %v2503
      %v2668 = vpop.f32.mrb[0].mxu0
      %v2669 = vadd.f32 %v2545, %v2668
      %v2670 = vpop.f32.mrb[0].mxu0
      %2671 = vmatprep.mubr.f32.mxu0 0.0
      %2672 = vmatmul.mubr.f32.gmra.mrb[0].mxu0 %v2504
      %v2673 = vpop.f32.mrb[0].mxu0
      %v2674 = vadd.f32 %v2545, %v2673
      %v2675 = vpop.f32.mrb[0].mxu0
      %2676 = vmatprep.mubr.f32.mxu0 0.0
      %2677 = vmatmul.mubr.f32.gmra.mrb[0].mxu0 %v2505
      %v2678 = vpop.f32.mrb[0].mxu0
      %v2679 = vadd.f32 %v2545, %v2678
      %v2680 = vpop.f32.mrb[0].mxu0
      %2681 = vmatprep.mubr.f32.mxu0 0.0
      %2682 = vmatmul.mubr.f32.gmra.mrb[0].mxu0 %v2506
      %v2683 = vpop.f32.mrb[0].mxu0
      %v2684 = vadd.f32 %v2545, %v2683
      %v2685 = vpop.f32.mrb[0].mxu0
      %2686 = vmatprep.mubr.f32.mxu0 0.0
      %2687 = vmatmul.mubr.f32.gmra.mrb[0].mxu0 %v2507
      %v2688 = vpop.f32.mrb[0].mxu0
      %v2689 = vadd.f32 %v2545, %v2688
      %v2690 = vpop.f32.mrb[0].mxu0
      %2691 = vmatprep.mubr.f32.mxu0 0.0
      %2692 = vmatmul.mubr.f32.gmra.mrb[0].mxu0 %v2508
      %v2693 = vpop.f32.mrb[0].mxu0
      %v2694 = vadd.f32 %v2545, %v2693
      %v2695 = vpop.f32.mrb[0].mxu0
      %2696 = vmatprep.mubr.f32.mxu0 0.0
      %2697 = vmatmul.mubr.f32.gmra.mrb[0].mxu0 %v2509
      %v2698 = vpop.f32.mrb[0].mxu0
      %v2699 = vadd.f32 %v2545, %v2698
      %v2700 = vpop.f32.mrb[0].mxu0
      %2701 = vmatprep.mubr.f32.mxu0 0.0
      %2702 = vmatmul.mubr.f32.gmra.mrb[0].mxu0 %v2510
      %v2703 = vpop.f32.mrb[0].mxu0
      %v2704 = vadd.f32 %v2545, %v2703
      %v2705 = vpop.f32.mrb[0].mxu0
      %2706 = vmatprep.mubr.f32.mxu0 0.0
      %2707 = vmatmul.mubr.f32.gmra.mrb[0].mxu0 %v2511
      %v2708 = vpop.f32.mrb[0].mxu0
      %v2709 = vadd.f32 %v2545, %v2708
      %v2710 = vpop.f32.mrb[0].mxu0
      %2711 = vmatprep.mubr.f32.mxu0 0.0
      %2712 = vmatmul.mubr.f32.gmra.mrb[0].mxu0 %v2512
      %v2713 = vpop.f32.mrb[0].mxu0
      %v2714 = vadd.f32 %v2545, %v2713
      %v2715 = vpop.f32.mrb[0].mxu0
      %2716 = vmatprep.mubr.f32.mxu0 0.0
      %2717 = vmatmul.mubr.f32.gmra.mrb[0].mxu0 %v2513
      %v2718 = vpop.f32.mrb[0].mxu0
      %v2719 = vadd.f32 %v2545, %v2718
      %v2720 = vpop.f32.mrb[0].mxu0
      %2721 = vmatprep.mubr.f32.mxu0 0.0
      %2722 = vmatmul.mubr.f32.gmra.mrb[0].mxu0 %v2514
      %v2723 = vpop.f32.mrb[0].mxu0
      %v2724 = vadd.f32 %v2545, %v2723
      %v2725 = vpop.f32.mrb[0].mxu0
      %2726 = vmatprep.mubr.f32.mxu0 0.0
      %2727 = vmatmul.mubr.f32.gmra.mrb[0].mxu0 %v2515
      %v2728 = vpop.f32.mrb[0].mxu0
      %v2729 = vadd.f32 %v2545, %v2728
      %v2730 = vpop.f32.mrb[0].mxu0
      %2731 = vmatprep.mubr.f32.mxu0 0.0
      %2732 = vmatmul.mubr.f32.gmra.mrb[0].mxu0 %v2516
      %v2733 = vpop.f32.mrb[0].mxu0
      %v2734 = vadd.f32 %v2545, %v2733
      %v2735 = vpop.f32.mrb[0].mxu0
      %2736 = vmatprep.mubr.f32.mxu0 0.0
      %2737 = vmatmul.mubr.f32.gmra.mrb[0].mxu0 %v2517
      %v2738 = vpop.f32.mrb[0].mxu0
      %v2739 = vadd.f32 %v2545, %v2738
      %v2740 = vpop.f32.mrb[0].mxu0
      %2741 = vmatprep.mubr.f32.mxu0 0.0
      %2742 = vmatmul.mubr.f32.gmra.mrb[0].mxu0 %v2518
      %v2743 = vpop.f32.mrb[0].mxu0
      %v2744 = vadd.f32 %v2545, %v2743
      %v2745 = vpop.f32.mrb[0].mxu0
      %2746 = vmatprep.mubr.f32.mxu0 0.0
      %2747 = vmatmul.mubr.f32.gmra.mrb[0].mxu0 %v2519
      %v2748 = vpop.f32.mrb[0].mxu0
      %v2749 = vadd.f32 %v2545, %v2748
      %v2750 = vpop.f32.mrb[0].mxu0
      %2751 = vmatprep.mubr.f32.mxu0 0.0
      %2752 = vmatmul.mubr.f32.gmra.mrb[0].mxu0 %v2520
      %v2753 = vpop.f32.mrb[0].mxu0
      %v2754 = vadd.f32 %v2545, %v2753
      %v2755 = vpop.f32.mrb[0].mxu0
      %2756 = vmatprep.mubr.f32.mxu0 0.0
      %2757 = vmatmul.mubr.f32.gmra.mrb[0].mxu0 %v2521
      %v2758 = vpop.f32.mrb[0].mxu0
      %v2759 = vadd.f32 %v2545, %v2758
      %v2760 = vpop.f32.mrb[0].mxu0
      %2761 = vmatprep.mubr.f32.mxu0 0.0
      %2762 = vmatmul.mubr.f32.gmra.mrb[0].mxu0 %v2522
      %v2763 = vpop.f32.mrb[0].mxu0
      %v2764 = vadd.f32 %v2545, %v2763
      %v2765 = vpop.f32.mrb[0].mxu0
      %2766 = vmatprep.mubr.f32.mxu0 0.0
      %2767 = vmatmul.mubr.f32.gmra.mrb[0].mxu0 %v2523
      %v2768 = vpop.f32.mrb[0].mxu0
      %v2769 = vadd.f32 %v2545, %v2768
      %v2770 = vpop.f32.mrb[0].mxu0
      %2771 = vdwg.mxu0
      %2772 = vadd.xlane.f32.xlu0 %v2614
      %v2773 = vpop.xlane.xlu0 %2772
      %2774 = vadd.xlane.f32.xlu0 %v2619
      %v2775 = vpop.xlane.xlu0 %2774
      %2776 = vadd.xlane.f32.xlu0 %v2624
      %v2777 = vpop.xlane.xlu0 %2776
      %2778 = vadd.xlane.f32.xlu0 %v2629
      %v2779 = vpop.xlane.xlu0 %2778
      %2780 = vadd.xlane.f32.xlu0 %v2634
      %v2781 = vpop.xlane.xlu0 %2780
      %2782 = vadd.xlane.f32.xlu0 %v2639
      %v2783 = vpop.xlane.xlu0 %2782
      %2784 = vadd.xlane.f32.xlu0 %v2644
      %v2785 = vpop.xlane.xlu0 %2784
      %2786 = vadd.xlane.f32.xlu0 %v2649
      %v2787 = vpop.xlane.xlu0 %2786
      %2788 = vadd.xlane.f32.xlu0 %v2654
      %v2789 = vpop.xlane.xlu0 %2788
      %2790 = vadd.xlane.f32.xlu0 %v2659
      %v2791 = vpop.xlane.xlu0 %2790
      %2792 = vadd.xlane.f32.xlu0 %v2664
      %v2793 = vpop.xlane.xlu0 %2792
      %2794 = vadd.xlane.f32.xlu0 %v2669
      %v2795 = vpop.xlane.xlu0 %2794
      %2796 = vadd.xlane.f32.xlu0 %v2674
      %v2797 = vpop.xlane.xlu0 %2796
      %2798 = vadd.xlane.f32.xlu0 %v2679
      %v2799 = vpop.xlane.xlu0 %2798
      %2800 = vadd.xlane.f32.xlu0 %v2684
      %v2801 = vpop.xlane.xlu0 %2800
      %2802 = vadd.xlane.f32.xlu0 %v2689
      %v2803 = vpop.xlane.xlu0 %2802
      %2804 = vadd.xlane.f32.xlu0 %v2694
      %v2805 = vpop.xlane.xlu0 %2804
      %2806 = vadd.xlane.f32.xlu0 %v2699
      %v2807 = vpop.xlane.xlu0 %2806
      %2808 = vadd.xlane.f32.xlu0 %v2704
      %v2809 = vpop.xlane.xlu0 %2808
      %2810 = vadd.xlane.f32.xlu0 %v2709
      %v2811 = vpop.xlane.xlu0 %2810
      %2812 = vadd.xlane.f32.xlu0 %v2714
      %v2813 = vpop.xlane.xlu0 %2812
      %2814 = vadd.xlane.f32.xlu0 %v2719
      %v2815 = vpop.xlane.xlu0 %2814
      %2816 = vadd.xlane.f32.xlu0 %v2724
      %v2817 = vpop.xlane.xlu0 %2816
      %2818 = vadd.xlane.f32.xlu0 %v2729
      %v2819 = vpop.xlane.xlu0 %2818
      %2820 = vadd.xlane.f32.xlu0 %v2734
      %v2821 = vpop.xlane.xlu0 %2820
      %2822 = vadd.xlane.f32.xlu0 %v2739
      %v2823 = vpop.xlane.xlu0 %2822
      %2824 = vadd.xlane.f32.xlu0 %v2744
      %v2825 = vpop.xlane.xlu0 %2824
      %2826 = vadd.xlane.f32.xlu0 %v2749
      %v2827 = vpop.xlane.xlu0 %2826
      %2828 = vadd.xlane.f32.xlu0 %v2754
      %v2829 = vpop.xlane.xlu0 %2828
      %2830 = vadd.xlane.f32.xlu0 %v2759
      %v2831 = vpop.xlane.xlu0 %2830
      %2832 = vadd.xlane.f32.xlu0 %v2764
      %v2833 = vpop.xlane.xlu0 %2832
      %2834 = vadd.xlane.f32.xlu0 %v2769
      %v2835 = vpop.xlane.xlu0 %2834
      %v2836 = vrcp.pop 128.0
      %v2837 = vmul.f32 %v2773, %v2836
      %v2838 = vmul.f32 %v2775, %v2836
      %v2839 = vmul.f32 %v2777, %v2836
      %v2840 = vmul.f32 %v2779, %v2836
      %v2841 = vmul.f32 %v2781, %v2836
      %v2842 = vmul.f32 %v2783, %v2836
      %v2843 = vmul.f32 %v2785, %v2836
      %v2844 = vmul.f32 %v2787, %v2836
      %v2845 = vmul.f32 %v2789, %v2836
      %v2846 = vmul.f32 %v2791, %v2836
      %v2847 = vmul.f32 %v2793, %v2836
      %v2848 = vmul.f32 %v2795, %v2836
      %v2849 = vmul.f32 %v2797, %v2836
      %v2850 = vmul.f32 %v2799, %v2836
      %v2851 = vmul.f32 %v2801, %v2836
      %v2852 = vmul.f32 %v2803, %v2836
      %v2853 = vmul.f32 %v2805, %v2836
      %v2854 = vmul.f32 %v2807, %v2836
      %v2855 = vmul.f32 %v2809, %v2836
      %v2856 = vmul.f32 %v2811, %v2836
      %v2857 = vmul.f32 %v2813, %v2836
      %v2858 = vmul.f32 %v2815, %v2836
      %v2859 = vmul.f32 %v2817, %v2836
      %v2860 = vmul.f32 %v2819, %v2836
      %v2861 = vmul.f32 %v2821, %v2836
      %v2862 = vmul.f32 %v2823, %v2836
      %v2863 = vmul.f32 %v2825, %v2836
      %v2864 = vmul.f32 %v2827, %v2836
      %v2865 = vmul.f32 %v2829, %v2836
      %v2866 = vmul.f32 %v2831, %v2836
      %v2867 = vmul.f32 %v2833, %v2836
      %v2868 = vmul.f32 %v2835, %v2836
      %v2869 = vsub.f32 %v2614, %v2837
      %v2870 = vsub.f32 %v2619, %v2838
      %v2871 = vsub.f32 %v2624, %v2839
      %v2872 = vsub.f32 %v2629, %v2840
      %v2873 = vsub.f32 %v2634, %v2841
      %v2874 = vsub.f32 %v2639, %v2842
      %v2875 = vsub.f32 %v2644, %v2843
      %v2876 = vsub.f32 %v2649, %v2844
      %v2877 = vsub.f32 %v2654, %v2845
      %v2878 = vsub.f32 %v2659, %v2846
      %v2879 = vsub.f32 %v2664, %v2847
      %v2880 = vsub.f32 %v2669, %v2848
      %v2881 = vsub.f32 %v2674, %v2849
      %v2882 = vsub.f32 %v2679, %v2850
      %v2883 = vsub.f32 %v2684, %v2851
      %v2884 = vsub.f32 %v2689, %v2852
      %v2885 = vsub.f32 %v2694, %v2853
      %v2886 = vsub.f32 %v2699, %v2854
      %v2887 = vsub.f32 %v2704, %v2855
      %v2888 = vsub.f32 %v2709, %v2856
      %v2889 = vsub.f32 %v2714, %v2857
      %v2890 = vsub.f32 %v2719, %v2858
      %v2891 = vsub.f32 %v2724, %v2859
      %v2892 = vsub.f32 %v2729, %v2860
      %v2893 = vsub.f32 %v2734, %v2861
      %v2894 = vsub.f32 %v2739, %v2862
      %v2895 = vsub.f32 %v2744, %v2863
      %v2896 = vsub.f32 %v2749, %v2864
      %v2897 = vsub.f32 %v2754, %v2865
      %v2898 = vsub.f32 %v2759, %v2866
      %v2899 = vsub.f32 %v2764, %v2867
      %v2900 = vsub.f32 %v2769, %v2868
      %v2901 = vmul.f32 %v2869, %v2869
      %v2902 = vmul.f32 %v2870, %v2870
      %v2903 = vmul.f32 %v2871, %v2871
      %v2904 = vmul.f32 %v2872, %v2872
      %v2905 = vmul.f32 %v2873, %v2873
      %v2906 = vmul.f32 %v2874, %v2874
      %v2907 = vmul.f32 %v2875, %v2875
      %v2908 = vmul.f32 %v2876, %v2876
      %v2909 = vmul.f32 %v2877, %v2877
      %v2910 = vmul.f32 %v2878, %v2878
      %v2911 = vmul.f32 %v2879, %v2879
      %v2912 = vmul.f32 %v2880, %v2880
      %v2913 = vmul.f32 %v2881, %v2881
      %v2914 = vmul.f32 %v2882, %v2882
      %v2915 = vmul.f32 %v2883, %v2883
      %v2916 = vmul.f32 %v2884, %v2884
      %v2917 = vmul.f32 %v2885, %v2885
      %v2918 = vmul.f32 %v2886, %v2886
      %v2919 = vmul.f32 %v2887, %v2887
      %v2920 = vmul.f32 %v2888, %v2888
      %v2921 = vmul.f32 %v2889, %v2889
      %v2922 = vmul.f32 %v2890, %v2890
      %v2923 = vmul.f32 %v2891, %v2891
      %v2924 = vmul.f32 %v2892, %v2892
      %v2925 = vmul.f32 %v2893, %v2893
      %v2926 = vmul.f32 %v2894, %v2894
      %v2927 = vmul.f32 %v2895, %v2895
      %v2928 = vmul.f32 %v2896, %v2896
      %v2929 = vmul.f32 %v2897, %v2897
      %v2930 = vmul.f32 %v2898, %v2898
      %v2931 = vmul.f32 %v2899, %v2899
      %v2932 = vmul.f32 %v2900, %v2900
      %2933 = vadd.xlane.f32.xlu0 %v2901
      %v2934 = vpop.xlane.xlu0 %2933
      %2935 = vadd.xlane.f32.xlu0 %v2902
      %v2936 = vpop.xlane.xlu0 %2935
      %2937 = vadd.xlane.f32.xlu0 %v2903
      %v2938 = vpop.xlane.xlu0 %2937
      %2939 = vadd.xlane.f32.xlu0 %v2904
      %v2940 = vpop.xlane.xlu0 %2939
      %2941 = vadd.xlane.f32.xlu0 %v2905
      %v2942 = vpop.xlane.xlu0 %2941
      %2943 = vadd.xlane.f32.xlu0 %v2906
      %v2944 = vpop.xlane.xlu0 %2943
      %2945 = vadd.xlane.f32.xlu0 %v2907
      %v2946 = vpop.xlane.xlu0 %2945
      %2947 = vadd.xlane.f32.xlu0 %v2908
      %v2948 = vpop.xlane.xlu0 %2947
      %2949 = vadd.xlane.f32.xlu0 %v2909
      %v2950 = vpop.xlane.xlu0 %2949
      %2951 = vadd.xlane.f32.xlu0 %v2910
      %v2952 = vpop.xlane.xlu0 %2951
      %2953 = vadd.xlane.f32.xlu0 %v2911
      %v2954 = vpop.xlane.xlu0 %2953
      %2955 = vadd.xlane.f32.xlu0 %v2912
      %v2956 = vpop.xlane.xlu0 %2955
      %2957 = vadd.xlane.f32.xlu0 %v2913
      %v2958 = vpop.xlane.xlu0 %2957
      %2959 = vadd.xlane.f32.xlu0 %v2914
      %v2960 = vpop.xlane.xlu0 %2959
      %2961 = vadd.xlane.f32.xlu0 %v2915
      %v2962 = vpop.xlane.xlu0 %2961
      %2963 = vadd.xlane.f32.xlu0 %v2916
      %v2964 = vpop.xlane.xlu0 %2963
      %2965 = vadd.xlane.f32.xlu0 %v2917
      %v2966 = vpop.xlane.xlu0 %2965
      %2967 = vadd.xlane.f32.xlu0 %v2918
      %v2968 = vpop.xlane.xlu0 %2967
      %2969 = vadd.xlane.f32.xlu0 %v2919
      %v2970 = vpop.xlane.xlu0 %2969
      %2971 = vadd.xlane.f32.xlu0 %v2920
      %v2972 = vpop.xlane.xlu0 %2971
      %2973 = vadd.xlane.f32.xlu0 %v2921
      %v2974 = vpop.xlane.xlu0 %2973
      %2975 = vadd.xlane.f32.xlu0 %v2922
      %v2976 = vpop.xlane.xlu0 %2975
      %2977 = vadd.xlane.f32.xlu0 %v2923
      %v2978 = vpop.xlane.xlu0 %2977
      %2979 = vadd.xlane.f32.xlu0 %v2924
      %v2980 = vpop.xlane.xlu0 %2979
      %2981 = vadd.xlane.f32.xlu0 %v2925
      %v2982 = vpop.xlane.xlu0 %2981
      %2983 = vadd.xlane.f32.xlu0 %v2926
      %v2984 = vpop.xlane.xlu0 %2983
      %2985 = vadd.xlane.f32.xlu0 %v2927
      %v2986 = vpop.xlane.xlu0 %2985
      %2987 = vadd.xlane.f32.xlu0 %v2928
      %v2988 = vpop.xlane.xlu0 %2987
      %2989 = vadd.xlane.f32.xlu0 %v2929
      %v2990 = vpop.xlane.xlu0 %2989
      %2991 = vadd.xlane.f32.xlu0 %v2930
      %v2992 = vpop.xlane.xlu0 %2991
      %2993 = vadd.xlane.f32.xlu0 %v2931
      %v2994 = vpop.xlane.xlu0 %2993
      %2995 = vadd.xlane.f32.xlu0 %v2932
      %v2996 = vpop.xlane.xlu0 %2995
      %v2997 = vmul.f32 %v2934, %v2836
      %v2998 = vmul.f32 %v2936, %v2836
      %v2999 = vmul.f32 %v2938, %v2836
      %v3000 = vmul.f32 %v2940, %v2836
      %v3001 = vmul.f32 %v2942, %v2836
      %v3002 = vmul.f32 %v2944, %v2836
      %v3003 = vmul.f32 %v2946, %v2836
      %v3004 = vmul.f32 %v2948, %v2836
      %v3005 = vmul.f32 %v2950, %v2836
      %v3006 = vmul.f32 %v2952, %v2836
      %v3007 = vmul.f32 %v2954, %v2836
      %v3008 = vmul.f32 %v2956, %v2836
      %v3009 = vmul.f32 %v2958, %v2836
      %v3010 = vmul.f32 %v2960, %v2836
      %v3011 = vmul.f32 %v2962, %v2836
      %v3012 = vmul.f32 %v2964, %v2836
      %v3013 = vmul.f32 %v2966, %v2836
      %v3014 = vmul.f32 %v2968, %v2836
      %v3015 = vmul.f32 %v2970, %v2836
      %v3016 = vmul.f32 %v2972, %v2836
      %v3017 = vmul.f32 %v2974, %v2836
      %v3018 = vmul.f32 %v2976, %v2836
      %v3019 = vmul.f32 %v2978, %v2836
      %v3020 = vmul.f32 %v2980, %v2836
      %v3021 = vmul.f32 %v2982, %v2836
      %v3022 = vmul.f32 %v2984, %v2836
      %v3023 = vmul.f32 %v2986, %v2836
      %v3024 = vmul.f32 %v2988, %v2836
      %v3025 = vmul.f32 %v2990, %v2836
      %v3026 = vmul.f32 %v2992, %v2836
      %v3027 = vmul.f32 %v2994, %v2836
      %v3028 = vmul.f32 %v2996, %v2836
      %v3029 = vadd.f32 %v2997, 1e-05
      %v3030 = vadd.f32 %v2998, 1e-05
      %v3031 = vadd.f32 %v2999, 1e-05
      %v3032 = vadd.f32 %v3000, 1e-05
      %v3033 = vadd.f32 %v3001, 1e-05
      %v3034 = vadd.f32 %v3002, 1e-05
      %v3035 = vadd.f32 %v3003, 1e-05
      %v3036 = vadd.f32 %v3004, 1e-05
      %v3037 = vadd.f32 %v3005, 1e-05
      %v3038 = vadd.f32 %v3006, 1e-05
      %v3039 = vadd.f32 %v3007, 1e-05
      %v3040 = vadd.f32 %v3008, 1e-05
      %v3041 = vadd.f32 %v3009, 1e-05
      %v3042 = vadd.f32 %v3010, 1e-05
      %v3043 = vadd.f32 %v3011, 1e-05
      %v3044 = vadd.f32 %v3012, 1e-05
      %v3045 = vadd.f32 %v3013, 1e-05
      %v3046 = vadd.f32 %v3014, 1e-05
      %v3047 = vadd.f32 %v3015, 1e-05
      %v3048 = vadd.f32 %v3016, 1e-05
      %v3049 = vadd.f32 %v3017, 1e-05
      %v3050 = vadd.f32 %v3018, 1e-05
      %v3051 = vadd.f32 %v3019, 1e-05
      %v3052 = vadd.f32 %v3020, 1e-05
      %v3053 = vadd.f32 %v3021, 1e-05
      %v3054 = vadd.f32 %v3022, 1e-05
      %v3055 = vadd.f32 %v3023, 1e-05
      %v3056 = vadd.f32 %v3024, 1e-05
      %v3057 = vadd.f32 %v3025, 1e-05
      %v3058 = vadd.f32 %v3026, 1e-05
      %v3059 = vadd.f32 %v3027, 1e-05
      %v3060 = vadd.f32 %v3028, 1e-05
      %v3061 = vrsqrt.pop %v3029
      %v3062 = vrsqrt.pop %v3030
      %v3063 = vrsqrt.pop %v3031
      %v3064 = vrsqrt.pop %v3032
      %v3065 = vrsqrt.pop %v3033
      %v3066 = vrsqrt.pop %v3034
      %v3067 = vrsqrt.pop %v3035
      %v3068 = vrsqrt.pop %v3036
      %v3069 = vrsqrt.pop %v3037
      %v3070 = vrsqrt.pop %v3038
      %v3071 = vrsqrt.pop %v3039
      %v3072 = vrsqrt.pop %v3040
      %v3073 = vrsqrt.pop %v3041
      %v3074 = vrsqrt.pop %v3042
      %v3075 = vrsqrt.pop %v3043
      %v3076 = vrsqrt.pop %v3044
      %v3077 = vrsqrt.pop %v3045
      %v3078 = vrsqrt.pop %v3046
      %v3079 = vrsqrt.pop %v3047
      %v3080 = vrsqrt.pop %v3048
      %v3081 = vrsqrt.pop %v3049
      %v3082 = vrsqrt.pop %v3050
      %v3083 = vrsqrt.pop %v3051
      %v3084 = vrsqrt.pop %v3052
      %v3085 = vrsqrt.pop %v3053
      %v3086 = vrsqrt.pop %v3054
      %v3087 = vrsqrt.pop %v3055
      %v3088 = vrsqrt.pop %v3056
      %v3089 = vrsqrt.pop %v3057
      %v3090 = vrsqrt.pop %v3058
      %v3091 = vrsqrt.pop %v3059
      %v3092 = vrsqrt.pop %v3060
      %v3093 = vmul.f32 %v2869, %v3061
      %v3094 = vmul.f32 %v2870, %v3062
      %v3095 = vmul.f32 %v2871, %v3063
      %v3096 = vmul.f32 %v2872, %v3064
      %v3097 = vmul.f32 %v2873, %v3065
      %v3098 = vmul.f32 %v2874, %v3066
      %v3099 = vmul.f32 %v2875, %v3067
      %v3100 = vmul.f32 %v2876, %v3068
      %v3101 = vmul.f32 %v2877, %v3069
      %v3102 = vmul.f32 %v2878, %v3070
      %v3103 = vmul.f32 %v2879, %v3071
      %v3104 = vmul.f32 %v2880, %v3072
      %v3105 = vmul.f32 %v2881, %v3073
      %v3106 = vmul.f32 %v2882, %v3074
      %v3107 = vmul.f32 %v2883, %v3075
      %v3108 = vmul.f32 %v2884, %v3076
      %v3109 = vmul.f32 %v2885, %v3077
      %v3110 = vmul.f32 %v2886, %v3078
      %v3111 = vmul.f32 %v2887, %v3079
      %v3112 = vmul.f32 %v2888, %v3080
      %v3113 = vmul.f32 %v2889, %v3081
      %v3114 = vmul.f32 %v2890, %v3082
      %v3115 = vmul.f32 %v2891, %v3083
      %v3116 = vmul.f32 %v2892, %v3084
      %v3117 = vmul.f32 %v2893, %v3085
      %v3118 = vmul.f32 %v2894, %v3086
      %v3119 = vmul.f32 %v2895, %v3087
      %v3120 = vmul.f32 %v2896, %v3088
      %v3121 = vmul.f32 %v2897, %v3089
      %v3122 = vmul.f32 %v2898, %v3090
      %v3123 = vmul.f32 %v2899, %v3091
      %v3124 = vmul.f32 %v2900, %v3092
      %v3125 = vld [vmem:[%s12] sm:$0x1]
      %v3127 = vlaneseq
      %v3128 = vshrl.u32 %v3127, 7
      %v3129 = vsub.s32 0, %v3128
      %v3130 = vrot.slane %v3125, %v3129
      %v3132 = vmul.f32 %v3093, %v3130
      %v3133 = vmul.f32 %v3094, %v3130
      %v3134 = vmul.f32 %v3095, %v3130
      %v3135 = vmul.f32 %v3096, %v3130
      %v3136 = vmul.f32 %v3097, %v3130
      %v3137 = vmul.f32 %v3098, %v3130
      %v3138 = vmul.f32 %v3099, %v3130
      %v3139 = vmul.f32 %v3100, %v3130
      %v3140 = vmul.f32 %v3101, %v3130
      %v3141 = vmul.f32 %v3102, %v3130
      %v3142 = vmul.f32 %v3103, %v3130
      %v3143 = vmul.f32 %v3104, %v3130
      %v3144 = vmul.f32 %v3105, %v3130
      %v3145 = vmul.f32 %v3106, %v3130
      %v3146 = vmul.f32 %v3107, %v3130
      %v3147 = vmul.f32 %v3108, %v3130
      %v3148 = vmul.f32 %v3109, %v3130
      %v3149 = vmul.f32 %v3110, %v3130
      %v3150 = vmul.f32 %v3111, %v3130
      %v3151 = vmul.f32 %v3112, %v3130
      %v3152 = vmul.f32 %v3113, %v3130
      %v3153 = vmul.f32 %v3114, %v3130
      %v3154 = vmul.f32 %v3115, %v3130
      %v3155 = vmul.f32 %v3116, %v3130
      %v3156 = vmul.f32 %v3117, %v3130
      %v3157 = vmul.f32 %v3118, %v3130
      %v3158 = vmul.f32 %v3119, %v3130
      %v3159 = vmul.f32 %v3120, %v3130
      %v3160 = vmul.f32 %v3121, %v3130
      %v3161 = vmul.f32 %v3122, %v3130
      %v3162 = vmul.f32 %v3123, %v3130
      %v3163 = vmul.f32 %v3124, %v3130
      %v3164 = vld [vmem:[%s13] sm:$0x1]
      %v3166 = vlaneseq
      %v3167 = vshrl.u32 %v3166, 7
      %v3168 = vsub.s32 0, %v3167
      %v3169 = vrot.slane %v3164, %v3168
      %v3171 = vadd.f32 %v3132, %v3169
      %v3172 = vadd.f32 %v3133, %v3169
      %v3173 = vadd.f32 %v3134, %v3169
      %v3174 = vadd.f32 %v3135, %v3169
      %v3175 = vadd.f32 %v3136, %v3169
      %v3176 = vadd.f32 %v3137, %v3169
      %v3177 = vadd.f32 %v3138, %v3169
      %v3178 = vadd.f32 %v3139, %v3169
      %v3179 = vadd.f32 %v3140, %v3169
      %v3180 = vadd.f32 %v3141, %v3169
      %v3181 = vadd.f32 %v3142, %v3169
      %v3182 = vadd.f32 %v3143, %v3169
      %v3183 = vadd.f32 %v3144, %v3169
      %v3184 = vadd.f32 %v3145, %v3169
      %v3185 = vadd.f32 %v3146, %v3169
      %v3186 = vadd.f32 %v3147, %v3169
      %v3187 = vadd.f32 %v3148, %v3169
      %v3188 = vadd.f32 %v3149, %v3169
      %v3189 = vadd.f32 %v3150, %v3169
      %v3190 = vadd.f32 %v3151, %v3169
      %v3191 = vadd.f32 %v3152, %v3169
      %v3192 = vadd.f32 %v3153, %v3169
      %v3193 = vadd.f32 %v3154, %v3169
      %v3194 = vadd.f32 %v3155, %v3169
      %v3195 = vadd.f32 %v3156, %v3169
      %v3196 = vadd.f32 %v3157, %v3169
      %v3197 = vadd.f32 %v3158, %v3169
      %v3198 = vadd.f32 %v3159, %v3169
      %v3199 = vadd.f32 %v3160, %v3169
      %v3200 = vadd.f32 %v3161, %v3169
      %v3201 = vadd.f32 %v3162, %v3169
      %v3202 = vadd.f32 %v3163, %v3169
      %v3203 = vadd.f32 %v3171, %v1627
      %v3204 = vadd.f32 %v3172, %v1628
      %v3205 = vadd.f32 %v3173, %v1629
      %v3206 = vadd.f32 %v3174, %v1630
      %v3207 = vadd.f32 %v3175, %v1631
      %v3208 = vadd.f32 %v3176, %v1632
      %v3209 = vadd.f32 %v3177, %v1633
      %v3210 = vadd.f32 %v3178, %v1634
      %v3211 = vadd.f32 %v3179, %v1635
      %v3212 = vadd.f32 %v3180, %v1636
      %v3213 = vadd.f32 %v3181, %v1637
      %v3214 = vadd.f32 %v3182, %v1638
      %v3215 = vadd.f32 %v3183, %v1639
      %v3216 = vadd.f32 %v3184, %v1640
      %v3217 = vadd.f32 %v3185, %v1641
      %v3218 = vadd.f32 %v3186, %v1642
      %v3219 = vadd.f32 %v3187, %v1643
      %v3220 = vadd.f32 %v3188, %v1644
      %v3221 = vadd.f32 %v3189, %v1645
      %v3222 = vadd.f32 %v3190, %v1646
      %v3223 = vadd.f32 %v3191, %v1647
      %v3224 = vadd.f32 %v3192, %v1648
      %v3225 = vadd.f32 %v3193, %v1649
      %v3226 = vadd.f32 %v3194, %v1650
      %v3227 = vadd.f32 %v3195, %v1651
      %v3228 = vadd.f32 %v3196, %v1652
      %v3229 = vadd.f32 %v3197, %v1653
      %v3230 = vadd.f32 %v3198, %v1654
      %v3231 = vadd.f32 %v3199, %v1655
      %v3232 = vadd.f32 %v3200, %v1656
      %v3233 = vadd.f32 %v3201, %v1657
      %v3234 = vadd.f32 %v3202, %v1658
      %3235 = vst [vmem:[#allocation17] sm:$0xff] %v3203
      %3236 = vst [vmem:[#allocation17 + $0x8] sm:$0xff] %v3204
      %3237 = vst [vmem:[#allocation17 + $0x10] sm:$0xff] %v3205
      %3238 = vst [vmem:[#allocation17 + $0x18] sm:$0xff] %v3206
      %3239 = vst [vmem:[#allocation17 + $0x20] sm:$0xff] %v3207
      %3240 = vst [vmem:[#allocation17 + $0x28] sm:$0xff] %v3208
      %3241 = vst [vmem:[#allocation17 + $0x30] sm:$0xff] %v3209
      %3242 = vst [vmem:[#allocation17 + $0x38] sm:$0xff] %v3210
      %3243 = vst [vmem:[#allocation17 + $0x40] sm:$0xff] %v3211
      %3244 = vst [vmem:[#allocation17 + $0x48] sm:$0xff] %v3212
      %3245 = vst [vmem:[#allocation17 + $0x50] sm:$0xff] %v3213
      %3246 = vst [vmem:[#allocation17 + $0x58] sm:$0xff] %v3214
      %3247 = vst [vmem:[#allocation17 + $0x60] sm:$0xff] %v3215
      %3248 = vst [vmem:[#allocation17 + $0x68] sm:$0xff] %v3216
      %3249 = vst [vmem:[#allocation17 + $0x70] sm:$0xff] %v3217
      %3250 = vst [vmem:[#allocation17 + $0x78] sm:$0xff] %v3218
      %3251 = vst [vmem:[#allocation17 + $0x80] sm:$0xff] %v3219
      %3252 = vst [vmem:[#allocation17 + $0x88] sm:$0xff] %v3220
      %3253 = vst [vmem:[#allocation17 + $0x90] sm:$0xff] %v3221
      %3254 = vst [vmem:[#allocation17 + $0x98] sm:$0xff] %v3222
      %3255 = vst [vmem:[#allocation17 + $0xa0] sm:$0xff] %v3223
      %3256 = vst [vmem:[#allocation17 + $0xa8] sm:$0xff] %v3224
      %3257 = vst [vmem:[#allocation17 + $0xb0] sm:$0xff] %v3225
      %3258 = vst [vmem:[#allocation17 + $0xb8] sm:$0xff] %v3226
      %3259 = vst [vmem:[#allocation17 + $0xc0] sm:$0xff] %v3227
      %3260 = vst [vmem:[#allocation17 + $0xc8] sm:$0xff] %v3228
      %3261 = vst [vmem:[#allocation17 + $0xd0] sm:$0xff] %v3229
      %3262 = vst [vmem:[#allocation17 + $0xd8] sm:$0xff] %v3230
      %3263 = vst [vmem:[#allocation17 + $0xe0] sm:$0xff] %v3231
      %3264 = vst [vmem:[#allocation17 + $0xe8] sm:$0xff] %v3232
      %3265 = vst [vmem:[#allocation17 + $0xf0] sm:$0xff] %v3233
      %3266 = vst [vmem:[#allocation17 + $0xf8] sm:$0xff] %v3234
    $region85: #{tpu_custom_call.1} parent=1 // pred_fallthru
      _
    // Predicated region
    $region86: #{tpu_custom_call.1} parent=1 // pred_check
      _
    $region87: #{tpu_custom_call.1} parent=1 // pred_check_branch
      %3268 = sbr.rel (0) target = $region89
    $region88: #{tpu_custom_call.1} parent=1 // pred_region
      %s3270 = ssub.s32 4096, 4096
      %3271 = vsyncadd [#allocation8], %s3270
      %s3272 = sshll.u32 [#allocation17], 4
      %s3273 = int_to_ptr.vmem [resolvable:$true] %s3272
      %3278 = dma.vmem_to_hbm [thread:$0]  %s3273, 4096, %s14, [#allocation8], 128, 128, 8
    $region89: #{tpu_custom_call.1} parent=1 // pred_fallthru
      _
    // Predicated region
    $region90: #{tpu_custom_call.1} parent=1 // pred_check
      _
    $region91: #{tpu_custom_call.1} parent=1 // pred_check_branch
      %3280 = sbr.rel (0) target = $region93
    $region92: #{tpu_custom_call.1} parent=1 // pred_region
      %3281 = dma.done [#allocation8], 4096
    $region93: #{tpu_custom_call.1} parent=1 // pred_fallthru
      _
    %3282 = vsyncpa [#allocation7], 1
    %3283 = vsyncpa [#allocation10], 1
    %3284 = vsyncpa [#allocation13], 1
    %3285 = vsyncpa [#allocation16], 1
    %3286 = vsyncpa [#allocation8], 1

</llo_original>
